<compile_context>
chip_gen: v5e
topology: v5e:2x2
jax: 0.10.0
libtpu: 0.0.40
codegen_flags: <defaults>
</compile_context>

<pallas_src>
import numpy as np

import jax
import jax.numpy as jnp
from jax.experimental import pallas as pl
from jax.experimental.pallas import tpu as pltpu


# -----------------------------------------------------------------------------
# Static geometry (28x28 single-channel input, as implied by the 6x6 GAP).
# -----------------------------------------------------------------------------
IN_H = IN_W = 28
X_COLS = IN_H * IN_W               # 784 real flattened pixels per image
X_SLACK = 8                        # zero slack so every tap slice is in bounds
X_COLS_PAD = X_COLS + X_SLACK      # 792

POOL_IN_H, POOL_IN_W = 24, 28      # grid feeding MaxPool (valid region 24x24)
POOL_OUT = 12
POOL_SLACK = 8                     # zero slack columns appended by the selection
SEL_ROWS = POOL_IN_H * POOL_IN_W - POOL_IN_W - 1   # 643
SEL_COLS = POOL_OUT * POOL_OUT + POOL_SLACK        # 152
GAP_ROWS = 6 * POOL_OUT                            # 72


# -----------------------------------------------------------------------------
# Fused forward-pass kernel (one grid step == one image).
# -----------------------------------------------------------------------------
def _model7_kernel(x_ref,
                   w1_ref, s1_ref, b1_ref,
                   w2_ref, s2_ref, b2_ref,
                   w3_ref,
                   w4_ref, s4_ref, b4_ref,
                   w5_ref, s5_ref, b5_ref,
                   w6_ref, s6_ref, b6_ref,
                   sel_ref, gap_ref, w7_ref, w8_ref,
                   o_ref):
    f32 = jnp.float32
    bf16 = jnp.bfloat16

    def conv3x3_relu_bn(a, row_stride, w_ref, scale_ref, shift_ref):
        """3x3 valid conv + ReLU + BN affine on a flattened (cin, cols) activation.

        Columns of `a` are the flattened spatial index h*row_stride + w.
        w_ref is tap-major: (9, cout, cin) bf16.  Returns f32
        (cout, cols - 2*row_stride - 2).
        """
        cin, cols_in = a.shape
        cols_out = cols_in - 2 * row_stride - 2
        y = None
        for kh in range(3):
            for kw in range(3):
                shift = kh * row_stride + kw
                sl = a[:, shift:shift + cols_out]             # (cin, cols_out)
                wk = w_ref[kh * 3 + kw]                       # (cout, cin)
                if cin == 1:
                    d = wk.astype(f32) * sl                   # outer product on VPU
                else:
                    d = jnp.dot(wk, sl.astype(bf16),          # MXU, f32 accumulate
                                preferred_element_type=f32)
                y = d if y is None else y + d
        y = jnp.maximum(y, 0.0)                               # ReLU (f32)
        return y * scale_ref[...] + shift_ref[...]            # BatchNorm affine (f32)

    # ---- convblock1..3 (stored width 28) ------------------------------------
    a = x_ref[0]                                              # (1, 792)  f32
    a = conv3x3_relu_bn(a, IN_W, w1_ref, s1_ref, b1_ref)      # (8, 734)  grid 26x28
    a = conv3x3_relu_bn(a, IN_W, w2_ref, s2_ref, b2_ref)      # (14, 676) grid 24x28
    a = jnp.dot(w3_ref[...], a.astype(bf16),
                preferred_element_type=f32)                   # (10, 676) 1x1 conv

    # ---- MaxPool2d(2, 2) over the valid 24x24 region -------------------------
    a = a[:, :POOL_IN_H * POOL_IN_W]                          # (10, 672)
    t = jnp.maximum(a[:, :-POOL_IN_W], a[:, POOL_IN_W:])      # (10, 644)  rows h, h+1
    t = jnp.maximum(t[:, :-1], t[:, 1:])                      # (10, 643)  cols w, w+1
    a = jnp.dot(t, sel_ref[...],
                preferred_element_type=f32)                   # (10, 152)  grid 12x12 (+slack)

    # ---- convblock4..6 (stored width 12) ------------------------------------
    a = conv3x3_relu_bn(a, POOL_OUT, w4_ref, s4_ref, b4_ref)  # (14, 126) grid 10x12
    a = conv3x3_relu_bn(a, POOL_OUT, w5_ref, s5_ref, b5_ref)  # (16, 100) grid  8x12
    a = conv3x3_relu_bn(a, POOL_OUT, w6_ref, s6_ref, b6_ref)  # (20,  74) grid  6x12

    # ---- GAP(6x6) + 1x1 convblock7 + 1x1 convblock8 + log_softmax -------------
    g = jnp.dot(a[:, :GAP_ROWS], gap_ref[...],
                preferred_element_type=f32)                   # (20, 1) mean over 6x6
    h = jnp.dot(w7_ref[...], g, preferred_element_type=f32)   # (16, 1)
    z = jnp.dot(w8_ref[...], h, preferred_element_type=f32)   # (10, 1) logits
    m = jnp.max(z, axis=0, keepdims=True)                     # (1, 1)
    lse = jnp.log(jnp.sum(jnp.exp(z - m), axis=0, keepdims=True)) + m
    o_ref[0] = (z - lse).astype(o_ref.dtype)                  # (10, 1) log-probs


# -----------------------------------------------------------------------------
# Host-side constant matrices (selection / mask) and parameters.
# -----------------------------------------------------------------------------
def _pool_select():
    """0/1 matrix: output column ho*12+wo picks flat index (2*ho)*28 + 2*wo."""
    sel = np.zeros((SEL_ROWS, SEL_COLS), np.float32)
    for ho in range(POOL_OUT):
        for wo in range(POOL_OUT):
            sel[(2 * ho) * POOL_IN_W + 2 * wo, ho * POOL_OUT + wo] = 1.0
    return jnp.asarray(sel)


def _gap_mask():
    """Column vector averaging the valid 6x6 region of the 6x12 stored grid."""
    m = np.zeros((GAP_ROWS, 1), np.float32)
    for h in range(6):
        for w in range(6):
            m[h * POOL_OUT + w, 0] = 1.0 / 36.0
    return jnp.asarray(m)


def make_params(key):
    """Deterministic parameters (conv weights tap-major (K*K, cout, cin))."""
    bf16 = jnp.bfloat16

    def conv_w(k, ksz, cin, cout, dtype):
        fan_in = ksz * ksz * cin
        w = jax.random.normal(k, (ksz, ksz, cin, cout), jnp.float32)
        w = w / jnp.sqrt(float(fan_in))
        if ksz == 1:
            return jnp.transpose(w.reshape(cin, cout)).astype(dtype)       # (cout, cin)
        return jnp.transpose(w.reshape(ksz * ksz, cin, cout),
                             (0, 2, 1)).astype(dtype)                      # (9, cout, cin)

    def bn(k, c):
        k1, k2, k3, k4 = jax.random.split(k, 4)
        gamma = 1.0 + 0.1 * jax.random.normal(k1, (c,), jnp.float32)
        beta = 0.1 * jax.random.normal(k2, (c,), jnp.float32)
        mean = 0.1 * jax.random.normal(k3, (c,), jnp.float32)
        var = 0.5 + jnp.abs(jax.random.normal(k4, (c,), jnp.float32))
        scale = gamma / jnp.sqrt(var + 1e-5)
        shift = beta - mean * scale
        return scale.reshape(c, 1), shift.reshape(c, 1)

    keys = jax.random.split(key, 16)
    p = {}
    p["w1"] = conv_w(keys[0], 3, 1, 8, bf16);    p["s1"], p["b1"] = bn(keys[1], 8)
    p["w2"] = conv_w(keys[2], 3, 8, 14, bf16);   p["s2"], p["b2"] = bn(keys[3], 14)
    p["w3"] = conv_w(keys[4], 1, 14, 10, bf16)
    p["w4"] = conv_w(keys[6], 3, 10, 14, bf16);  p["s4"], p["b4"] = bn(keys[7], 14)
    p["w5"] = conv_w(keys[8], 3, 14, 16, bf16);  p["s5"], p["b5"] = bn(keys[9], 16)
    p["w6"] = conv_w(keys[10], 3, 16, 20, bf16); p["s6"], p["b6"] = bn(keys[11], 20)
    p["w7"] = conv_w(keys[12], 1, 20, 16, jnp.float32)   # head kept in f32
    p["w8"] = conv_w(keys[13], 1, 16, 10, jnp.float32)
    return p


# -----------------------------------------------------------------------------
# Forward wrapper (single fused pallas_call).
# -----------------------------------------------------------------------------
def _full_spec(arr):
    shape = arr.shape
    nd = len(shape)
    return pl.BlockSpec(shape, lambda b, _nd=nd: (0,) * _nd)


@jax.jit
def model7_forward(x_nchw, params, sel, gap_mask):
    """x_nchw: (B, 1, 28, 28) float32 -> (B, 10) log-probabilities."""
    B = x_nchw.shape[0]
    # NCHW (C=1) -> per-image flattened row-major spatial index on the lane dim,
    # plus zero slack columns so every in-kernel tap slice stays in bounds.
    x = x_nchw.astype(jnp.float32).reshape(B, 1, X_COLS)
    x = jnp.pad(x, ((0, 0), (0, 0), (0, X_SLACK)))            # (B, 1, 792)

    inputs = [
        x,
        params["w1"], params["s1"], params["b1"],
        params["w2"], params["s2"], params["b2"],
        params["w3"],
        params["w4"], params["s4"], params["b4"],
        params["w5"], params["s5"], params["b5"],
        params["w6"], params["s6"], params["b6"],
        sel, gap_mask, params["w7"], params["w8"],
    ]
    in_specs = [pl.BlockSpec((1, 1, X_COLS_PAD), lambda b: (b, 0, 0))]
    in_specs += [_full_spec(a) for a in inputs[1:]]

    out = pl.pallas_call(
        _model7_kernel,
        out_shape=jax.ShapeDtypeStruct((B, 10, 1), jnp.float32),
        grid=(B,),
        in_specs=in_specs,
        out_specs=pl.BlockSpec((1, 10, 1), lambda b: (b, 0, 0)),
        compiler_params=pltpu.CompilerParams(
            # Batch steps are independent -> lets v7x shard them over its 2 TCs.
            dimension_semantics=("parallel",),
        ),
    )(*inputs)
    return out.reshape(B, 10)


if __name__ == "__main__":
    key = jax.random.PRNGKey(0)
    k_params, k_x = jax.random.split(key)
    params = make_params(k_params)
    sel = _pool_select()
    gap_mask = _gap_mask()

    # Model_7 implies 28x28 single-channel input (MNIST-style); batch = 2.
    x = jax.random.normal(k_x, (2, 1, 28, 28), jnp.float32)

    out = jax.block_until_ready(model7_forward(x, params, sel, gap_mask))

    assert out.shape == (2, 10)
    assert bool(jnp.all(jnp.isfinite(out)))
    # log_softmax rows must (approximately) exponentiate-sum to 1.
    assert bool(jnp.all(jnp.abs(jnp.sum(jnp.exp(out), axis=-1) - 1.0) < 1e-4))
    print("KERNEL_OK")
</pallas_src>

<mosaic_0001>
module attributes {stable_mosaic.version = 11 : i64} {
  func.func @_model7_kernel(%arg0: i32, %arg1: memref<1x1x792xf32, #tpu.memory_space<vmem>>, %arg2: memref<9x8x1xbf16, #tpu.memory_space<vmem>>, %arg3: memref<8x1xf32, #tpu.memory_space<vmem>>, %arg4: memref<8x1xf32, #tpu.memory_space<vmem>>, %arg5: memref<9x14x8xbf16, #tpu.memory_space<vmem>>, %arg6: memref<14x1xf32, #tpu.memory_space<vmem>>, %arg7: memref<14x1xf32, #tpu.memory_space<vmem>>, %arg8: memref<10x14xbf16, #tpu.memory_space<vmem>>, %arg9: memref<9x14x10xbf16, #tpu.memory_space<vmem>>, %arg10: memref<14x1xf32, #tpu.memory_space<vmem>>, %arg11: memref<14x1xf32, #tpu.memory_space<vmem>>, %arg12: memref<9x16x14xbf16, #tpu.memory_space<vmem>>, %arg13: memref<16x1xf32, #tpu.memory_space<vmem>>, %arg14: memref<16x1xf32, #tpu.memory_space<vmem>>, %arg15: memref<9x20x16xbf16, #tpu.memory_space<vmem>>, %arg16: memref<20x1xf32, #tpu.memory_space<vmem>>, %arg17: memref<20x1xf32, #tpu.memory_space<vmem>>, %arg18: memref<643x152xf32, #tpu.memory_space<vmem>>, %arg19: memref<72x1xf32, #tpu.memory_space<vmem>>, %arg20: memref<16x20xf32, #tpu.memory_space<vmem>>, %arg21: memref<10x16xf32, #tpu.memory_space<vmem>>, %arg22: memref<1x10x1xf32, #tpu.memory_space<vmem>>) attributes {dimension_semantics = [#tpu.dimension_semantics<parallel>], iteration_bounds = array<i64: 2>, scalar_prefetch = 0 : i64, scratch_operands = 0 : i64, tpu.core_type = #tpu.core_type<tc>, window_params = [{transform_indices = @transform_0, window_bounds = array<i64: 1, 1, 792>}, {pipeline_mode = #tpu.pipeline_mode<synchronous>, transform_indices = @transform_1, window_bounds = array<i64: 9, 8, 1>}, {pipeline_mode = #tpu.pipeline_mode<synchronous>, transform_indices = @transform_2, window_bounds = array<i64: 8, 1>}, {pipeline_mode = #tpu.pipeline_mode<synchronous>, transform_indices = @transform_3, window_bounds = array<i64: 8, 1>}, {pipeline_mode = #tpu.pipeline_mode<synchronous>, transform_indices = @transform_4, window_bounds = array<i64: 9, 14, 8>}, {pipeline_mode = #tpu.pipeline_mode<synchronous>, transform_indices = @transform_5, window_bounds = array<i64: 14, 1>}, {pipeline_mode = #tpu.pipeline_mode<synchronous>, transform_indices = @transform_6, window_bounds = array<i64: 14, 1>}, {pipeline_mode = #tpu.pipeline_mode<synchronous>, transform_indices = @transform_7, window_bounds = array<i64: 10, 14>}, {pipeline_mode = #tpu.pipeline_mode<synchronous>, transform_indices = @transform_8, window_bounds = array<i64: 9, 14, 10>}, {pipeline_mode = #tpu.pipeline_mode<synchronous>, transform_indices = @transform_9, window_bounds = array<i64: 14, 1>}, {pipeline_mode = #tpu.pipeline_mode<synchronous>, transform_indices = @transform_10, window_bounds = array<i64: 14, 1>}, {pipeline_mode = #tpu.pipeline_mode<synchronous>, transform_indices = @transform_11, window_bounds = array<i64: 9, 16, 14>}, {pipeline_mode = #tpu.pipeline_mode<synchronous>, transform_indices = @transform_12, window_bounds = array<i64: 16, 1>}, {pipeline_mode = #tpu.pipeline_mode<synchronous>, transform_indices = @transform_13, window_bounds = array<i64: 16, 1>}, {pipeline_mode = #tpu.pipeline_mode<synchronous>, transform_indices = @transform_14, window_bounds = array<i64: 9, 20, 16>}, {pipeline_mode = #tpu.pipeline_mode<synchronous>, transform_indices = @transform_15, window_bounds = array<i64: 20, 1>}, {pipeline_mode = #tpu.pipeline_mode<synchronous>, transform_indices = @transform_16, window_bounds = array<i64: 20, 1>}, {pipeline_mode = #tpu.pipeline_mode<synchronous>, transform_indices = @transform_17, window_bounds = array<i64: 643, 152>}, {pipeline_mode = #tpu.pipeline_mode<synchronous>, transform_indices = @transform_18, window_bounds = array<i64: 72, 1>}, {pipeline_mode = #tpu.pipeline_mode<synchronous>, transform_indices = @transform_19, window_bounds = array<i64: 16, 20>}, {pipeline_mode = #tpu.pipeline_mode<synchronous>, transform_indices = @transform_20, window_bounds = array<i64: 10, 16>}, {transform_indices = @transform_21, window_bounds = array<i64: 1, 10, 1>}]} {
    %c0 = arith.constant 0 : index
    %c0_0 = arith.constant 0 : index
    %c0_1 = arith.constant 0 : index
    %0 = vector.load %arg1[%c0, %c0_0, %c0_1] : memref<1x1x792xf32, #tpu.memory_space<vmem>>, vector<1x1x792xf32>
    %1 = vector.shape_cast %0 : vector<1x1x792xf32> to vector<1x792xf32>
    %2 = vector.extract_strided_slice %1 {offsets = [0, 0], sizes = [1, 734], strides = [1, 1]} : vector<1x792xf32> to vector<1x734xf32>
    %c0_2 = arith.constant 0 : index
    %c0_3 = arith.constant 0 : index
    %c0_4 = arith.constant 0 : index
    %3 = vector.load %arg2[%c0_2, %c0_3, %c0_4] : memref<9x8x1xbf16, #tpu.memory_space<vmem>>, vector<1x8x1xbf16>
    %4 = vector.shape_cast %3 : vector<1x8x1xbf16> to vector<8x1xbf16>
    %5 = arith.extf %4 : vector<8x1xbf16> to vector<8x1xf32>
    %6 = vector.broadcast %5 : vector<8x1xf32> to vector<8x734xf32>
    %7 = vector.broadcast %2 : vector<1x734xf32> to vector<8x734xf32>
    %8 = arith.mulf %6, %7 : vector<8x734xf32>
    %9 = vector.extract_strided_slice %1 {offsets = [0, 1], sizes = [1, 734], strides = [1, 1]} : vector<1x792xf32> to vector<1x734xf32>
    %c1 = arith.constant 1 : index
    %c0_5 = arith.constant 0 : index
    %c0_6 = arith.constant 0 : index
    %10 = vector.load %arg2[%c1, %c0_5, %c0_6] : memref<9x8x1xbf16, #tpu.memory_space<vmem>>, vector<1x8x1xbf16>
    %11 = vector.shape_cast %10 : vector<1x8x1xbf16> to vector<8x1xbf16>
    %12 = arith.extf %11 : vector<8x1xbf16> to vector<8x1xf32>
    %13 = vector.broadcast %12 : vector<8x1xf32> to vector<8x734xf32>
    %14 = vector.broadcast %9 : vector<1x734xf32> to vector<8x734xf32>
    %15 = arith.mulf %13, %14 : vector<8x734xf32>
    %16 = arith.addf %8, %15 : vector<8x734xf32>
    %17 = vector.extract_strided_slice %1 {offsets = [0, 2], sizes = [1, 734], strides = [1, 1]} : vector<1x792xf32> to vector<1x734xf32>
    %c2 = arith.constant 2 : index
    %c0_7 = arith.constant 0 : index
    %c0_8 = arith.constant 0 : index
    %18 = vector.load %arg2[%c2, %c0_7, %c0_8] : memref<9x8x1xbf16, #tpu.memory_space<vmem>>, vector<1x8x1xbf16>
    %19 = vector.shape_cast %18 : vector<1x8x1xbf16> to vector<8x1xbf16>
    %20 = arith.extf %19 : vector<8x1xbf16> to vector<8x1xf32>
    %21 = vector.broadcast %20 : vector<8x1xf32> to vector<8x734xf32>
    %22 = vector.broadcast %17 : vector<1x734xf32> to vector<8x734xf32>
    %23 = arith.mulf %21, %22 : vector<8x734xf32>
    %24 = arith.addf %16, %23 : vector<8x734xf32>
    %25 = vector.extract_strided_slice %1 {offsets = [0, 28], sizes = [1, 734], strides = [1, 1]} : vector<1x792xf32> to vector<1x734xf32>
    %c3 = arith.constant 3 : index
    %c0_9 = arith.constant 0 : index
    %c0_10 = arith.constant 0 : index
    %26 = vector.load %arg2[%c3, %c0_9, %c0_10] : memref<9x8x1xbf16, #tpu.memory_space<vmem>>, vector<1x8x1xbf16>
    %27 = vector.shape_cast %26 : vector<1x8x1xbf16> to vector<8x1xbf16>
    %28 = arith.extf %27 : vector<8x1xbf16> to vector<8x1xf32>
    %29 = vector.broadcast %28 : vector<8x1xf32> to vector<8x734xf32>
    %30 = vector.broadcast %25 : vector<1x734xf32> to vector<8x734xf32>
    %31 = arith.mulf %29, %30 : vector<8x734xf32>
    %32 = arith.addf %24, %31 : vector<8x734xf32>
    %33 = vector.extract_strided_slice %1 {offsets = [0, 29], sizes = [1, 734], strides = [1, 1]} : vector<1x792xf32> to vector<1x734xf32>
    %c4 = arith.constant 4 : index
    %c0_11 = arith.constant 0 : index
    %c0_12 = arith.constant 0 : index
    %34 = vector.load %arg2[%c4, %c0_11, %c0_12] : memref<9x8x1xbf16, #tpu.memory_space<vmem>>, vector<1x8x1xbf16>
    %35 = vector.shape_cast %34 : vector<1x8x1xbf16> to vector<8x1xbf16>
    %36 = arith.extf %35 : vector<8x1xbf16> to vector<8x1xf32>
    %37 = vector.broadcast %36 : vector<8x1xf32> to vector<8x734xf32>
    %38 = vector.broadcast %33 : vector<1x734xf32> to vector<8x734xf32>
    %39 = arith.mulf %37, %38 : vector<8x734xf32>
    %40 = arith.addf %32, %39 : vector<8x734xf32>
    %41 = vector.extract_strided_slice %1 {offsets = [0, 30], sizes = [1, 734], strides = [1, 1]} : vector<1x792xf32> to vector<1x734xf32>
    %c5 = arith.constant 5 : index
    %c0_13 = arith.constant 0 : index
    %c0_14 = arith.constant 0 : index
    %42 = vector.load %arg2[%c5, %c0_13, %c0_14] : memref<9x8x1xbf16, #tpu.memory_space<vmem>>, vector<1x8x1xbf16>
    %43 = vector.shape_cast %42 : vector<1x8x1xbf16> to vector<8x1xbf16>
    %44 = arith.extf %43 : vector<8x1xbf16> to vector<8x1xf32>
    %45 = vector.broadcast %44 : vector<8x1xf32> to vector<8x734xf32>
    %46 = vector.broadcast %41 : vector<1x734xf32> to vector<8x734xf32>
    %47 = arith.mulf %45, %46 : vector<8x734xf32>
    %48 = arith.addf %40, %47 : vector<8x734xf32>
    %49 = vector.extract_strided_slice %1 {offsets = [0, 56], sizes = [1, 734], strides = [1, 1]} : vector<1x792xf32> to vector<1x734xf32>
    %c6 = arith.constant 6 : index
    %c0_15 = arith.constant 0 : index
    %c0_16 = arith.constant 0 : index
    %50 = vector.load %arg2[%c6, %c0_15, %c0_16] : memref<9x8x1xbf16, #tpu.memory_space<vmem>>, vector<1x8x1xbf16>
    %51 = vector.shape_cast %50 : vector<1x8x1xbf16> to vector<8x1xbf16>
    %52 = arith.extf %51 : vector<8x1xbf16> to vector<8x1xf32>
    %53 = vector.broadcast %52 : vector<8x1xf32> to vector<8x734xf32>
    %54 = vector.broadcast %49 : vector<1x734xf32> to vector<8x734xf32>
    %55 = arith.mulf %53, %54 : vector<8x734xf32>
    %56 = arith.addf %48, %55 : vector<8x734xf32>
    %57 = vector.extract_strided_slice %1 {offsets = [0, 57], sizes = [1, 734], strides = [1, 1]} : vector<1x792xf32> to vector<1x734xf32>
    %c7 = arith.constant 7 : index
    %c0_17 = arith.constant 0 : index
    %c0_18 = arith.constant 0 : index
    %58 = vector.load %arg2[%c7, %c0_17, %c0_18] : memref<9x8x1xbf16, #tpu.memory_space<vmem>>, vector<1x8x1xbf16>
    %59 = vector.shape_cast %58 : vector<1x8x1xbf16> to vector<8x1xbf16>
    %60 = arith.extf %59 : vector<8x1xbf16> to vector<8x1xf32>
    %61 = vector.broadcast %60 : vector<8x1xf32> to vector<8x734xf32>
    %62 = vector.broadcast %57 : vector<1x734xf32> to vector<8x734xf32>
    %63 = arith.mulf %61, %62 : vector<8x734xf32>
    %64 = arith.addf %56, %63 : vector<8x734xf32>
    %65 = vector.extract_strided_slice %1 {offsets = [0, 58], sizes = [1, 734], strides = [1, 1]} : vector<1x792xf32> to vector<1x734xf32>
    %c8 = arith.constant 8 : index
    %c0_19 = arith.constant 0 : index
    %c0_20 = arith.constant 0 : index
    %66 = vector.load %arg2[%c8, %c0_19, %c0_20] : memref<9x8x1xbf16, #tpu.memory_space<vmem>>, vector<1x8x1xbf16>
    %67 = vector.shape_cast %66 : vector<1x8x1xbf16> to vector<8x1xbf16>
    %68 = arith.extf %67 : vector<8x1xbf16> to vector<8x1xf32>
    %69 = vector.broadcast %68 : vector<8x1xf32> to vector<8x734xf32>
    %70 = vector.broadcast %65 : vector<1x734xf32> to vector<8x734xf32>
    %71 = arith.mulf %69, %70 : vector<8x734xf32>
    %72 = arith.addf %64, %71 : vector<8x734xf32>
    %cst = arith.constant 0.000000e+00 : f32
    %73 = vector.broadcast %cst : f32 to vector<8x734xf32>
    %74 = arith.maximumf %72, %73 : vector<8x734xf32>
    %c0_21 = arith.constant 0 : index
    %c0_22 = arith.constant 0 : index
    %75 = vector.load %arg3[%c0_21, %c0_22] : memref<8x1xf32, #tpu.memory_space<vmem>>, vector<8x1xf32>
    %76 = vector.broadcast %75 : vector<8x1xf32> to vector<8x734xf32>
    %77 = arith.mulf %74, %76 : vector<8x734xf32>
    %c0_23 = arith.constant 0 : index
    %c0_24 = arith.constant 0 : index
    %78 = vector.load %arg4[%c0_23, %c0_24] : memref<8x1xf32, #tpu.memory_space<vmem>>, vector<8x1xf32>
    %79 = vector.broadcast %78 : vector<8x1xf32> to vector<8x734xf32>
    %80 = arith.addf %77, %79 : vector<8x734xf32>
    %81 = vector.extract_strided_slice %80 {offsets = [0, 0], sizes = [8, 676], strides = [1, 1]} : vector<8x734xf32> to vector<8x676xf32>
    %c0_25 = arith.constant 0 : index
    %c0_26 = arith.constant 0 : index
    %c0_27 = arith.constant 0 : index
    %82 = vector.load %arg5[%c0_25, %c0_26, %c0_27] : memref<9x14x8xbf16, #tpu.memory_space<vmem>>, vector<1x14x8xbf16>
    %83 = vector.shape_cast %82 : vector<1x14x8xbf16> to vector<14x8xbf16>
    %84 = arith.truncf %81 : vector<8x676xf32> to vector<8x676xbf16>
    %cst_28 = arith.constant dense<0.000000e+00> : vector<14x676xf32>
    %85 = tpu.matmul %83, %84, %cst_28 {dimension_numbers = #tpu.dot_dimension_numbers<[1], [0], [0], [1], [0, 0, 1, 1], [], []>} : vector<14x8xbf16>, vector<8x676xbf16>, vector<14x676xf32> -> vector<14x676xf32>
    %86 = vector.extract_strided_slice %80 {offsets = [0, 1], sizes = [8, 676], strides = [1, 1]} : vector<8x734xf32> to vector<8x676xf32>
    %c1_29 = arith.constant 1 : index
    %c0_30 = arith.constant 0 : index
    %c0_31 = arith.constant 0 : index
    %87 = vector.load %arg5[%c1_29, %c0_30, %c0_31] : memref<9x14x8xbf16, #tpu.memory_space<vmem>>, vector<1x14x8xbf16>
    %88 = vector.shape_cast %87 : vector<1x14x8xbf16> to vector<14x8xbf16>
    %89 = arith.truncf %86 : vector<8x676xf32> to vector<8x676xbf16>
    %cst_32 = arith.constant dense<0.000000e+00> : vector<14x676xf32>
    %90 = tpu.matmul %88, %89, %cst_32 {dimension_numbers = #tpu.dot_dimension_numbers<[1], [0], [0], [1], [0, 0, 1, 1], [], []>} : vector<14x8xbf16>, vector<8x676xbf16>, vector<14x676xf32> -> vector<14x676xf32>
    %91 = arith.addf %85, %90 : vector<14x676xf32>
    %92 = vector.extract_strided_slice %80 {offsets = [0, 2], sizes = [8, 676], strides = [1, 1]} : vector<8x734xf32> to vector<8x676xf32>
    %c2_33 = arith.constant 2 : index
    %c0_34 = arith.constant 0 : index
    %c0_35 = arith.constant 0 : index
    %93 = vector.load %arg5[%c2_33, %c0_34, %c0_35] : memref<9x14x8xbf16, #tpu.memory_space<vmem>>, vector<1x14x8xbf16>
    %94 = vector.shape_cast %93 : vector<1x14x8xbf16> to vector<14x8xbf16>
    %95 = arith.truncf %92 : vector<8x676xf32> to vector<8x676xbf16>
    %cst_36 = arith.constant dense<0.000000e+00> : vector<14x676xf32>
    %96 = tpu.matmul %94, %95, %cst_36 {dimension_numbers = #tpu.dot_dimension_numbers<[1], [0], [0], [1], [0, 0, 1, 1], [], []>} : vector<14x8xbf16>, vector<8x676xbf16>, vector<14x676xf32> -> vector<14x676xf32>
    %97 = arith.addf %91, %96 : vector<14x676xf32>
    %98 = vector.extract_strided_slice %80 {offsets = [0, 28], sizes = [8, 676], strides = [1, 1]} : vector<8x734xf32> to vector<8x676xf32>
    %c3_37 = arith.constant 3 : index
    %c0_38 = arith.constant 0 : index
    %c0_39 = arith.constant 0 : index
    %99 = vector.load %arg5[%c3_37, %c0_38, %c0_39] : memref<9x14x8xbf16, #tpu.memory_space<vmem>>, vector<1x14x8xbf16>
    %100 = vector.shape_cast %99 : vector<1x14x8xbf16> to vector<14x8xbf16>
    %101 = arith.truncf %98 : vector<8x676xf32> to vector<8x676xbf16>
    %cst_40 = arith.constant dense<0.000000e+00> : vector<14x676xf32>
    %102 = tpu.matmul %100, %101, %cst_40 {dimension_numbers = #tpu.dot_dimension_numbers<[1], [0], [0], [1], [0, 0, 1, 1], [], []>} : vector<14x8xbf16>, vector<8x676xbf16>, vector<14x676xf32> -> vector<14x676xf32>
    %103 = arith.addf %97, %102 : vector<14x676xf32>
    %104 = vector.extract_strided_slice %80 {offsets = [0, 29], sizes = [8, 676], strides = [1, 1]} : vector<8x734xf32> to vector<8x676xf32>
    %c4_41 = arith.constant 4 : index
    %c0_42 = arith.constant 0 : index
    %c0_43 = arith.constant 0 : index
    %105 = vector.load %arg5[%c4_41, %c0_42, %c0_43] : memref<9x14x8xbf16, #tpu.memory_space<vmem>>, vector<1x14x8xbf16>
    %106 = vector.shape_cast %105 : vector<1x14x8xbf16> to vector<14x8xbf16>
    %107 = arith.truncf %104 : vector<8x676xf32> to vector<8x676xbf16>
    %cst_44 = arith.constant dense<0.000000e+00> : vector<14x676xf32>
    %108 = tpu.matmul %106, %107, %cst_44 {dimension_numbers = #tpu.dot_dimension_numbers<[1], [0], [0], [1], [0, 0, 1, 1], [], []>} : vector<14x8xbf16>, vector<8x676xbf16>, vector<14x676xf32> -> vector<14x676xf32>
    %109 = arith.addf %103, %108 : vector<14x676xf32>
    %110 = vector.extract_strided_slice %80 {offsets = [0, 30], sizes = [8, 676], strides = [1, 1]} : vector<8x734xf32> to vector<8x676xf32>
    %c5_45 = arith.constant 5 : index
    %c0_46 = arith.constant 0 : index
    %c0_47 = arith.constant 0 : index
    %111 = vector.load %arg5[%c5_45, %c0_46, %c0_47] : memref<9x14x8xbf16, #tpu.memory_space<vmem>>, vector<1x14x8xbf16>
    %112 = vector.shape_cast %111 : vector<1x14x8xbf16> to vector<14x8xbf16>
    %113 = arith.truncf %110 : vector<8x676xf32> to vector<8x676xbf16>
    %cst_48 = arith.constant dense<0.000000e+00> : vector<14x676xf32>
    %114 = tpu.matmul %112, %113, %cst_48 {dimension_numbers = #tpu.dot_dimension_numbers<[1], [0], [0], [1], [0, 0, 1, 1], [], []>} : vector<14x8xbf16>, vector<8x676xbf16>, vector<14x676xf32> -> vector<14x676xf32>
    %115 = arith.addf %109, %114 : vector<14x676xf32>
    %116 = vector.extract_strided_slice %80 {offsets = [0, 56], sizes = [8, 676], strides = [1, 1]} : vector<8x734xf32> to vector<8x676xf32>
    %c6_49 = arith.constant 6 : index
    %c0_50 = arith.constant 0 : index
    %c0_51 = arith.constant 0 : index
    %117 = vector.load %arg5[%c6_49, %c0_50, %c0_51] : memref<9x14x8xbf16, #tpu.memory_space<vmem>>, vector<1x14x8xbf16>
    %118 = vector.shape_cast %117 : vector<1x14x8xbf16> to vector<14x8xbf16>
    %119 = arith.truncf %116 : vector<8x676xf32> to vector<8x676xbf16>
    %cst_52 = arith.constant dense<0.000000e+00> : vector<14x676xf32>
    %120 = tpu.matmul %118, %119, %cst_52 {dimension_numbers = #tpu.dot_dimension_numbers<[1], [0], [0], [1], [0, 0, 1, 1], [], []>} : vector<14x8xbf16>, vector<8x676xbf16>, vector<14x676xf32> -> vector<14x676xf32>
    %121 = arith.addf %115, %120 : vector<14x676xf32>
    %122 = vector.extract_strided_slice %80 {offsets = [0, 57], sizes = [8, 676], strides = [1, 1]} : vector<8x734xf32> to vector<8x676xf32>
    %c7_53 = arith.constant 7 : index
    %c0_54 = arith.constant 0 : index
    %c0_55 = arith.constant 0 : index
    %123 = vector.load %arg5[%c7_53, %c0_54, %c0_55] : memref<9x14x8xbf16, #tpu.memory_space<vmem>>, vector<1x14x8xbf16>
    %124 = vector.shape_cast %123 : vector<1x14x8xbf16> to vector<14x8xbf16>
    %125 = arith.truncf %122 : vector<8x676xf32> to vector<8x676xbf16>
    %cst_56 = arith.constant dense<0.000000e+00> : vector<14x676xf32>
    %126 = tpu.matmul %124, %125, %cst_56 {dimension_numbers = #tpu.dot_dimension_numbers<[1], [0], [0], [1], [0, 0, 1, 1], [], []>} : vector<14x8xbf16>, vector<8x676xbf16>, vector<14x676xf32> -> vector<14x676xf32>
    %127 = arith.addf %121, %126 : vector<14x676xf32>
    %128 = vector.extract_strided_slice %80 {offsets = [0, 58], sizes = [8, 676], strides = [1, 1]} : vector<8x734xf32> to vector<8x676xf32>
    %c8_57 = arith.constant 8 : index
    %c0_58 = arith.constant 0 : index
    %c0_59 = arith.constant 0 : index
    %129 = vector.load %arg5[%c8_57, %c0_58, %c0_59] : memref<9x14x8xbf16, #tpu.memory_space<vmem>>, vector<1x14x8xbf16>
    %130 = vector.shape_cast %129 : vector<1x14x8xbf16> to vector<14x8xbf16>
    %131 = arith.truncf %128 : vector<8x676xf32> to vector<8x676xbf16>
    %cst_60 = arith.constant dense<0.000000e+00> : vector<14x676xf32>
    %132 = tpu.matmul %130, %131, %cst_60 {dimension_numbers = #tpu.dot_dimension_numbers<[1], [0], [0], [1], [0, 0, 1, 1], [], []>} : vector<14x8xbf16>, vector<8x676xbf16>, vector<14x676xf32> -> vector<14x676xf32>
    %133 = arith.addf %127, %132 : vector<14x676xf32>
    %cst_61 = arith.constant 0.000000e+00 : f32
    %134 = vector.broadcast %cst_61 : f32 to vector<14x676xf32>
    %135 = arith.maximumf %133, %134 : vector<14x676xf32>
    %c0_62 = arith.constant 0 : index
    %c0_63 = arith.constant 0 : index
    %136 = vector.load %arg6[%c0_62, %c0_63] : memref<14x1xf32, #tpu.memory_space<vmem>>, vector<14x1xf32>
    %137 = vector.broadcast %136 : vector<14x1xf32> to vector<14x676xf32>
    %138 = arith.mulf %135, %137 : vector<14x676xf32>
    %c0_64 = arith.constant 0 : index
    %c0_65 = arith.constant 0 : index
    %139 = vector.load %arg7[%c0_64, %c0_65] : memref<14x1xf32, #tpu.memory_space<vmem>>, vector<14x1xf32>
    %140 = vector.broadcast %139 : vector<14x1xf32> to vector<14x676xf32>
    %141 = arith.addf %138, %140 : vector<14x676xf32>
    %c0_66 = arith.constant 0 : index
    %c0_67 = arith.constant 0 : index
    %142 = vector.load %arg8[%c0_66, %c0_67] : memref<10x14xbf16, #tpu.memory_space<vmem>>, vector<10x14xbf16>
    %143 = arith.truncf %141 : vector<14x676xf32> to vector<14x676xbf16>
    %cst_68 = arith.constant dense<0.000000e+00> : vector<10x676xf32>
    %144 = tpu.matmul %142, %143, %cst_68 {dimension_numbers = #tpu.dot_dimension_numbers<[1], [0], [0], [1], [0, 0, 1, 1], [], []>} : vector<10x14xbf16>, vector<14x676xbf16>, vector<10x676xf32> -> vector<10x676xf32>
    %145 = vector.extract_strided_slice %144 {offsets = [0, 0], sizes = [10, 672], strides = [1, 1]} : vector<10x676xf32> to vector<10x672xf32>
    %146 = vector.extract_strided_slice %145 {offsets = [0, 0], sizes = [10, 644], strides = [1, 1]} : vector<10x672xf32> to vector<10x644xf32>
    %147 = vector.extract_strided_slice %145 {offsets = [0, 28], sizes = [10, 644], strides = [1, 1]} : vector<10x672xf32> to vector<10x644xf32>
    %148 = arith.maximumf %146, %147 : vector<10x644xf32>
    %149 = vector.extract_strided_slice %148 {offsets = [0, 0], sizes = [10, 643], strides = [1, 1]} : vector<10x644xf32> to vector<10x643xf32>
    %150 = vector.extract_strided_slice %148 {offsets = [0, 1], sizes = [10, 643], strides = [1, 1]} : vector<10x644xf32> to vector<10x643xf32>
    %151 = arith.maximumf %149, %150 : vector<10x643xf32>
    %c0_69 = arith.constant 0 : index
    %c0_70 = arith.constant 0 : index
    %152 = vector.load %arg18[%c0_69, %c0_70] : memref<643x152xf32, #tpu.memory_space<vmem>>, vector<643x152xf32>
    %cst_71 = arith.constant dense<0.000000e+00> : vector<10x152xf32>
    %153 = tpu.matmul %151, %152, %cst_71 {dimension_numbers = #tpu.dot_dimension_numbers<[1], [0], [0], [1], [0, 0, 1, 1], [], []>} : vector<10x643xf32>, vector<643x152xf32>, vector<10x152xf32> -> vector<10x152xf32>
    %154 = vector.extract_strided_slice %153 {offsets = [0, 0], sizes = [10, 126], strides = [1, 1]} : vector<10x152xf32> to vector<10x126xf32>
    %c0_72 = arith.constant 0 : index
    %c0_73 = arith.constant 0 : index
    %c0_74 = arith.constant 0 : index
    %155 = vector.load %arg9[%c0_72, %c0_73, %c0_74] : memref<9x14x10xbf16, #tpu.memory_space<vmem>>, vector<1x14x10xbf16>
    %156 = vector.shape_cast %155 : vector<1x14x10xbf16> to vector<14x10xbf16>
    %157 = arith.truncf %154 : vector<10x126xf32> to vector<10x126xbf16>
    %cst_75 = arith.constant dense<0.000000e+00> : vector<14x126xf32>
    %158 = tpu.matmul %156, %157, %cst_75 {dimension_numbers = #tpu.dot_dimension_numbers<[1], [0], [0], [1], [0, 0, 1, 1], [], []>} : vector<14x10xbf16>, vector<10x126xbf16>, vector<14x126xf32> -> vector<14x126xf32>
    %159 = vector.extract_strided_slice %153 {offsets = [0, 1], sizes = [10, 126], strides = [1, 1]} : vector<10x152xf32> to vector<10x126xf32>
    %c1_76 = arith.constant 1 : index
    %c0_77 = arith.constant 0 : index
    %c0_78 = arith.constant 0 : index
    %160 = vector.load %arg9[%c1_76, %c0_77, %c0_78] : memref<9x14x10xbf16, #tpu.memory_space<vmem>>, vector<1x14x10xbf16>
    %161 = vector.shape_cast %160 : vector<1x14x10xbf16> to vector<14x10xbf16>
    %162 = arith.truncf %159 : vector<10x126xf32> to vector<10x126xbf16>
    %cst_79 = arith.constant dense<0.000000e+00> : vector<14x126xf32>
    %163 = tpu.matmul %161, %162, %cst_79 {dimension_numbers = #tpu.dot_dimension_numbers<[1], [0], [0], [1], [0, 0, 1, 1], [], []>} : vector<14x10xbf16>, vector<10x126xbf16>, vector<14x126xf32> -> vector<14x126xf32>
    %164 = arith.addf %158, %163 : vector<14x126xf32>
    %165 = vector.extract_strided_slice %153 {offsets = [0, 2], sizes = [10, 126], strides = [1, 1]} : vector<10x152xf32> to vector<10x126xf32>
    %c2_80 = arith.constant 2 : index
    %c0_81 = arith.constant 0 : index
    %c0_82 = arith.constant 0 : index
    %166 = vector.load %arg9[%c2_80, %c0_81, %c0_82] : memref<9x14x10xbf16, #tpu.memory_space<vmem>>, vector<1x14x10xbf16>
    %167 = vector.shape_cast %166 : vector<1x14x10xbf16> to vector<14x10xbf16>
    %168 = arith.truncf %165 : vector<10x126xf32> to vector<10x126xbf16>
    %cst_83 = arith.constant dense<0.000000e+00> : vector<14x126xf32>
    %169 = tpu.matmul %167, %168, %cst_83 {dimension_numbers = #tpu.dot_dimension_numbers<[1], [0], [0], [1], [0, 0, 1, 1], [], []>} : vector<14x10xbf16>, vector<10x126xbf16>, vector<14x126xf32> -> vector<14x126xf32>
    %170 = arith.addf %164, %169 : vector<14x126xf32>
    %171 = vector.extract_strided_slice %153 {offsets = [0, 12], sizes = [10, 126], strides = [1, 1]} : vector<10x152xf32> to vector<10x126xf32>
    %c3_84 = arith.constant 3 : index
    %c0_85 = arith.constant 0 : index
    %c0_86 = arith.constant 0 : index
    %172 = vector.load %arg9[%c3_84, %c0_85, %c0_86] : memref<9x14x10xbf16, #tpu.memory_space<vmem>>, vector<1x14x10xbf16>
    %173 = vector.shape_cast %172 : vector<1x14x10xbf16> to vector<14x10xbf16>
    %174 = arith.truncf %171 : vector<10x126xf32> to vector<10x126xbf16>
    %cst_87 = arith.constant dense<0.000000e+00> : vector<14x126xf32>
    %175 = tpu.matmul %173, %174, %cst_87 {dimension_numbers = #tpu.dot_dimension_numbers<[1], [0], [0], [1], [0, 0, 1, 1], [], []>} : vector<14x10xbf16>, vector<10x126xbf16>, vector<14x126xf32> -> vector<14x126xf32>
    %176 = arith.addf %170, %175 : vector<14x126xf32>
    %177 = vector.extract_strided_slice %153 {offsets = [0, 13], sizes = [10, 126], strides = [1, 1]} : vector<10x152xf32> to vector<10x126xf32>
    %c4_88 = arith.constant 4 : index
    %c0_89 = arith.constant 0 : index
    %c0_90 = arith.constant 0 : index
    %178 = vector.load %arg9[%c4_88, %c0_89, %c0_90] : memref<9x14x10xbf16, #tpu.memory_space<vmem>>, vector<1x14x10xbf16>
    %179 = vector.shape_cast %178 : vector<1x14x10xbf16> to vector<14x10xbf16>
    %180 = arith.truncf %177 : vector<10x126xf32> to vector<10x126xbf16>
    %cst_91 = arith.constant dense<0.000000e+00> : vector<14x126xf32>
    %181 = tpu.matmul %179, %180, %cst_91 {dimension_numbers = #tpu.dot_dimension_numbers<[1], [0], [0], [1], [0, 0, 1, 1], [], []>} : vector<14x10xbf16>, vector<10x126xbf16>, vector<14x126xf32> -> vector<14x126xf32>
    %182 = arith.addf %176, %181 : vector<14x126xf32>
    %183 = vector.extract_strided_slice %153 {offsets = [0, 14], sizes = [10, 126], strides = [1, 1]} : vector<10x152xf32> to vector<10x126xf32>
    %c5_92 = arith.constant 5 : index
    %c0_93 = arith.constant 0 : index
    %c0_94 = arith.constant 0 : index
    %184 = vector.load %arg9[%c5_92, %c0_93, %c0_94] : memref<9x14x10xbf16, #tpu.memory_space<vmem>>, vector<1x14x10xbf16>
    %185 = vector.shape_cast %184 : vector<1x14x10xbf16> to vector<14x10xbf16>
    %186 = arith.truncf %183 : vector<10x126xf32> to vector<10x126xbf16>
    %cst_95 = arith.constant dense<0.000000e+00> : vector<14x126xf32>
    %187 = tpu.matmul %185, %186, %cst_95 {dimension_numbers = #tpu.dot_dimension_numbers<[1], [0], [0], [1], [0, 0, 1, 1], [], []>} : vector<14x10xbf16>, vector<10x126xbf16>, vector<14x126xf32> -> vector<14x126xf32>
    %188 = arith.addf %182, %187 : vector<14x126xf32>
    %189 = vector.extract_strided_slice %153 {offsets = [0, 24], sizes = [10, 126], strides = [1, 1]} : vector<10x152xf32> to vector<10x126xf32>
    %c6_96 = arith.constant 6 : index
    %c0_97 = arith.constant 0 : index
    %c0_98 = arith.constant 0 : index
    %190 = vector.load %arg9[%c6_96, %c0_97, %c0_98] : memref<9x14x10xbf16, #tpu.memory_space<vmem>>, vector<1x14x10xbf16>
    %191 = vector.shape_cast %190 : vector<1x14x10xbf16> to vector<14x10xbf16>
    %192 = arith.truncf %189 : vector<10x126xf32> to vector<10x126xbf16>
    %cst_99 = arith.constant dense<0.000000e+00> : vector<14x126xf32>
    %193 = tpu.matmul %191, %192, %cst_99 {dimension_numbers = #tpu.dot_dimension_numbers<[1], [0], [0], [1], [0, 0, 1, 1], [], []>} : vector<14x10xbf16>, vector<10x126xbf16>, vector<14x126xf32> -> vector<14x126xf32>
    %194 = arith.addf %188, %193 : vector<14x126xf32>
    %195 = vector.extract_strided_slice %153 {offsets = [0, 25], sizes = [10, 126], strides = [1, 1]} : vector<10x152xf32> to vector<10x126xf32>
    %c7_100 = arith.constant 7 : index
    %c0_101 = arith.constant 0 : index
    %c0_102 = arith.constant 0 : index
    %196 = vector.load %arg9[%c7_100, %c0_101, %c0_102] : memref<9x14x10xbf16, #tpu.memory_space<vmem>>, vector<1x14x10xbf16>
    %197 = vector.shape_cast %196 : vector<1x14x10xbf16> to vector<14x10xbf16>
    %198 = arith.truncf %195 : vector<10x126xf32> to vector<10x126xbf16>
    %cst_103 = arith.constant dense<0.000000e+00> : vector<14x126xf32>
    %199 = tpu.matmul %197, %198, %cst_103 {dimension_numbers = #tpu.dot_dimension_numbers<[1], [0], [0], [1], [0, 0, 1, 1], [], []>} : vector<14x10xbf16>, vector<10x126xbf16>, vector<14x126xf32> -> vector<14x126xf32>
    %200 = arith.addf %194, %199 : vector<14x126xf32>
    %201 = vector.extract_strided_slice %153 {offsets = [0, 26], sizes = [10, 126], strides = [1, 1]} : vector<10x152xf32> to vector<10x126xf32>
    %c8_104 = arith.constant 8 : index
    %c0_105 = arith.constant 0 : index
    %c0_106 = arith.constant 0 : index
    %202 = vector.load %arg9[%c8_104, %c0_105, %c0_106] : memref<9x14x10xbf16, #tpu.memory_space<vmem>>, vector<1x14x10xbf16>
    %203 = vector.shape_cast %202 : vector<1x14x10xbf16> to vector<14x10xbf16>
    %204 = arith.truncf %201 : vector<10x126xf32> to vector<10x126xbf16>
    %cst_107 = arith.constant dense<0.000000e+00> : vector<14x126xf32>
    %205 = tpu.matmul %203, %204, %cst_107 {dimension_numbers = #tpu.dot_dimension_numbers<[1], [0], [0], [1], [0, 0, 1, 1], [], []>} : vector<14x10xbf16>, vector<10x126xbf16>, vector<14x126xf32> -> vector<14x126xf32>
    %206 = arith.addf %200, %205 : vector<14x126xf32>
    %cst_108 = arith.constant 0.000000e+00 : f32
    %207 = vector.broadcast %cst_108 : f32 to vector<14x126xf32>
    %208 = arith.maximumf %206, %207 : vector<14x126xf32>
    %c0_109 = arith.constant 0 : index
    %c0_110 = arith.constant 0 : index
    %209 = vector.load %arg10[%c0_109, %c0_110] : memref<14x1xf32, #tpu.memory_space<vmem>>, vector<14x1xf32>
    %210 = vector.broadcast %209 : vector<14x1xf32> to vector<14x126xf32>
    %211 = arith.mulf %208, %210 : vector<14x126xf32>
    %c0_111 = arith.constant 0 : index
    %c0_112 = arith.constant 0 : index
    %212 = vector.load %arg11[%c0_111, %c0_112] : memref<14x1xf32, #tpu.memory_space<vmem>>, vector<14x1xf32>
    %213 = vector.broadcast %212 : vector<14x1xf32> to vector<14x126xf32>
    %214 = arith.addf %211, %213 : vector<14x126xf32>
    %215 = vector.extract_strided_slice %214 {offsets = [0, 0], sizes = [14, 100], strides = [1, 1]} : vector<14x126xf32> to vector<14x100xf32>
    %c0_113 = arith.constant 0 : index
    %c0_114 = arith.constant 0 : index
    %c0_115 = arith.constant 0 : index
    %216 = vector.load %arg12[%c0_113, %c0_114, %c0_115] : memref<9x16x14xbf16, #tpu.memory_space<vmem>>, vector<1x16x14xbf16>
    %217 = vector.shape_cast %216 : vector<1x16x14xbf16> to vector<16x14xbf16>
    %218 = arith.truncf %215 : vector<14x100xf32> to vector<14x100xbf16>
    %cst_116 = arith.constant dense<0.000000e+00> : vector<16x100xf32>
    %219 = tpu.matmul %217, %218, %cst_116 {dimension_numbers = #tpu.dot_dimension_numbers<[1], [0], [0], [1], [0, 0, 1, 1], [], []>} : vector<16x14xbf16>, vector<14x100xbf16>, vector<16x100xf32> -> vector<16x100xf32>
    %220 = vector.extract_strided_slice %214 {offsets = [0, 1], sizes = [14, 100], strides = [1, 1]} : vector<14x126xf32> to vector<14x100xf32>
    %c1_117 = arith.constant 1 : index
    %c0_118 = arith.constant 0 : index
    %c0_119 = arith.constant 0 : index
    %221 = vector.load %arg12[%c1_117, %c0_118, %c0_119] : memref<9x16x14xbf16, #tpu.memory_space<vmem>>, vector<1x16x14xbf16>
    %222 = vector.shape_cast %221 : vector<1x16x14xbf16> to vector<16x14xbf16>
    %223 = arith.truncf %220 : vector<14x100xf32> to vector<14x100xbf16>
    %cst_120 = arith.constant dense<0.000000e+00> : vector<16x100xf32>
    %224 = tpu.matmul %222, %223, %cst_120 {dimension_numbers = #tpu.dot_dimension_numbers<[1], [0], [0], [1], [0, 0, 1, 1], [], []>} : vector<16x14xbf16>, vector<14x100xbf16>, vector<16x100xf32> -> vector<16x100xf32>
    %225 = arith.addf %219, %224 : vector<16x100xf32>
    %226 = vector.extract_strided_slice %214 {offsets = [0, 2], sizes = [14, 100], strides = [1, 1]} : vector<14x126xf32> to vector<14x100xf32>
    %c2_121 = arith.constant 2 : index
    %c0_122 = arith.constant 0 : index
    %c0_123 = arith.constant 0 : index
    %227 = vector.load %arg12[%c2_121, %c0_122, %c0_123] : memref<9x16x14xbf16, #tpu.memory_space<vmem>>, vector<1x16x14xbf16>
    %228 = vector.shape_cast %227 : vector<1x16x14xbf16> to vector<16x14xbf16>
    %229 = arith.truncf %226 : vector<14x100xf32> to vector<14x100xbf16>
    %cst_124 = arith.constant dense<0.000000e+00> : vector<16x100xf32>
    %230 = tpu.matmul %228, %229, %cst_124 {dimension_numbers = #tpu.dot_dimension_numbers<[1], [0], [0], [1], [0, 0, 1, 1], [], []>} : vector<16x14xbf16>, vector<14x100xbf16>, vector<16x100xf32> -> vector<16x100xf32>
    %231 = arith.addf %225, %230 : vector<16x100xf32>
    %232 = vector.extract_strided_slice %214 {offsets = [0, 12], sizes = [14, 100], strides = [1, 1]} : vector<14x126xf32> to vector<14x100xf32>
    %c3_125 = arith.constant 3 : index
    %c0_126 = arith.constant 0 : index
    %c0_127 = arith.constant 0 : index
    %233 = vector.load %arg12[%c3_125, %c0_126, %c0_127] : memref<9x16x14xbf16, #tpu.memory_space<vmem>>, vector<1x16x14xbf16>
    %234 = vector.shape_cast %233 : vector<1x16x14xbf16> to vector<16x14xbf16>
    %235 = arith.truncf %232 : vector<14x100xf32> to vector<14x100xbf16>
    %cst_128 = arith.constant dense<0.000000e+00> : vector<16x100xf32>
    %236 = tpu.matmul %234, %235, %cst_128 {dimension_numbers = #tpu.dot_dimension_numbers<[1], [0], [0], [1], [0, 0, 1, 1], [], []>} : vector<16x14xbf16>, vector<14x100xbf16>, vector<16x100xf32> -> vector<16x100xf32>
    %237 = arith.addf %231, %236 : vector<16x100xf32>
    %238 = vector.extract_strided_slice %214 {offsets = [0, 13], sizes = [14, 100], strides = [1, 1]} : vector<14x126xf32> to vector<14x100xf32>
    %c4_129 = arith.constant 4 : index
    %c0_130 = arith.constant 0 : index
    %c0_131 = arith.constant 0 : index
    %239 = vector.load %arg12[%c4_129, %c0_130, %c0_131] : memref<9x16x14xbf16, #tpu.memory_space<vmem>>, vector<1x16x14xbf16>
    %240 = vector.shape_cast %239 : vector<1x16x14xbf16> to vector<16x14xbf16>
    %241 = arith.truncf %238 : vector<14x100xf32> to vector<14x100xbf16>
    %cst_132 = arith.constant dense<0.000000e+00> : vector<16x100xf32>
    %242 = tpu.matmul %240, %241, %cst_132 {dimension_numbers = #tpu.dot_dimension_numbers<[1], [0], [0], [1], [0, 0, 1, 1], [], []>} : vector<16x14xbf16>, vector<14x100xbf16>, vector<16x100xf32> -> vector<16x100xf32>
    %243 = arith.addf %237, %242 : vector<16x100xf32>
    %244 = vector.extract_strided_slice %214 {offsets = [0, 14], sizes = [14, 100], strides = [1, 1]} : vector<14x126xf32> to vector<14x100xf32>
    %c5_133 = arith.constant 5 : index
    %c0_134 = arith.constant 0 : index
    %c0_135 = arith.constant 0 : index
    %245 = vector.load %arg12[%c5_133, %c0_134, %c0_135] : memref<9x16x14xbf16, #tpu.memory_space<vmem>>, vector<1x16x14xbf16>
    %246 = vector.shape_cast %245 : vector<1x16x14xbf16> to vector<16x14xbf16>
    %247 = arith.truncf %244 : vector<14x100xf32> to vector<14x100xbf16>
    %cst_136 = arith.constant dense<0.000000e+00> : vector<16x100xf32>
    %248 = tpu.matmul %246, %247, %cst_136 {dimension_numbers = #tpu.dot_dimension_numbers<[1], [0], [0], [1], [0, 0, 1, 1], [], []>} : vector<16x14xbf16>, vector<14x100xbf16>, vector<16x100xf32> -> vector<16x100xf32>
    %249 = arith.addf %243, %248 : vector<16x100xf32>
    %250 = vector.extract_strided_slice %214 {offsets = [0, 24], sizes = [14, 100], strides = [1, 1]} : vector<14x126xf32> to vector<14x100xf32>
    %c6_137 = arith.constant 6 : index
    %c0_138 = arith.constant 0 : index
    %c0_139 = arith.constant 0 : index
    %251 = vector.load %arg12[%c6_137, %c0_138, %c0_139] : memref<9x16x14xbf16, #tpu.memory_space<vmem>>, vector<1x16x14xbf16>
    %252 = vector.shape_cast %251 : vector<1x16x14xbf16> to vector<16x14xbf16>
    %253 = arith.truncf %250 : vector<14x100xf32> to vector<14x100xbf16>
    %cst_140 = arith.constant dense<0.000000e+00> : vector<16x100xf32>
    %254 = tpu.matmul %252, %253, %cst_140 {dimension_numbers = #tpu.dot_dimension_numbers<[1], [0], [0], [1], [0, 0, 1, 1], [], []>} : vector<16x14xbf16>, vector<14x100xbf16>, vector<16x100xf32> -> vector<16x100xf32>
    %255 = arith.addf %249, %254 : vector<16x100xf32>
    %256 = vector.extract_strided_slice %214 {offsets = [0, 25], sizes = [14, 100], strides = [1, 1]} : vector<14x126xf32> to vector<14x100xf32>
    %c7_141 = arith.constant 7 : index
    %c0_142 = arith.constant 0 : index
    %c0_143 = arith.constant 0 : index
    %257 = vector.load %arg12[%c7_141, %c0_142, %c0_143] : memref<9x16x14xbf16, #tpu.memory_space<vmem>>, vector<1x16x14xbf16>
    %258 = vector.shape_cast %257 : vector<1x16x14xbf16> to vector<16x14xbf16>
    %259 = arith.truncf %256 : vector<14x100xf32> to vector<14x100xbf16>
    %cst_144 = arith.constant dense<0.000000e+00> : vector<16x100xf32>
    %260 = tpu.matmul %258, %259, %cst_144 {dimension_numbers = #tpu.dot_dimension_numbers<[1], [0], [0], [1], [0, 0, 1, 1], [], []>} : vector<16x14xbf16>, vector<14x100xbf16>, vector<16x100xf32> -> vector<16x100xf32>
    %261 = arith.addf %255, %260 : vector<16x100xf32>
    %262 = vector.extract_strided_slice %214 {offsets = [0, 26], sizes = [14, 100], strides = [1, 1]} : vector<14x126xf32> to vector<14x100xf32>
    %c8_145 = arith.constant 8 : index
    %c0_146 = arith.constant 0 : index
    %c0_147 = arith.constant 0 : index
    %263 = vector.load %arg12[%c8_145, %c0_146, %c0_147] : memref<9x16x14xbf16, #tpu.memory_space<vmem>>, vector<1x16x14xbf16>
    %264 = vector.shape_cast %263 : vector<1x16x14xbf16> to vector<16x14xbf16>
    %265 = arith.truncf %262 : vector<14x100xf32> to vector<14x100xbf16>
    %cst_148 = arith.constant dense<0.000000e+00> : vector<16x100xf32>
    %266 = tpu.matmul %264, %265, %cst_148 {dimension_numbers = #tpu.dot_dimension_numbers<[1], [0], [0], [1], [0, 0, 1, 1], [], []>} : vector<16x14xbf16>, vector<14x100xbf16>, vector<16x100xf32> -> vector<16x100xf32>
    %267 = arith.addf %261, %266 : vector<16x100xf32>
    %cst_149 = arith.constant 0.000000e+00 : f32
    %268 = vector.broadcast %cst_149 : f32 to vector<16x100xf32>
    %269 = arith.maximumf %267, %268 : vector<16x100xf32>
    %c0_150 = arith.constant 0 : index
    %c0_151 = arith.constant 0 : index
    %270 = vector.load %arg13[%c0_150, %c0_151] : memref<16x1xf32, #tpu.memory_space<vmem>>, vector<16x1xf32>
    %271 = vector.broadcast %270 : vector<16x1xf32> to vector<16x100xf32>
    %272 = arith.mulf %269, %271 : vector<16x100xf32>
    %c0_152 = arith.constant 0 : index
    %c0_153 = arith.constant 0 : index
    %273 = vector.load %arg14[%c0_152, %c0_153] : memref<16x1xf32, #tpu.memory_space<vmem>>, vector<16x1xf32>
    %274 = vector.broadcast %273 : vector<16x1xf32> to vector<16x100xf32>
    %275 = arith.addf %272, %274 : vector<16x100xf32>
    %276 = vector.extract_strided_slice %275 {offsets = [0, 0], sizes = [16, 74], strides = [1, 1]} : vector<16x100xf32> to vector<16x74xf32>
    %c0_154 = arith.constant 0 : index
    %c0_155 = arith.constant 0 : index
    %c0_156 = arith.constant 0 : index
    %277 = vector.load %arg15[%c0_154, %c0_155, %c0_156] : memref<9x20x16xbf16, #tpu.memory_space<vmem>>, vector<1x20x16xbf16>
    %278 = vector.shape_cast %277 : vector<1x20x16xbf16> to vector<20x16xbf16>
    %279 = arith.truncf %276 : vector<16x74xf32> to vector<16x74xbf16>
    %cst_157 = arith.constant dense<0.000000e+00> : vector<20x74xf32>
    %280 = tpu.matmul %278, %279, %cst_157 {dimension_numbers = #tpu.dot_dimension_numbers<[1], [0], [0], [1], [0, 0, 1, 1], [], []>} : vector<20x16xbf16>, vector<16x74xbf16>, vector<20x74xf32> -> vector<20x74xf32>
    %281 = vector.extract_strided_slice %275 {offsets = [0, 1], sizes = [16, 74], strides = [1, 1]} : vector<16x100xf32> to vector<16x74xf32>
    %c1_158 = arith.constant 1 : index
    %c0_159 = arith.constant 0 : index
    %c0_160 = arith.constant 0 : index
    %282 = vector.load %arg15[%c1_158, %c0_159, %c0_160] : memref<9x20x16xbf16, #tpu.memory_space<vmem>>, vector<1x20x16xbf16>
    %283 = vector.shape_cast %282 : vector<1x20x16xbf16> to vector<20x16xbf16>
    %284 = arith.truncf %281 : vector<16x74xf32> to vector<16x74xbf16>
    %cst_161 = arith.constant dense<0.000000e+00> : vector<20x74xf32>
    %285 = tpu.matmul %283, %284, %cst_161 {dimension_numbers = #tpu.dot_dimension_numbers<[1], [0], [0], [1], [0, 0, 1, 1], [], []>} : vector<20x16xbf16>, vector<16x74xbf16>, vector<20x74xf32> -> vector<20x74xf32>
    %286 = arith.addf %280, %285 : vector<20x74xf32>
    %287 = vector.extract_strided_slice %275 {offsets = [0, 2], sizes = [16, 74], strides = [1, 1]} : vector<16x100xf32> to vector<16x74xf32>
    %c2_162 = arith.constant 2 : index
    %c0_163 = arith.constant 0 : index
    %c0_164 = arith.constant 0 : index
    %288 = vector.load %arg15[%c2_162, %c0_163, %c0_164] : memref<9x20x16xbf16, #tpu.memory_space<vmem>>, vector<1x20x16xbf16>
    %289 = vector.shape_cast %288 : vector<1x20x16xbf16> to vector<20x16xbf16>
    %290 = arith.truncf %287 : vector<16x74xf32> to vector<16x74xbf16>
    %cst_165 = arith.constant dense<0.000000e+00> : vector<20x74xf32>
    %291 = tpu.matmul %289, %290, %cst_165 {dimension_numbers = #tpu.dot_dimension_numbers<[1], [0], [0], [1], [0, 0, 1, 1], [], []>} : vector<20x16xbf16>, vector<16x74xbf16>, vector<20x74xf32> -> vector<20x74xf32>
    %292 = arith.addf %286, %291 : vector<20x74xf32>
    %293 = vector.extract_strided_slice %275 {offsets = [0, 12], sizes = [16, 74], strides = [1, 1]} : vector<16x100xf32> to vector<16x74xf32>
    %c3_166 = arith.constant 3 : index
    %c0_167 = arith.constant 0 : index
    %c0_168 = arith.constant 0 : index
    %294 = vector.load %arg15[%c3_166, %c0_167, %c0_168] : memref<9x20x16xbf16, #tpu.memory_space<vmem>>, vector<1x20x16xbf16>
    %295 = vector.shape_cast %294 : vector<1x20x16xbf16> to vector<20x16xbf16>
    %296 = arith.truncf %293 : vector<16x74xf32> to vector<16x74xbf16>
    %cst_169 = arith.constant dense<0.000000e+00> : vector<20x74xf32>
    %297 = tpu.matmul %295, %296, %cst_169 {dimension_numbers = #tpu.dot_dimension_numbers<[1], [0], [0], [1], [0, 0, 1, 1], [], []>} : vector<20x16xbf16>, vector<16x74xbf16>, vector<20x74xf32> -> vector<20x74xf32>
    %298 = arith.addf %292, %297 : vector<20x74xf32>
    %299 = vector.extract_strided_slice %275 {offsets = [0, 13], sizes = [16, 74], strides = [1, 1]} : vector<16x100xf32> to vector<16x74xf32>
    %c4_170 = arith.constant 4 : index
    %c0_171 = arith.constant 0 : index
    %c0_172 = arith.constant 0 : index
    %300 = vector.load %arg15[%c4_170, %c0_171, %c0_172] : memref<9x20x16xbf16, #tpu.memory_space<vmem>>, vector<1x20x16xbf16>
    %301 = vector.shape_cast %300 : vector<1x20x16xbf16> to vector<20x16xbf16>
    %302 = arith.truncf %299 : vector<16x74xf32> to vector<16x74xbf16>
    %cst_173 = arith.constant dense<0.000000e+00> : vector<20x74xf32>
    %303 = tpu.matmul %301, %302, %cst_173 {dimension_numbers = #tpu.dot_dimension_numbers<[1], [0], [0], [1], [0, 0, 1, 1], [], []>} : vector<20x16xbf16>, vector<16x74xbf16>, vector<20x74xf32> -> vector<20x74xf32>
    %304 = arith.addf %298, %303 : vector<20x74xf32>
    %305 = vector.extract_strided_slice %275 {offsets = [0, 14], sizes = [16, 74], strides = [1, 1]} : vector<16x100xf32> to vector<16x74xf32>
    %c5_174 = arith.constant 5 : index
    %c0_175 = arith.constant 0 : index
    %c0_176 = arith.constant 0 : index
    %306 = vector.load %arg15[%c5_174, %c0_175, %c0_176] : memref<9x20x16xbf16, #tpu.memory_space<vmem>>, vector<1x20x16xbf16>
    %307 = vector.shape_cast %306 : vector<1x20x16xbf16> to vector<20x16xbf16>
    %308 = arith.truncf %305 : vector<16x74xf32> to vector<16x74xbf16>
    %cst_177 = arith.constant dense<0.000000e+00> : vector<20x74xf32>
    %309 = tpu.matmul %307, %308, %cst_177 {dimension_numbers = #tpu.dot_dimension_numbers<[1], [0], [0], [1], [0, 0, 1, 1], [], []>} : vector<20x16xbf16>, vector<16x74xbf16>, vector<20x74xf32> -> vector<20x74xf32>
    %310 = arith.addf %304, %309 : vector<20x74xf32>
    %311 = vector.extract_strided_slice %275 {offsets = [0, 24], sizes = [16, 74], strides = [1, 1]} : vector<16x100xf32> to vector<16x74xf32>
    %c6_178 = arith.constant 6 : index
    %c0_179 = arith.constant 0 : index
    %c0_180 = arith.constant 0 : index
    %312 = vector.load %arg15[%c6_178, %c0_179, %c0_180] : memref<9x20x16xbf16, #tpu.memory_space<vmem>>, vector<1x20x16xbf16>
    %313 = vector.shape_cast %312 : vector<1x20x16xbf16> to vector<20x16xbf16>
    %314 = arith.truncf %311 : vector<16x74xf32> to vector<16x74xbf16>
    %cst_181 = arith.constant dense<0.000000e+00> : vector<20x74xf32>
    %315 = tpu.matmul %313, %314, %cst_181 {dimension_numbers = #tpu.dot_dimension_numbers<[1], [0], [0], [1], [0, 0, 1, 1], [], []>} : vector<20x16xbf16>, vector<16x74xbf16>, vector<20x74xf32> -> vector<20x74xf32>
    %316 = arith.addf %310, %315 : vector<20x74xf32>
    %317 = vector.extract_strided_slice %275 {offsets = [0, 25], sizes = [16, 74], strides = [1, 1]} : vector<16x100xf32> to vector<16x74xf32>
    %c7_182 = arith.constant 7 : index
    %c0_183 = arith.constant 0 : index
    %c0_184 = arith.constant 0 : index
    %318 = vector.load %arg15[%c7_182, %c0_183, %c0_184] : memref<9x20x16xbf16, #tpu.memory_space<vmem>>, vector<1x20x16xbf16>
    %319 = vector.shape_cast %318 : vector<1x20x16xbf16> to vector<20x16xbf16>
    %320 = arith.truncf %317 : vector<16x74xf32> to vector<16x74xbf16>
    %cst_185 = arith.constant dense<0.000000e+00> : vector<20x74xf32>
    %321 = tpu.matmul %319, %320, %cst_185 {dimension_numbers = #tpu.dot_dimension_numbers<[1], [0], [0], [1], [0, 0, 1, 1], [], []>} : vector<20x16xbf16>, vector<16x74xbf16>, vector<20x74xf32> -> vector<20x74xf32>
    %322 = arith.addf %316, %321 : vector<20x74xf32>
    %323 = vector.extract_strided_slice %275 {offsets = [0, 26], sizes = [16, 74], strides = [1, 1]} : vector<16x100xf32> to vector<16x74xf32>
    %c8_186 = arith.constant 8 : index
    %c0_187 = arith.constant 0 : index
    %c0_188 = arith.constant 0 : index
    %324 = vector.load %arg15[%c8_186, %c0_187, %c0_188] : memref<9x20x16xbf16, #tpu.memory_space<vmem>>, vector<1x20x16xbf16>
    %325 = vector.shape_cast %324 : vector<1x20x16xbf16> to vector<20x16xbf16>
    %326 = arith.truncf %323 : vector<16x74xf32> to vector<16x74xbf16>
    %cst_189 = arith.constant dense<0.000000e+00> : vector<20x74xf32>
    %327 = tpu.matmul %325, %326, %cst_189 {dimension_numbers = #tpu.dot_dimension_numbers<[1], [0], [0], [1], [0, 0, 1, 1], [], []>} : vector<20x16xbf16>, vector<16x74xbf16>, vector<20x74xf32> -> vector<20x74xf32>
    %328 = arith.addf %322, %327 : vector<20x74xf32>
    %cst_190 = arith.constant 0.000000e+00 : f32
    %329 = vector.broadcast %cst_190 : f32 to vector<20x74xf32>
    %330 = arith.maximumf %328, %329 : vector<20x74xf32>
    %c0_191 = arith.constant 0 : index
    %c0_192 = arith.constant 0 : index
    %331 = vector.load %arg16[%c0_191, %c0_192] : memref<20x1xf32, #tpu.memory_space<vmem>>, vector<20x1xf32>
    %332 = vector.broadcast %331 : vector<20x1xf32> to vector<20x74xf32>
    %333 = arith.mulf %330, %332 : vector<20x74xf32>
    %c0_193 = arith.constant 0 : index
    %c0_194 = arith.constant 0 : index
    %334 = vector.load %arg17[%c0_193, %c0_194] : memref<20x1xf32, #tpu.memory_space<vmem>>, vector<20x1xf32>
    %335 = vector.broadcast %334 : vector<20x1xf32> to vector<20x74xf32>
    %336 = arith.addf %333, %335 : vector<20x74xf32>
    %337 = vector.extract_strided_slice %336 {offsets = [0, 0], sizes = [20, 72], strides = [1, 1]} : vector<20x74xf32> to vector<20x72xf32>
    %c0_195 = arith.constant 0 : index
    %c0_196 = arith.constant 0 : index
    %338 = vector.load %arg19[%c0_195, %c0_196] : memref<72x1xf32, #tpu.memory_space<vmem>>, vector<72x1xf32>
    %cst_197 = arith.constant dense<0.000000e+00> : vector<20x1xf32>
    %339 = tpu.matmul %337, %338, %cst_197 {dimension_numbers = #tpu.dot_dimension_numbers<[1], [0], [0], [1], [0, 0, 1, 1], [], []>} : vector<20x72xf32>, vector<72x1xf32>, vector<20x1xf32> -> vector<20x1xf32>
    %c0_198 = arith.constant 0 : index
    %c0_199 = arith.constant 0 : index
    %340 = vector.load %arg20[%c0_198, %c0_199] : memref<16x20xf32, #tpu.memory_space<vmem>>, vector<16x20xf32>
    %cst_200 = arith.constant dense<0.000000e+00> : vector<16x1xf32>
    %341 = tpu.matmul %340, %339, %cst_200 {dimension_numbers = #tpu.dot_dimension_numbers<[1], [0], [0], [1], [0, 0, 1, 1], [], []>} : vector<16x20xf32>, vector<20x1xf32>, vector<16x1xf32> -> vector<16x1xf32>
    %c0_201 = arith.constant 0 : index
    %c0_202 = arith.constant 0 : index
    %342 = vector.load %arg21[%c0_201, %c0_202] : memref<10x16xf32, #tpu.memory_space<vmem>>, vector<10x16xf32>
    %cst_203 = arith.constant dense<0.000000e+00> : vector<10x1xf32>
    %343 = tpu.matmul %342, %341, %cst_203 {dimension_numbers = #tpu.dot_dimension_numbers<[1], [0], [0], [1], [0, 0, 1, 1], [], []>} : vector<10x16xf32>, vector<16x1xf32>, vector<10x1xf32> -> vector<10x1xf32>
    %cst_204 = arith.constant dense<0xFF800000> : vector<1xf32>
    %344 = vector.multi_reduction <maximumf>, %343, %cst_204 [0] : vector<10x1xf32> to vector<1xf32>
    %345 = vector.shape_cast %344 : vector<1xf32> to vector<1x1xf32>
    %346 = vector.broadcast %345 : vector<1x1xf32> to vector<10x1xf32>
    %347 = arith.subf %343, %346 : vector<10x1xf32>
    %348 = math.exp %347 : vector<10x1xf32>
    %cst_205 = arith.constant dense<0.000000e+00> : vector<1xf32>
    %349 = vector.multi_reduction <add>, %348, %cst_205 [0] : vector<10x1xf32> to vector<1xf32>
    %350 = vector.shape_cast %349 : vector<1xf32> to vector<1x1xf32>
    %351 = math.log %350 : vector<1x1xf32>
    %352 = arith.addf %351, %345 : vector<1x1xf32>
    %353 = vector.broadcast %352 : vector<1x1xf32> to vector<10x1xf32>
    %354 = arith.subf %343, %353 : vector<10x1xf32>
    %c0_206 = arith.constant 0 : index
    %c0_207 = arith.constant 0 : index
    %c0_208 = arith.constant 0 : index
    %355 = vector.load %arg22[%c0_206, %c0_207, %c0_208] : memref<1x10x1xf32, #tpu.memory_space<vmem>>, vector<1x10x1xf32>
    %356 = vector.shape_cast %355 : vector<1x10x1xf32> to vector<10x1xf32>
    %357 = vector.shape_cast %354 : vector<10x1xf32> to vector<1x10x1xf32>
    tpu.vector_store %arg22[%c0_206, %c0_207, %c0_208], %357 {strides = array<i32>} : memref<1x10x1xf32, #tpu.memory_space<vmem>>, vector<1x10x1xf32>,
    return
  }
  func.func @transform_0(%arg0: i32) -> (i32, i32, i32) {
    %c0_i32 = arith.constant 0 : i32
    %c0_i32_0 = arith.constant 0 : i32
    %c0_i32_1 = arith.constant 0 : i32
    return %arg0, %c0_i32, %c0_i32_0 : i32, i32, i32
  }
  func.func @transform_1(%arg0: i32) -> (i32, i32, i32) {
    %c0_i32 = arith.constant 0 : i32
    %c0_i32_0 = arith.constant 0 : i32
    %c0_i32_1 = arith.constant 0 : i32
    %c0_i32_2 = arith.constant 0 : i32
    return %c0_i32, %c0_i32_0, %c0_i32_1 : i32, i32, i32
  }
  func.func @transform_2(%arg0: i32) -> (i32, i32) {
    %c0_i32 = arith.constant 0 : i32
    %c0_i32_0 = arith.constant 0 : i32
    %c0_i32_1 = arith.constant 0 : i32
    return %c0_i32, %c0_i32_0 : i32, i32
  }
  func.func @transform_3(%arg0: i32) -> (i32, i32) {
    %c0_i32 = arith.constant 0 : i32
    %c0_i32_0 = arith.constant 0 : i32
    %c0_i32_1 = arith.constant 0 : i32
    return %c0_i32, %c0_i32_0 : i32, i32
  }
  func.func @transform_4(%arg0: i32) -> (i32, i32, i32) {
    %c0_i32 = arith.constant 0 : i32
    %c0_i32_0 = arith.constant 0 : i32
    %c0_i32_1 = arith.constant 0 : i32
    %c0_i32_2 = arith.constant 0 : i32
    return %c0_i32, %c0_i32_0, %c0_i32_1 : i32, i32, i32
  }
  func.func @transform_5(%arg0: i32) -> (i32, i32) {
    %c0_i32 = arith.constant 0 : i32
    %c0_i32_0 = arith.constant 0 : i32
    %c0_i32_1 = arith.constant 0 : i32
    return %c0_i32, %c0_i32_0 : i32, i32
  }
  func.func @transform_6(%arg0: i32) -> (i32, i32) {
    %c0_i32 = arith.constant 0 : i32
    %c0_i32_0 = arith.constant 0 : i32
    %c0_i32_1 = arith.constant 0 : i32
    return %c0_i32, %c0_i32_0 : i32, i32
  }
  func.func @transform_7(%arg0: i32) -> (i32, i32) {
    %c0_i32 = arith.constant 0 : i32
    %c0_i32_0 = arith.constant 0 : i32
    %c0_i32_1 = arith.constant 0 : i32
    return %c0_i32, %c0_i32_0 : i32, i32
  }
  func.func @transform_8(%arg0: i32) -> (i32, i32, i32) {
    %c0_i32 = arith.constant 0 : i32
    %c0_i32_0 = arith.constant 0 : i32
    %c0_i32_1 = arith.constant 0 : i32
    %c0_i32_2 = arith.constant 0 : i32
    return %c0_i32, %c0_i32_0, %c0_i32_1 : i32, i32, i32
  }
  func.func @transform_9(%arg0: i32) -> (i32, i32) {
    %c0_i32 = arith.constant 0 : i32
    %c0_i32_0 = arith.constant 0 : i32
    %c0_i32_1 = arith.constant 0 : i32
    return %c0_i32, %c0_i32_0 : i32, i32
  }
  func.func @transform_10(%arg0: i32) -> (i32, i32) {
    %c0_i32 = arith.constant 0 : i32
    %c0_i32_0 = arith.constant 0 : i32
    %c0_i32_1 = arith.constant 0 : i32
    return %c0_i32, %c0_i32_0 : i32, i32
  }
  func.func @transform_11(%arg0: i32) -> (i32, i32, i32) {
    %c0_i32 = arith.constant 0 : i32
    %c0_i32_0 = arith.constant 0 : i32
    %c0_i32_1 = arith.constant 0 : i32
    %c0_i32_2 = arith.constant 0 : i32
    return %c0_i32, %c0_i32_0, %c0_i32_1 : i32, i32, i32
  }
  func.func @transform_12(%arg0: i32) -> (i32, i32) {
    %c0_i32 = arith.constant 0 : i32
    %c0_i32_0 = arith.constant 0 : i32
    %c0_i32_1 = arith.constant 0 : i32
    return %c0_i32, %c0_i32_0 : i32, i32
  }
  func.func @transform_13(%arg0: i32) -> (i32, i32) {
    %c0_i32 = arith.constant 0 : i32
    %c0_i32_0 = arith.constant 0 : i32
    %c0_i32_1 = arith.constant 0 : i32
    return %c0_i32, %c0_i32_0 : i32, i32
  }
  func.func @transform_14(%arg0: i32) -> (i32, i32, i32) {
    %c0_i32 = arith.constant 0 : i32
    %c0_i32_0 = arith.constant 0 : i32
    %c0_i32_1 = arith.constant 0 : i32
    %c0_i32_2 = arith.constant 0 : i32
    return %c0_i32, %c0_i32_0, %c0_i32_1 : i32, i32, i32
  }
  func.func @transform_15(%arg0: i32) -> (i32, i32) {
    %c0_i32 = arith.constant 0 : i32
    %c0_i32_0 = arith.constant 0 : i32
    %c0_i32_1 = arith.constant 0 : i32
    return %c0_i32, %c0_i32_0 : i32, i32
  }
  func.func @transform_16(%arg0: i32) -> (i32, i32) {
    %c0_i32 = arith.constant 0 : i32
    %c0_i32_0 = arith.constant 0 : i32
    %c0_i32_1 = arith.constant 0 : i32
    return %c0_i32, %c0_i32_0 : i32, i32
  }
  func.func @transform_17(%arg0: i32) -> (i32, i32) {
    %c0_i32 = arith.constant 0 : i32
    %c0_i32_0 = arith.constant 0 : i32
    %c0_i32_1 = arith.constant 0 : i32
    return %c0_i32, %c0_i32_0 : i32, i32
  }
  func.func @transform_18(%arg0: i32) -> (i32, i32) {
    %c0_i32 = arith.constant 0 : i32
    %c0_i32_0 = arith.constant 0 : i32
    %c0_i32_1 = arith.constant 0 : i32
    return %c0_i32, %c0_i32_0 : i32, i32
  }
  func.func @transform_19(%arg0: i32) -> (i32, i32) {
    %c0_i32 = arith.constant 0 : i32
    %c0_i32_0 = arith.constant 0 : i32
    %c0_i32_1 = arith.constant 0 : i32
    return %c0_i32, %c0_i32_0 : i32, i32
  }
  func.func @transform_20(%arg0: i32) -> (i32, i32) {
    %c0_i32 = arith.constant 0 : i32
    %c0_i32_0 = arith.constant 0 : i32
    %c0_i32_1 = arith.constant 0 : i32
    return %c0_i32, %c0_i32_0 : i32, i32
  }
  func.func @transform_21(%arg0: i32) -> (i32, i32, i32) {
    %c0_i32 = arith.constant 0 : i32
    %c0_i32_0 = arith.constant 0 : i32
    %c0_i32_1 = arith.constant 0 : i32
    return %arg0, %c0_i32, %c0_i32_0 : i32, i32, i32
  }
}

</mosaic_0001>

<llo_original>
// kernel: model7_forward.1
$region0: #{model7_forward.1}
  #allocation0 [shape = 'u32[]', space=smem, size = 0x4, offset = 0x4, fixed_abs, tag = 'smem constant byte address 0x4 - core index']
  #allocation1 [shape = 'u32[72,128]{1,0:T(1,128)}', space=vmem, size = 0x9000, scoped, tag = 'internal scratch']
  %s0 = inlined_call_operand.vmem [shape: f32[2,1,792], index: 0, kind: input, shape index: {}]
  %s1 = inlined_call_operand.vmem [shape: bf16[9,8,1], index: 1, kind: input, shape index: {}]
  %s2 = inlined_call_operand.vmem [shape: f32[8,1], index: 2, kind: input, shape index: {}]
  %s3 = inlined_call_operand.vmem [shape: f32[8,1], index: 3, kind: input, shape index: {}]
  %s4 = inlined_call_operand.vmem [shape: bf16[9,14,8], index: 4, kind: input, shape index: {}]
  %s5 = inlined_call_operand.vmem [shape: f32[14,1], index: 5, kind: input, shape index: {}]
  %s6 = inlined_call_operand.vmem [shape: f32[14,1], index: 6, kind: input, shape index: {}]
  %s7 = inlined_call_operand.vmem [shape: bf16[10,14], index: 7, kind: input, shape index: {}]
  %s8 = inlined_call_operand.vmem [shape: bf16[9,14,10], index: 8, kind: input, shape index: {}]
  %s9 = inlined_call_operand.vmem [shape: f32[14,1], index: 9, kind: input, shape index: {}]
  %s10 = inlined_call_operand.vmem [shape: f32[14,1], index: 10, kind: input, shape index: {}]
  %s11 = inlined_call_operand.vmem [shape: bf16[9,16,14], index: 11, kind: input, shape index: {}]
  %s12 = inlined_call_operand.vmem [shape: f32[16,1], index: 12, kind: input, shape index: {}]
  %s13 = inlined_call_operand.vmem [shape: f32[16,1], index: 13, kind: input, shape index: {}]
  %s14 = inlined_call_operand.vmem [shape: bf16[9,20,16], index: 14, kind: input, shape index: {}]
  %s15 = inlined_call_operand.vmem [shape: f32[20,1], index: 15, kind: input, shape index: {}]
  %s16 = inlined_call_operand.vmem [shape: f32[20,1], index: 16, kind: input, shape index: {}]
  %s17 = inlined_call_operand.vmem [shape: f32[643,152], index: 17, kind: input, shape index: {}]
  %s18 = inlined_call_operand.vmem [shape: f32[72,1], index: 18, kind: input, shape index: {}]
  %s19 = inlined_call_operand.vmem [shape: f32[16,20], index: 19, kind: input, shape index: {}]
  %s20 = inlined_call_operand.vmem [shape: f32[10,16], index: 20, kind: input, shape index: {}]
  %s21 = inlined_call_operand.vmem [shape: f32[2,10,1], index: 21, kind: output, shape index: {}]
  %s22 = sld [smem:[#allocation0]]
  $region117: #{model7_forward.1} parent=0
    _
  %s24 = ssub.s32 1, %s22
  %s25 = scalar_select 0, %s24, %s22
  loop: start=0, step=1, limit=4
  $region2: #{model7_forward.1} parent=0 // loop_pre_header
    _
  $region3: #{model7_forward.1} parent=0 // loop_header
    %s27 = sphi 0, %s31
    %p28 = scmp.ge.s32.totalorder %s27, 4
    %s37 = sphi 0, %s39
    %s40 = sphi 0, %s37
    %s41 = sphi 0, %s40
    %s57 = sphi 0, %s41
    %s61 = sphi 0, %s61
    %s63 = sphi 0, %s61
    %s64 = sphi 0, %s63
    %s78 = sphi 0, %s64
    %s82 = sphi 0, %s82
    %s84 = sphi 0, %s82
    %s85 = sphi 0, %s84
    %s99 = sphi 0, %s85
    %s103 = sphi 0, %s103
    %s105 = sphi 0, %s103
    %s106 = sphi 0, %s105
    %s120 = sphi 0, %s106
    %s124 = sphi 0, %s124
    %s126 = sphi 0, %s124
    %s127 = sphi 0, %s126
    %s141 = sphi 0, %s127
    %s145 = sphi 0, %s145
    %s147 = sphi 0, %s145
    %s148 = sphi 0, %s147
    %s162 = sphi 0, %s148
    %s166 = sphi 0, %s166
    %s168 = sphi 0, %s166
    %s169 = sphi 0, %s168
    %s183 = sphi 0, %s169
    %s187 = sphi 0, %s187
    %s189 = sphi 0, %s187
    %s190 = sphi 0, %s189
    %s204 = sphi 0, %s190
    %s208 = sphi 0, %s208
    %s210 = sphi 0, %s208
    %s211 = sphi 0, %s210
    %s225 = sphi 0, %s211
    %s229 = sphi 0, %s229
    %s231 = sphi 0, %s229
    %s232 = sphi 0, %s231
    %s246 = sphi 0, %s232
    %s250 = sphi 0, %s250
    %s252 = sphi 0, %s250
    %s253 = sphi 0, %s252
    %s267 = sphi 0, %s253
    %s271 = sphi 0, %s271
    %s273 = sphi 0, %s271
    %s274 = sphi 0, %s273
    %s288 = sphi 0, %s274
    %s292 = sphi 0, %s292
    %s294 = sphi 0, %s292
    %s295 = sphi 0, %s294
    %s309 = sphi 0, %s295
    %s313 = sphi 0, %s313
    %s315 = sphi 0, %s313
    %s316 = sphi 0, %s315
    %s330 = sphi 0, %s316
    %s334 = sphi 0, %s334
    %s336 = sphi 0, %s334
    %s337 = sphi 0, %s336
    %s351 = sphi 0, %s337
    %s355 = sphi 0, %s355
    %s357 = sphi 0, %s355
    %s358 = sphi 0, %s357
    %s372 = sphi 0, %s358
    %s376 = sphi 0, %s376
    %s378 = sphi 0, %s376
    %s379 = sphi 0, %s378
    %s393 = sphi 0, %s379
    %s397 = sphi 0, %s397
    %s399 = sphi 0, %s397
    %s400 = sphi 0, %s399
    %s414 = sphi 0, %s400
    %s418 = sphi 0, %s418
    %s420 = sphi 0, %s418
    %s421 = sphi 0, %s420
    %s435 = sphi 0, %s421
    %s439 = sphi 0, %s439
    %s441 = sphi 0, %s439
    %s442 = sphi 0, %s441
    %s456 = sphi 0, %s442
    %s460 = sphi 0, %s460
    %s462 = sphi 0, %s460
    %s463 = sphi 0, %s462
    %s477 = sphi 0, %s463
    %s483 = sphi 0, %s485
    %s486 = sphi 0, %s483
    %s487 = sphi 0, %s486
    %s503 = sphi 0, %s487
  $region4: #{model7_forward.1} parent=0 // loop_header_branch
    %30 = sbr.rel (%p28) target = $region8
  $region5: #{model7_forward.1} parent=0 // loop_body
    %s32 = ssub.s32 %s27, 1
    %s33 = ssub.s32 %s27, 2
    %s34 = sadd.s32 %s27, 1
    %s35 = ssub.s32 %s27, %s34
    %p36 = scmp.eq.s32.totalorder %s35, 0
    %s38 = sadd.s32 %s37, 1
    %s39 = scalar_select %p36, %s37, %s38
    %p42 = pneg %p36
    %p43 = scmp.eq.s32.totalorder %s27, 1
    %p44 = por %p42, %p43
    %p45 = scmp.ne.s32.totalorder %s37, %s40
    %p46 = scmp.eq.s32.totalorder %s27, 0
    %p47 = por %p45, %p46
    %p48 = scmp.ne.s32.totalorder %s37, %s40
    %p49 = scmp.eq.s32.totalorder %s32, 1
    %p50 = por %p48, %p49
    %p51 = scmp.ne.s32.totalorder %s40, %s41
    %p52 = scmp.eq.s32.totalorder %s32, 0
    %p53 = por %p51, %p52
    %p54 = scmp.ne.s32.totalorder %s40, %s41
    %p55 = scmp.eq.s32.totalorder %s33, 1
    %p56 = por %p54, %p55
    %p58 = scmp.ne.s32.totalorder %s41, %s57
    %p59 = scmp.eq.s32.totalorder %s33, 0
    %p60 = por %p58, %p59
    %s62 = sadd.s32 %s61, 1
    %p65 = scmp.eq.s32.totalorder %s27, 1
    %p66 = scmp.ne.s32.totalorder %s61, %s63
    %p67 = scmp.eq.s32.totalorder %s27, 0
    %p68 = por %p66, %p67
    %p69 = scmp.ne.s32.totalorder %s61, %s63
    %p70 = scmp.eq.s32.totalorder %s32, 1
    %p71 = por %p69, %p70
    %p72 = scmp.ne.s32.totalorder %s63, %s64
    %p73 = scmp.eq.s32.totalorder %s32, 0
    %p74 = por %p72, %p73
    %p75 = scmp.ne.s32.totalorder %s63, %s64
    %p76 = scmp.eq.s32.totalorder %s33, 1
    %p77 = por %p75, %p76
    %p79 = scmp.ne.s32.totalorder %s64, %s78
    %p80 = scmp.eq.s32.totalorder %s33, 0
    %p81 = por %p79, %p80
    %s83 = sadd.s32 %s82, 1
    %p86 = scmp.eq.s32.totalorder %s27, 1
    %p87 = scmp.ne.s32.totalorder %s82, %s84
    %p88 = scmp.eq.s32.totalorder %s27, 0
    %p89 = por %p87, %p88
    %p90 = scmp.ne.s32.totalorder %s82, %s84
    %p91 = scmp.eq.s32.totalorder %s32, 1
    %p92 = por %p90, %p91
    %p93 = scmp.ne.s32.totalorder %s84, %s85
    %p94 = scmp.eq.s32.totalorder %s32, 0
    %p95 = por %p93, %p94
    %p96 = scmp.ne.s32.totalorder %s84, %s85
    %p97 = scmp.eq.s32.totalorder %s33, 1
    %p98 = por %p96, %p97
    %p100 = scmp.ne.s32.totalorder %s85, %s99
    %p101 = scmp.eq.s32.totalorder %s33, 0
    %p102 = por %p100, %p101
    %s104 = sadd.s32 %s103, 1
    %p107 = scmp.eq.s32.totalorder %s27, 1
    %p108 = scmp.ne.s32.totalorder %s103, %s105
    %p109 = scmp.eq.s32.totalorder %s27, 0
    %p110 = por %p108, %p109
    %p111 = scmp.ne.s32.totalorder %s103, %s105
    %p112 = scmp.eq.s32.totalorder %s32, 1
    %p113 = por %p111, %p112
    %p114 = scmp.ne.s32.totalorder %s105, %s106
    %p115 = scmp.eq.s32.totalorder %s32, 0
    %p116 = por %p114, %p115
    %p117 = scmp.ne.s32.totalorder %s105, %s106
    %p118 = scmp.eq.s32.totalorder %s33, 1
    %p119 = por %p117, %p118
    %p121 = scmp.ne.s32.totalorder %s106, %s120
    %p122 = scmp.eq.s32.totalorder %s33, 0
    %p123 = por %p121, %p122
    %s125 = sadd.s32 %s124, 1
    %p128 = scmp.eq.s32.totalorder %s27, 1
    %p129 = scmp.ne.s32.totalorder %s124, %s126
    %p130 = scmp.eq.s32.totalorder %s27, 0
    %p131 = por %p129, %p130
    %p132 = scmp.ne.s32.totalorder %s124, %s126
    %p133 = scmp.eq.s32.totalorder %s32, 1
    %p134 = por %p132, %p133
    %p135 = scmp.ne.s32.totalorder %s126, %s127
    %p136 = scmp.eq.s32.totalorder %s32, 0
    %p137 = por %p135, %p136
    %p138 = scmp.ne.s32.totalorder %s126, %s127
    %p139 = scmp.eq.s32.totalorder %s33, 1
    %p140 = por %p138, %p139
    %p142 = scmp.ne.s32.totalorder %s127, %s141
    %p143 = scmp.eq.s32.totalorder %s33, 0
    %p144 = por %p142, %p143
    %s146 = sadd.s32 %s145, 1
    %p149 = scmp.eq.s32.totalorder %s27, 1
    %p150 = scmp.ne.s32.totalorder %s145, %s147
    %p151 = scmp.eq.s32.totalorder %s27, 0
    %p152 = por %p150, %p151
    %p153 = scmp.ne.s32.totalorder %s145, %s147
    %p154 = scmp.eq.s32.totalorder %s32, 1
    %p155 = por %p153, %p154
    %p156 = scmp.ne.s32.totalorder %s147, %s148
    %p157 = scmp.eq.s32.totalorder %s32, 0
    %p158 = por %p156, %p157
    %p159 = scmp.ne.s32.totalorder %s147, %s148
    %p160 = scmp.eq.s32.totalorder %s33, 1
    %p161 = por %p159, %p160
    %p163 = scmp.ne.s32.totalorder %s148, %s162
    %p164 = scmp.eq.s32.totalorder %s33, 0
    %p165 = por %p163, %p164
    %s167 = sadd.s32 %s166, 1
    %p170 = scmp.eq.s32.totalorder %s27, 1
    %p171 = scmp.ne.s32.totalorder %s166, %s168
    %p172 = scmp.eq.s32.totalorder %s27, 0
    %p173 = por %p171, %p172
    %p174 = scmp.ne.s32.totalorder %s166, %s168
    %p175 = scmp.eq.s32.totalorder %s32, 1
    %p176 = por %p174, %p175
    %p177 = scmp.ne.s32.totalorder %s168, %s169
    %p178 = scmp.eq.s32.totalorder %s32, 0
    %p179 = por %p177, %p178
    %p180 = scmp.ne.s32.totalorder %s168, %s169
    %p181 = scmp.eq.s32.totalorder %s33, 1
    %p182 = por %p180, %p181
    %p184 = scmp.ne.s32.totalorder %s169, %s183
    %p185 = scmp.eq.s32.totalorder %s33, 0
    %p186 = por %p184, %p185
    %s188 = sadd.s32 %s187, 1
    %p191 = scmp.eq.s32.totalorder %s27, 1
    %p192 = scmp.ne.s32.totalorder %s187, %s189
    %p193 = scmp.eq.s32.totalorder %s27, 0
    %p194 = por %p192, %p193
    %p195 = scmp.ne.s32.totalorder %s187, %s189
    %p196 = scmp.eq.s32.totalorder %s32, 1
    %p197 = por %p195, %p196
    %p198 = scmp.ne.s32.totalorder %s189, %s190
    %p199 = scmp.eq.s32.totalorder %s32, 0
    %p200 = por %p198, %p199
    %p201 = scmp.ne.s32.totalorder %s189, %s190
    %p202 = scmp.eq.s32.totalorder %s33, 1
    %p203 = por %p201, %p202
    %p205 = scmp.ne.s32.totalorder %s190, %s204
    %p206 = scmp.eq.s32.totalorder %s33, 0
    %p207 = por %p205, %p206
    %s209 = sadd.s32 %s208, 1
    %p212 = scmp.eq.s32.totalorder %s27, 1
    %p213 = scmp.ne.s32.totalorder %s208, %s210
    %p214 = scmp.eq.s32.totalorder %s27, 0
    %p215 = por %p213, %p214
    %p216 = scmp.ne.s32.totalorder %s208, %s210
    %p217 = scmp.eq.s32.totalorder %s32, 1
    %p218 = por %p216, %p217
    %p219 = scmp.ne.s32.totalorder %s210, %s211
    %p220 = scmp.eq.s32.totalorder %s32, 0
    %p221 = por %p219, %p220
    %p222 = scmp.ne.s32.totalorder %s210, %s211
    %p223 = scmp.eq.s32.totalorder %s33, 1
    %p224 = por %p222, %p223
    %p226 = scmp.ne.s32.totalorder %s211, %s225
    %p227 = scmp.eq.s32.totalorder %s33, 0
    %p228 = por %p226, %p227
    %s230 = sadd.s32 %s229, 1
    %p233 = scmp.eq.s32.totalorder %s27, 1
    %p234 = scmp.ne.s32.totalorder %s229, %s231
    %p235 = scmp.eq.s32.totalorder %s27, 0
    %p236 = por %p234, %p235
    %p237 = scmp.ne.s32.totalorder %s229, %s231
    %p238 = scmp.eq.s32.totalorder %s32, 1
    %p239 = por %p237, %p238
    %p240 = scmp.ne.s32.totalorder %s231, %s232
    %p241 = scmp.eq.s32.totalorder %s32, 0
    %p242 = por %p240, %p241
    %p243 = scmp.ne.s32.totalorder %s231, %s232
    %p244 = scmp.eq.s32.totalorder %s33, 1
    %p245 = por %p243, %p244
    %p247 = scmp.ne.s32.totalorder %s232, %s246
    %p248 = scmp.eq.s32.totalorder %s33, 0
    %p249 = por %p247, %p248
    %s251 = sadd.s32 %s250, 1
    %p254 = scmp.eq.s32.totalorder %s27, 1
    %p255 = scmp.ne.s32.totalorder %s250, %s252
    %p256 = scmp.eq.s32.totalorder %s27, 0
    %p257 = por %p255, %p256
    %p258 = scmp.ne.s32.totalorder %s250, %s252
    %p259 = scmp.eq.s32.totalorder %s32, 1
    %p260 = por %p258, %p259
    %p261 = scmp.ne.s32.totalorder %s252, %s253
    %p262 = scmp.eq.s32.totalorder %s32, 0
    %p263 = por %p261, %p262
    %p264 = scmp.ne.s32.totalorder %s252, %s253
    %p265 = scmp.eq.s32.totalorder %s33, 1
    %p266 = por %p264, %p265
    %p268 = scmp.ne.s32.totalorder %s253, %s267
    %p269 = scmp.eq.s32.totalorder %s33, 0
    %p270 = por %p268, %p269
    %s272 = sadd.s32 %s271, 1
    %p275 = scmp.eq.s32.totalorder %s27, 1
    %p276 = scmp.ne.s32.totalorder %s271, %s273
    %p277 = scmp.eq.s32.totalorder %s27, 0
    %p278 = por %p276, %p277
    %p279 = scmp.ne.s32.totalorder %s271, %s273
    %p280 = scmp.eq.s32.totalorder %s32, 1
    %p281 = por %p279, %p280
    %p282 = scmp.ne.s32.totalorder %s273, %s274
    %p283 = scmp.eq.s32.totalorder %s32, 0
    %p284 = por %p282, %p283
    %p285 = scmp.ne.s32.totalorder %s273, %s274
    %p286 = scmp.eq.s32.totalorder %s33, 1
    %p287 = por %p285, %p286
    %p289 = scmp.ne.s32.totalorder %s274, %s288
    %p290 = scmp.eq.s32.totalorder %s33, 0
    %p291 = por %p289, %p290
    %s293 = sadd.s32 %s292, 1
    %p296 = scmp.eq.s32.totalorder %s27, 1
    %p297 = scmp.ne.s32.totalorder %s292, %s294
    %p298 = scmp.eq.s32.totalorder %s27, 0
    %p299 = por %p297, %p298
    %p300 = scmp.ne.s32.totalorder %s292, %s294
    %p301 = scmp.eq.s32.totalorder %s32, 1
    %p302 = por %p300, %p301
    %p303 = scmp.ne.s32.totalorder %s294, %s295
    %p304 = scmp.eq.s32.totalorder %s32, 0
    %p305 = por %p303, %p304
    %p306 = scmp.ne.s32.totalorder %s294, %s295
    %p307 = scmp.eq.s32.totalorder %s33, 1
    %p308 = por %p306, %p307
    %p310 = scmp.ne.s32.totalorder %s295, %s309
    %p311 = scmp.eq.s32.totalorder %s33, 0
    %p312 = por %p310, %p311
    %s314 = sadd.s32 %s313, 1
    %p317 = scmp.eq.s32.totalorder %s27, 1
    %p318 = scmp.ne.s32.totalorder %s313, %s315
    %p319 = scmp.eq.s32.totalorder %s27, 0
    %p320 = por %p318, %p319
    %p321 = scmp.ne.s32.totalorder %s313, %s315
    %p322 = scmp.eq.s32.totalorder %s32, 1
    %p323 = por %p321, %p322
    %p324 = scmp.ne.s32.totalorder %s315, %s316
    %p325 = scmp.eq.s32.totalorder %s32, 0
    %p326 = por %p324, %p325
    %p327 = scmp.ne.s32.totalorder %s315, %s316
    %p328 = scmp.eq.s32.totalorder %s33, 1
    %p329 = por %p327, %p328
    %p331 = scmp.ne.s32.totalorder %s316, %s330
    %p332 = scmp.eq.s32.totalorder %s33, 0
    %p333 = por %p331, %p332
    %s335 = sadd.s32 %s334, 1
    %p338 = scmp.eq.s32.totalorder %s27, 1
    %p339 = scmp.ne.s32.totalorder %s334, %s336
    %p340 = scmp.eq.s32.totalorder %s27, 0
    %p341 = por %p339, %p340
    %p342 = scmp.ne.s32.totalorder %s334, %s336
    %p343 = scmp.eq.s32.totalorder %s32, 1
    %p344 = por %p342, %p343
    %p345 = scmp.ne.s32.totalorder %s336, %s337
    %p346 = scmp.eq.s32.totalorder %s32, 0
    %p347 = por %p345, %p346
    %p348 = scmp.ne.s32.totalorder %s336, %s337
    %p349 = scmp.eq.s32.totalorder %s33, 1
    %p350 = por %p348, %p349
    %p352 = scmp.ne.s32.totalorder %s337, %s351
    %p353 = scmp.eq.s32.totalorder %s33, 0
    %p354 = por %p352, %p353
    %s356 = sadd.s32 %s355, 1
    %p359 = scmp.eq.s32.totalorder %s27, 1
    %p360 = scmp.ne.s32.totalorder %s355, %s357
    %p361 = scmp.eq.s32.totalorder %s27, 0
    %p362 = por %p360, %p361
    %p363 = scmp.ne.s32.totalorder %s355, %s357
    %p364 = scmp.eq.s32.totalorder %s32, 1
    %p365 = por %p363, %p364
    %p366 = scmp.ne.s32.totalorder %s357, %s358
    %p367 = scmp.eq.s32.totalorder %s32, 0
    %p368 = por %p366, %p367
    %p369 = scmp.ne.s32.totalorder %s357, %s358
    %p370 = scmp.eq.s32.totalorder %s33, 1
    %p371 = por %p369, %p370
    %p373 = scmp.ne.s32.totalorder %s358, %s372
    %p374 = scmp.eq.s32.totalorder %s33, 0
    %p375 = por %p373, %p374
    %s377 = sadd.s32 %s376, 1
    %p380 = scmp.eq.s32.totalorder %s27, 1
    %p381 = scmp.ne.s32.totalorder %s376, %s378
    %p382 = scmp.eq.s32.totalorder %s27, 0
    %p383 = por %p381, %p382
    %p384 = scmp.ne.s32.totalorder %s376, %s378
    %p385 = scmp.eq.s32.totalorder %s32, 1
    %p386 = por %p384, %p385
    %p387 = scmp.ne.s32.totalorder %s378, %s379
    %p388 = scmp.eq.s32.totalorder %s32, 0
    %p389 = por %p387, %p388
    %p390 = scmp.ne.s32.totalorder %s378, %s379
    %p391 = scmp.eq.s32.totalorder %s33, 1
    %p392 = por %p390, %p391
    %p394 = scmp.ne.s32.totalorder %s379, %s393
    %p395 = scmp.eq.s32.totalorder %s33, 0
    %p396 = por %p394, %p395
    %s398 = sadd.s32 %s397, 1
    %p401 = scmp.eq.s32.totalorder %s27, 1
    %p402 = scmp.ne.s32.totalorder %s397, %s399
    %p403 = scmp.eq.s32.totalorder %s27, 0
    %p404 = por %p402, %p403
    %p405 = scmp.ne.s32.totalorder %s397, %s399
    %p406 = scmp.eq.s32.totalorder %s32, 1
    %p407 = por %p405, %p406
    %p408 = scmp.ne.s32.totalorder %s399, %s400
    %p409 = scmp.eq.s32.totalorder %s32, 0
    %p410 = por %p408, %p409
    %p411 = scmp.ne.s32.totalorder %s399, %s400
    %p412 = scmp.eq.s32.totalorder %s33, 1
    %p413 = por %p411, %p412
    %p415 = scmp.ne.s32.totalorder %s400, %s414
    %p416 = scmp.eq.s32.totalorder %s33, 0
    %p417 = por %p415, %p416
    %s419 = sadd.s32 %s418, 1
    %p422 = scmp.eq.s32.totalorder %s27, 1
    %p423 = scmp.ne.s32.totalorder %s418, %s420
    %p424 = scmp.eq.s32.totalorder %s27, 0
    %p425 = por %p423, %p424
    %p426 = scmp.ne.s32.totalorder %s418, %s420
    %p427 = scmp.eq.s32.totalorder %s32, 1
    %p428 = por %p426, %p427
    %p429 = scmp.ne.s32.totalorder %s420, %s421
    %p430 = scmp.eq.s32.totalorder %s32, 0
    %p431 = por %p429, %p430
    %p432 = scmp.ne.s32.totalorder %s420, %s421
    %p433 = scmp.eq.s32.totalorder %s33, 1
    %p434 = por %p432, %p433
    %p436 = scmp.ne.s32.totalorder %s421, %s435
    %p437 = scmp.eq.s32.totalorder %s33, 0
    %p438 = por %p436, %p437
    %s440 = sadd.s32 %s439, 1
    %p443 = scmp.eq.s32.totalorder %s27, 1
    %p444 = scmp.ne.s32.totalorder %s439, %s441
    %p445 = scmp.eq.s32.totalorder %s27, 0
    %p446 = por %p444, %p445
    %p447 = scmp.ne.s32.totalorder %s439, %s441
    %p448 = scmp.eq.s32.totalorder %s32, 1
    %p449 = por %p447, %p448
    %p450 = scmp.ne.s32.totalorder %s441, %s442
    %p451 = scmp.eq.s32.totalorder %s32, 0
    %p452 = por %p450, %p451
    %p453 = scmp.ne.s32.totalorder %s441, %s442
    %p454 = scmp.eq.s32.totalorder %s33, 1
    %p455 = por %p453, %p454
    %p457 = scmp.ne.s32.totalorder %s442, %s456
    %p458 = scmp.eq.s32.totalorder %s33, 0
    %p459 = por %p457, %p458
    %s461 = sadd.s32 %s460, 1
    %p464 = scmp.eq.s32.totalorder %s27, 1
    %p465 = scmp.ne.s32.totalorder %s460, %s462
    %p466 = scmp.eq.s32.totalorder %s27, 0
    %p467 = por %p465, %p466
    %p468 = scmp.ne.s32.totalorder %s460, %s462
    %p469 = scmp.eq.s32.totalorder %s32, 1
    %p470 = por %p468, %p469
    %p471 = scmp.ne.s32.totalorder %s462, %s463
    %p472 = scmp.eq.s32.totalorder %s32, 0
    %p473 = por %p471, %p472
    %p474 = scmp.ne.s32.totalorder %s462, %s463
    %p475 = scmp.eq.s32.totalorder %s33, 1
    %p476 = por %p474, %p475
    %p478 = scmp.ne.s32.totalorder %s463, %s477
    %p479 = scmp.eq.s32.totalorder %s33, 0
    %p480 = por %p478, %p479
    %s481 = ssub.s32 %s27, %s34
    %p482 = scmp.eq.s32.totalorder %s481, 0
    %s484 = sadd.s32 %s483, 1
    %s485 = scalar_select %p482, %s483, %s484
    %p488 = pneg %p482
    %p489 = scmp.eq.s32.totalorder %s27, 1
    %p490 = por %p488, %p489
    %p491 = scmp.ne.s32.totalorder %s483, %s486
    %p492 = scmp.eq.s32.totalorder %s27, 0
    %p493 = por %p491, %p492
    %p494 = scmp.ne.s32.totalorder %s483, %s486
    %p495 = scmp.eq.s32.totalorder %s32, 1
    %p496 = por %p494, %p495
    %p497 = scmp.ne.s32.totalorder %s486, %s487
    %p498 = scmp.eq.s32.totalorder %s32, 0
    %p499 = por %p497, %p498
    %p500 = scmp.ne.s32.totalorder %s486, %s487
    %p501 = scmp.eq.s32.totalorder %s33, 1
    %p502 = por %p500, %p501
    %p504 = scmp.ne.s32.totalorder %s487, %s503
    %p505 = scmp.eq.s32.totalorder %s33, 0
    %p506 = por %p504, %p505
    %p507 = scmp.le.s32.totalorder 1, %s27
    %p508 = scmp.lt.s32.totalorder %s27, 3
    %p509 = pnand %p507, %p508
    %p510 = pneg %p509
    // Predicated region
    $region9: #{model7_forward.1} parent=5 // pred_check
      _
    $region10: #{model7_forward.1} parent=5 // pred_check_branch
      %512 = sbr.rel (%p509) target = $region12
    $region11: #{model7_forward.1} parent=5 // pred_region
      %s513 = ssub.s32 %s27, 1
      // Predicated region
      $region13: #{model7_forward.1} parent=11 // pred_check
        %p514 = pneg %p74
      $region14: #{model7_forward.1} parent=11 // pred_check_branch
        %516 = sbr.rel (%p514) target = $region16
      $region15: #{model7_forward.1} parent=11 // pred_region
        _
      $region16: #{model7_forward.1} parent=11 // pred_fallthru
        _
      // Predicated region
      $region17: #{model7_forward.1} parent=11 // pred_check
        %p517 = pneg %p95
      $region18: #{model7_forward.1} parent=11 // pred_check_branch
        %519 = sbr.rel (%p517) target = $region20
      $region19: #{model7_forward.1} parent=11 // pred_region
        _
      $region20: #{model7_forward.1} parent=11 // pred_fallthru
        _
      // Predicated region
      $region21: #{model7_forward.1} parent=11 // pred_check
        %p520 = pneg %p116
      $region22: #{model7_forward.1} parent=11 // pred_check_branch
        %522 = sbr.rel (%p520) target = $region24
      $region23: #{model7_forward.1} parent=11 // pred_region
        _
      $region24: #{model7_forward.1} parent=11 // pred_fallthru
        _
      // Predicated region
      $region25: #{model7_forward.1} parent=11 // pred_check
        %p523 = pneg %p137
      $region26: #{model7_forward.1} parent=11 // pred_check_branch
        %525 = sbr.rel (%p523) target = $region28
      $region27: #{model7_forward.1} parent=11 // pred_region
        _
      $region28: #{model7_forward.1} parent=11 // pred_fallthru
        _
      // Predicated region
      $region29: #{model7_forward.1} parent=11 // pred_check
        %p526 = pneg %p158
      $region30: #{model7_forward.1} parent=11 // pred_check_branch
        %528 = sbr.rel (%p526) target = $region32
      $region31: #{model7_forward.1} parent=11 // pred_region
        _
      $region32: #{model7_forward.1} parent=11 // pred_fallthru
        _
      // Predicated region
      $region33: #{model7_forward.1} parent=11 // pred_check
        %p529 = pneg %p179
      $region34: #{model7_forward.1} parent=11 // pred_check_branch
        %531 = sbr.rel (%p529) target = $region36
      $region35: #{model7_forward.1} parent=11 // pred_region
        _
      $region36: #{model7_forward.1} parent=11 // pred_fallthru
        _
      // Predicated region
      $region37: #{model7_forward.1} parent=11 // pred_check
        %p532 = pneg %p200
      $region38: #{model7_forward.1} parent=11 // pred_check_branch
        %534 = sbr.rel (%p532) target = $region40
      $region39: #{model7_forward.1} parent=11 // pred_region
        _
      $region40: #{model7_forward.1} parent=11 // pred_fallthru
        _
      // Predicated region
      $region41: #{model7_forward.1} parent=11 // pred_check
        %p535 = pneg %p221
      $region42: #{model7_forward.1} parent=11 // pred_check_branch
        %537 = sbr.rel (%p535) target = $region44
      $region43: #{model7_forward.1} parent=11 // pred_region
        _
      $region44: #{model7_forward.1} parent=11 // pred_fallthru
        _
      // Predicated region
      $region45: #{model7_forward.1} parent=11 // pred_check
        %p538 = pneg %p242
      $region46: #{model7_forward.1} parent=11 // pred_check_branch
        %540 = sbr.rel (%p538) target = $region48
      $region47: #{model7_forward.1} parent=11 // pred_region
        _
      $region48: #{model7_forward.1} parent=11 // pred_fallthru
        _
      // Predicated region
      $region49: #{model7_forward.1} parent=11 // pred_check
        %p541 = pneg %p263
      $region50: #{model7_forward.1} parent=11 // pred_check_branch
        %543 = sbr.rel (%p541) target = $region52
      $region51: #{model7_forward.1} parent=11 // pred_region
        _
      $region52: #{model7_forward.1} parent=11 // pred_fallthru
        _
      // Predicated region
      $region53: #{model7_forward.1} parent=11 // pred_check
        %p544 = pneg %p284
      $region54: #{model7_forward.1} parent=11 // pred_check_branch
        %546 = sbr.rel (%p544) target = $region56
      $region55: #{model7_forward.1} parent=11 // pred_region
        _
      $region56: #{model7_forward.1} parent=11 // pred_fallthru
        _
      // Predicated region
      $region57: #{model7_forward.1} parent=11 // pred_check
        %p547 = pneg %p305
      $region58: #{model7_forward.1} parent=11 // pred_check_branch
        %549 = sbr.rel (%p547) target = $region60
      $region59: #{model7_forward.1} parent=11 // pred_region
        _
      $region60: #{model7_forward.1} parent=11 // pred_fallthru
        _
      // Predicated region
      $region61: #{model7_forward.1} parent=11 // pred_check
        %p550 = pneg %p326
      $region62: #{model7_forward.1} parent=11 // pred_check_branch
        %552 = sbr.rel (%p550) target = $region64
      $region63: #{model7_forward.1} parent=11 // pred_region
        _
      $region64: #{model7_forward.1} parent=11 // pred_fallthru
        _
      // Predicated region
      $region65: #{model7_forward.1} parent=11 // pred_check
        %p553 = pneg %p347
      $region66: #{model7_forward.1} parent=11 // pred_check_branch
        %555 = sbr.rel (%p553) target = $region68
      $region67: #{model7_forward.1} parent=11 // pred_region
        _
      $region68: #{model7_forward.1} parent=11 // pred_fallthru
        _
      // Predicated region
      $region69: #{model7_forward.1} parent=11 // pred_check
        %p556 = pneg %p368
      $region70: #{model7_forward.1} parent=11 // pred_check_branch
        %558 = sbr.rel (%p556) target = $region72
      $region71: #{model7_forward.1} parent=11 // pred_region
        _
      $region72: #{model7_forward.1} parent=11 // pred_fallthru
        _
      // Predicated region
      $region73: #{model7_forward.1} parent=11 // pred_check
        %p559 = pneg %p389
      $region74: #{model7_forward.1} parent=11 // pred_check_branch
        %561 = sbr.rel (%p559) target = $region76
      $region75: #{model7_forward.1} parent=11 // pred_region
        _
      $region76: #{model7_forward.1} parent=11 // pred_fallthru
        _
      // Predicated region
      $region77: #{model7_forward.1} parent=11 // pred_check
        %p562 = pneg %p410
      $region78: #{model7_forward.1} parent=11 // pred_check_branch
        %564 = sbr.rel (%p562) target = $region80
      $region79: #{model7_forward.1} parent=11 // pred_region
        _
      $region80: #{model7_forward.1} parent=11 // pred_fallthru
        _
      // Predicated region
      $region81: #{model7_forward.1} parent=11 // pred_check
        %p565 = pneg %p431
      $region82: #{model7_forward.1} parent=11 // pred_check_branch
        %567 = sbr.rel (%p565) target = $region84
      $region83: #{model7_forward.1} parent=11 // pred_region
        _
      $region84: #{model7_forward.1} parent=11 // pred_fallthru
        _
      // Predicated region
      $region85: #{model7_forward.1} parent=11 // pred_check
        %p568 = pneg %p452
      $region86: #{model7_forward.1} parent=11 // pred_check_branch
        %570 = sbr.rel (%p568) target = $region88
      $region87: #{model7_forward.1} parent=11 // pred_region
        _
      $region88: #{model7_forward.1} parent=11 // pred_fallthru
        _
      // Predicated region
      $region89: #{model7_forward.1} parent=11 // pred_check
        %p571 = pneg %p473
      $region90: #{model7_forward.1} parent=11 // pred_check_branch
        %573 = sbr.rel (%p571) target = $region92
      $region91: #{model7_forward.1} parent=11 // pred_region
        _
      $region92: #{model7_forward.1} parent=11 // pred_fallthru
        _
    $region12: #{model7_forward.1} parent=5 // pred_fallthru
      _
    %p574 = scmp.lt.s32.totalorder %s27, 2
    // Predicated region
    $region93: #{model7_forward.1} parent=5 // pred_check
      %p575 = pneg %p574
    $region94: #{model7_forward.1} parent=5 // pred_check_branch
      %577 = sbr.rel (%p575) target = $region96
    $region95: #{model7_forward.1} parent=5 // pred_region
      // Predicated region
      $region97: #{model7_forward.1} parent=95 // pred_check
        %p578 = pneg %p47
      $region98: #{model7_forward.1} parent=95 // pred_check_branch
        %580 = sbr.rel (%p578) target = $region100
      $region99: #{model7_forward.1} parent=95 // pred_region
        %p581 = scmp.lt.s32.totalorder %s27, 1
        %s582 = scalar_select %p581, %s27, 1
        %s583 = smul.addr %s582, 7
        %s584 = scalar_lea.vmem %s0, %s583
      $region100: #{model7_forward.1} parent=95 // pred_fallthru
        _
    $region96: #{model7_forward.1} parent=5 // pred_fallthru
      _
    %p585 = scmp.le.s32.totalorder 1, %s27
    %p586 = scmp.lt.s32.totalorder %s27, 3
    %p587 = pnand %p585, %p586
    %p588 = pneg %p587
    // Predicated region
    $region101: #{model7_forward.1} parent=5 // pred_check
      _
    $region102: #{model7_forward.1} parent=5 // pred_check_branch
      %590 = sbr.rel (%p587) target = $region104
    $region103: #{model7_forward.1} parent=5 // pred_region
      %s591 = ssub.s32 %s27, 1
      %p592 = scmp.lt.s32.totalorder %s32, 1
      %s593 = scalar_select %p592, %s32, 1
      %s594 = smul.addr %s593, 7
      %s595 = scalar_lea.vmem %s0, %s594
      %p596 = pneg %p53
      %p597 = pneg %p50
      %p598 = pneg %p74
      %p599 = pneg %p71
      %p600 = pneg %p95
      %p601 = pneg %p92
      %p602 = pneg %p116
      %p603 = pneg %p113
      %p604 = pneg %p137
      %p605 = pneg %p134
      %p606 = pneg %p158
      %p607 = pneg %p155
      %p608 = pneg %p179
      %p609 = pneg %p176
      %p610 = pneg %p200
      %p611 = pneg %p197
      %p612 = pneg %p221
      %p613 = pneg %p218
      %p614 = pneg %p242
      %p615 = pneg %p239
      %p616 = pneg %p263
      %p617 = pneg %p260
      %p618 = pneg %p284
      %p619 = pneg %p281
      %p620 = pneg %p305
      %p621 = pneg %p302
      %p622 = pneg %p326
      %p623 = pneg %p323
      %p624 = pneg %p347
      %p625 = pneg %p344
      %p626 = pneg %p368
      %p627 = pneg %p365
      %p628 = pneg %p389
      %p629 = pneg %p386
      %p630 = pneg %p410
      %p631 = pneg %p407
      %p632 = pneg %p431
      %p633 = pneg %p428
      %p634 = pneg %p452
      %p635 = pneg %p449
      %p636 = pneg %p473
      %p637 = pneg %p470
      %p638 = pneg %p499
      %p639 = pneg %p496
      %p640 = scmp.lt.s32.totalorder %s32, 1
      %s641 = scalar_select %p640, %s32, 1
      %s642 = smul.addr %s641, 2
      %s643 = smul.addr %s642, 8
      %s644 = scalar_lea.vmem %s21, %s643
      %p645 = scmp.lt.s32.totalorder %s32, 1
      %s646 = scalar_select %p645, %s32, 1
      %s647 = smul.addr %s646, 7
      %s648 = scalar_lea.vmem %s0, %s647
      %p649 = scmp.lt.s32.totalorder %s32, 1
      %s650 = scalar_select %p649, %s32, 1
      %s651 = smul.addr %s650, 2
      %s652 = smul.addr %s651, 8
      %s653 = scalar_lea.vmem %s21, %s652
      %v655 = vld [vmem:[%s648] sm:$0x7f]
      %v656 = vld [vmem:[%s1] sm:$0xf]
      %v657 = vunpack.c.l.bf16 %v656
      %659 = vset.pattern.permute.xlu0 0
      %660 = vperm.xlu0 %659, %v657
      %v661 = vpop.permute.xlu0 %660
      %v664 = vperm.slane %v655, 0
      %v665 = vperm.slane %v655, 1
      %v666 = vperm.slane %v655, 2
      %v667 = vperm.slane %v655, 3
      %v668 = vperm.slane %v655, 4
      %v669 = vperm.slane %v655, 5
      %v676 = vmul.f32 %v661, %v664
      %v677 = vmul.f32 %v661, %v665
      %v678 = vmul.f32 %v661, %v666
      %v679 = vmul.f32 %v661, %v667
      %v680 = vmul.f32 %v661, %v668
      %v681 = vmul.f32 %v661, %v669
      %s682 = scalar_lea.vmem %s1, 4
      %v683 = vld [vmem:[%s682] sm:$0xf]
      %v684 = vunpack.c.l.bf16 %v683
      %686 = vset.pattern.permute.xlu0 0
      %687 = vperm.xlu0 %686, %v684
      %v688 = vpop.permute.xlu0 %687
      %v690 = vmul.f32 %v688, %v664
      %v691 = vmul.f32 %v688, %v665
      %v692 = vmul.f32 %v688, %v666
      %v693 = vmul.f32 %v688, %v667
      %v694 = vmul.f32 %v688, %v668
      %v695 = vmul.f32 %v688, %v669
      %702 = vrot.lane.b32.xlu0 %v690, 127
      %v703 = vpop.permute.xlu0 %702
      %704 = vrot.lane.b32.xlu0 %v691, 127
      %v705 = vpop.permute.xlu0 %704
      %706 = vrot.lane.b32.xlu0 %v692, 127
      %v707 = vpop.permute.xlu0 %706
      %708 = vrot.lane.b32.xlu0 %v693, 127
      %v709 = vpop.permute.xlu0 %708
      %710 = vrot.lane.b32.xlu0 %v694, 127
      %v711 = vpop.permute.xlu0 %710
      %712 = vrot.lane.b32.xlu0 %v695, 127
      %v713 = vpop.permute.xlu0 %712
      %vm714 = vcmask 1039360
      %v715 = vsel %vm714, %v703, %v705
      %v716 = vsel %vm714, %v705, %v707
      %v717 = vsel %vm714, %v707, %v709
      %v718 = vsel %vm714, %v709, %v711
      %v719 = vsel %vm714, %v711, %v713
      %v726 = vadd.f32 %v676, %v715
      %v727 = vadd.f32 %v677, %v716
      %v728 = vadd.f32 %v678, %v717
      %v729 = vadd.f32 %v679, %v718
      %v730 = vadd.f32 %v680, %v719
      %v731 = vadd.f32 %v681, %v713
      %s732 = scalar_lea.vmem %s1, 8
      %v733 = vld [vmem:[%s732] sm:$0xf]
      %v734 = vunpack.c.l.bf16 %v733
      %736 = vset.pattern.permute.xlu0 0
      %737 = vperm.xlu0 %736, %v734
      %v738 = vpop.permute.xlu0 %737
      %v740 = vmul.f32 %v738, %v664
      %v741 = vmul.f32 %v738, %v665
      %v742 = vmul.f32 %v738, %v666
      %v743 = vmul.f32 %v738, %v667
      %v744 = vmul.f32 %v738, %v668
      %v745 = vmul.f32 %v738, %v669
      %752 = vrot.lane.b32.xlu0 %v740, 126
      %v753 = vpop.permute.xlu0 %752
      %754 = vrot.lane.b32.xlu0 %v741, 126
      %v755 = vpop.permute.xlu0 %754
      %756 = vrot.lane.b32.xlu0 %v742, 126
      %v757 = vpop.permute.xlu0 %756
      %758 = vrot.lane.b32.xlu0 %v743, 126
      %v759 = vpop.permute.xlu0 %758
      %760 = vrot.lane.b32.xlu0 %v744, 126
      %v761 = vpop.permute.xlu0 %760
      %762 = vrot.lane.b32.xlu0 %v745, 126
      %v763 = vpop.permute.xlu0 %762
      %vm764 = vcmask 1031168
      %v765 = vsel %vm764, %v753, %v755
      %v766 = vsel %vm764, %v755, %v757
      %v767 = vsel %vm764, %v757, %v759
      %v768 = vsel %vm764, %v759, %v761
      %v769 = vsel %vm764, %v761, %v763
      %v776 = vadd.f32 %v726, %v765
      %v777 = vadd.f32 %v727, %v766
      %v778 = vadd.f32 %v728, %v767
      %v779 = vadd.f32 %v729, %v768
      %v780 = vadd.f32 %v730, %v769
      %v781 = vadd.f32 %v731, %v763
      %s782 = scalar_lea.vmem %s1, 12
      %v783 = vld [vmem:[%s782] sm:$0xf]
      %v784 = vunpack.c.l.bf16 %v783
      %786 = vset.pattern.permute.xlu0 0
      %787 = vperm.xlu0 %786, %v784
      %v788 = vpop.permute.xlu0 %787
      %v790 = vmul.f32 %v788, %v664
      %v791 = vmul.f32 %v788, %v665
      %v792 = vmul.f32 %v788, %v666
      %v793 = vmul.f32 %v788, %v667
      %v794 = vmul.f32 %v788, %v668
      %v795 = vmul.f32 %v788, %v669
      %802 = vrot.lane.b32.xlu0 %v790, 100
      %v803 = vpop.permute.xlu0 %802
      %804 = vrot.lane.b32.xlu0 %v791, 100
      %v805 = vpop.permute.xlu0 %804
      %806 = vrot.lane.b32.xlu0 %v792, 100
      %v807 = vpop.permute.xlu0 %806
      %808 = vrot.lane.b32.xlu0 %v793, 100
      %v809 = vpop.permute.xlu0 %808
      %810 = vrot.lane.b32.xlu0 %v794, 100
      %v811 = vpop.permute.xlu0 %810
      %812 = vrot.lane.b32.xlu0 %v795, 100
      %v813 = vpop.permute.xlu0 %812
      %vm814 = vcmask 818176
      %v815 = vsel %vm814, %v803, %v805
      %v816 = vsel %vm814, %v805, %v807
      %v817 = vsel %vm814, %v807, %v809
      %v818 = vsel %vm814, %v809, %v811
      %v819 = vsel %vm814, %v811, %v813
      %v826 = vadd.f32 %v776, %v815
      %v827 = vadd.f32 %v777, %v816
      %v828 = vadd.f32 %v778, %v817
      %v829 = vadd.f32 %v779, %v818
      %v830 = vadd.f32 %v780, %v819
      %v831 = vadd.f32 %v781, %v813
      %s832 = scalar_lea.vmem %s1, 16
      %v833 = vld [vmem:[%s832] sm:$0xf]
      %v834 = vunpack.c.l.bf16 %v833
      %836 = vset.pattern.permute.xlu0 0
      %837 = vperm.xlu0 %836, %v834
      %v838 = vpop.permute.xlu0 %837
      %v840 = vmul.f32 %v838, %v664
      %v841 = vmul.f32 %v838, %v665
      %v842 = vmul.f32 %v838, %v666
      %v843 = vmul.f32 %v838, %v667
      %v844 = vmul.f32 %v838, %v668
      %v845 = vmul.f32 %v838, %v669
      %852 = vrot.lane.b32.xlu0 %v840, 99
      %v853 = vpop.permute.xlu0 %852
      %854 = vrot.lane.b32.xlu0 %v841, 99
      %v855 = vpop.permute.xlu0 %854
      %856 = vrot.lane.b32.xlu0 %v842, 99
      %v857 = vpop.permute.xlu0 %856
      %858 = vrot.lane.b32.xlu0 %v843, 99
      %v859 = vpop.permute.xlu0 %858
      %860 = vrot.lane.b32.xlu0 %v844, 99
      %v861 = vpop.permute.xlu0 %860
      %862 = vrot.lane.b32.xlu0 %v845, 99
      %v863 = vpop.permute.xlu0 %862
      %vm864 = vcmask 809984
      %v865 = vsel %vm864, %v853, %v855
      %v866 = vsel %vm864, %v855, %v857
      %v867 = vsel %vm864, %v857, %v859
      %v868 = vsel %vm864, %v859, %v861
      %v869 = vsel %vm864, %v861, %v863
      %v876 = vadd.f32 %v826, %v865
      %v877 = vadd.f32 %v827, %v866
      %v878 = vadd.f32 %v828, %v867
      %v879 = vadd.f32 %v829, %v868
      %v880 = vadd.f32 %v830, %v869
      %v881 = vadd.f32 %v831, %v863
      %s882 = scalar_lea.vmem %s1, 20
      %v883 = vld [vmem:[%s882] sm:$0xf]
      %v884 = vunpack.c.l.bf16 %v883
      %886 = vset.pattern.permute.xlu0 0
      %887 = vperm.xlu0 %886, %v884
      %v888 = vpop.permute.xlu0 %887
      %v890 = vmul.f32 %v888, %v664
      %v891 = vmul.f32 %v888, %v665
      %v892 = vmul.f32 %v888, %v666
      %v893 = vmul.f32 %v888, %v667
      %v894 = vmul.f32 %v888, %v668
      %v895 = vmul.f32 %v888, %v669
      %902 = vrot.lane.b32.xlu0 %v890, 98
      %v903 = vpop.permute.xlu0 %902
      %904 = vrot.lane.b32.xlu0 %v891, 98
      %v905 = vpop.permute.xlu0 %904
      %906 = vrot.lane.b32.xlu0 %v892, 98
      %v907 = vpop.permute.xlu0 %906
      %908 = vrot.lane.b32.xlu0 %v893, 98
      %v909 = vpop.permute.xlu0 %908
      %910 = vrot.lane.b32.xlu0 %v894, 98
      %v911 = vpop.permute.xlu0 %910
      %912 = vrot.lane.b32.xlu0 %v895, 98
      %v913 = vpop.permute.xlu0 %912
      %vm914 = vcmask 801792
      %v915 = vsel %vm914, %v903, %v905
      %v916 = vsel %vm914, %v905, %v907
      %v917 = vsel %vm914, %v907, %v909
      %v918 = vsel %vm914, %v909, %v911
      %v919 = vsel %vm914, %v911, %v913
      %v926 = vadd.f32 %v876, %v915
      %v927 = vadd.f32 %v877, %v916
      %v928 = vadd.f32 %v878, %v917
      %v929 = vadd.f32 %v879, %v918
      %v930 = vadd.f32 %v880, %v919
      %v931 = vadd.f32 %v881, %v913
      %s932 = scalar_lea.vmem %s1, 24
      %v933 = vld [vmem:[%s932] sm:$0xf]
      %v934 = vunpack.c.l.bf16 %v933
      %936 = vset.pattern.permute.xlu0 0
      %937 = vperm.xlu0 %936, %v934
      %v938 = vpop.permute.xlu0 %937
      %v940 = vperm.slane %v655, 6
      %v942 = vmul.f32 %v938, %v664
      %v943 = vmul.f32 %v938, %v665
      %v944 = vmul.f32 %v938, %v666
      %v945 = vmul.f32 %v938, %v667
      %v946 = vmul.f32 %v938, %v668
      %v947 = vmul.f32 %v938, %v669
      %v948 = vmul.f32 %v938, %v940
      %956 = vrot.lane.b32.xlu0 %v942, 72
      %v957 = vpop.permute.xlu0 %956
      %958 = vrot.lane.b32.xlu0 %v943, 72
      %v959 = vpop.permute.xlu0 %958
      %960 = vrot.lane.b32.xlu0 %v944, 72
      %v961 = vpop.permute.xlu0 %960
      %962 = vrot.lane.b32.xlu0 %v945, 72
      %v963 = vpop.permute.xlu0 %962
      %964 = vrot.lane.b32.xlu0 %v946, 72
      %v965 = vpop.permute.xlu0 %964
      %966 = vrot.lane.b32.xlu0 %v947, 72
      %v967 = vpop.permute.xlu0 %966
      %968 = vrot.lane.b32.xlu0 %v948, 72
      %v969 = vpop.permute.xlu0 %968
      %vm970 = vcmask 588800
      %v971 = vsel %vm970, %v957, %v959
      %v972 = vsel %vm970, %v959, %v961
      %v973 = vsel %vm970, %v961, %v963
      %v974 = vsel %vm970, %v963, %v965
      %v975 = vsel %vm970, %v965, %v967
      %v976 = vsel %vm970, %v967, %v969
      %v983 = vadd.f32 %v926, %v971
      %v984 = vadd.f32 %v927, %v972
      %v985 = vadd.f32 %v928, %v973
      %v986 = vadd.f32 %v929, %v974
      %v987 = vadd.f32 %v930, %v975
      %v988 = vadd.f32 %v931, %v976
      %s989 = scalar_lea.vmem %s1, 28
      %v990 = vld [vmem:[%s989] sm:$0xf]
      %v991 = vunpack.c.l.bf16 %v990
      %993 = vset.pattern.permute.xlu0 0
      %994 = vperm.xlu0 %993, %v991
      %v995 = vpop.permute.xlu0 %994
      %v997 = vmul.f32 %v995, %v664
      %v998 = vmul.f32 %v995, %v665
      %v999 = vmul.f32 %v995, %v666
      %v1000 = vmul.f32 %v995, %v667
      %v1001 = vmul.f32 %v995, %v668
      %v1002 = vmul.f32 %v995, %v669
      %v1003 = vmul.f32 %v995, %v940
      %1011 = vrot.lane.b32.xlu0 %v997, 71
      %v1012 = vpop.permute.xlu0 %1011
      %1013 = vrot.lane.b32.xlu0 %v998, 71
      %v1014 = vpop.permute.xlu0 %1013
      %1015 = vrot.lane.b32.xlu0 %v999, 71
      %v1016 = vpop.permute.xlu0 %1015
      %1017 = vrot.lane.b32.xlu0 %v1000, 71
      %v1018 = vpop.permute.xlu0 %1017
      %1019 = vrot.lane.b32.xlu0 %v1001, 71
      %v1020 = vpop.permute.xlu0 %1019
      %1021 = vrot.lane.b32.xlu0 %v1002, 71
      %v1022 = vpop.permute.xlu0 %1021
      %1023 = vrot.lane.b32.xlu0 %v1003, 71
      %v1024 = vpop.permute.xlu0 %1023
      %vm1025 = vcmask 580608
      %v1026 = vsel %vm1025, %v1012, %v1014
      %v1027 = vsel %vm1025, %v1014, %v1016
      %v1028 = vsel %vm1025, %v1016, %v1018
      %v1029 = vsel %vm1025, %v1018, %v1020
      %v1030 = vsel %vm1025, %v1020, %v1022
      %v1031 = vsel %vm1025, %v1022, %v1024
      %v1038 = vadd.f32 %v983, %v1026
      %v1039 = vadd.f32 %v984, %v1027
      %v1040 = vadd.f32 %v985, %v1028
      %v1041 = vadd.f32 %v986, %v1029
      %v1042 = vadd.f32 %v987, %v1030
      %v1043 = vadd.f32 %v988, %v1031
      %s1044 = scalar_lea.vmem %s1, 32
      %v1045 = vld [vmem:[%s1044] sm:$0xf]
      %v1046 = vunpack.c.l.bf16 %v1045
      %1048 = vset.pattern.permute.xlu0 0
      %1049 = vperm.xlu0 %1048, %v1046
      %v1050 = vpop.permute.xlu0 %1049
      %v1052 = vmul.f32 %v1050, %v664
      %v1053 = vmul.f32 %v1050, %v665
      %v1054 = vmul.f32 %v1050, %v666
      %v1055 = vmul.f32 %v1050, %v667
      %v1056 = vmul.f32 %v1050, %v668
      %v1057 = vmul.f32 %v1050, %v669
      %v1058 = vmul.f32 %v1050, %v940
      %1066 = vrot.lane.b32.xlu0 %v1052, 70
      %v1067 = vpop.permute.xlu0 %1066
      %1068 = vrot.lane.b32.xlu0 %v1053, 70
      %v1069 = vpop.permute.xlu0 %1068
      %1070 = vrot.lane.b32.xlu0 %v1054, 70
      %v1071 = vpop.permute.xlu0 %1070
      %1072 = vrot.lane.b32.xlu0 %v1055, 70
      %v1073 = vpop.permute.xlu0 %1072
      %1074 = vrot.lane.b32.xlu0 %v1056, 70
      %v1075 = vpop.permute.xlu0 %1074
      %1076 = vrot.lane.b32.xlu0 %v1057, 70
      %v1077 = vpop.permute.xlu0 %1076
      %1078 = vrot.lane.b32.xlu0 %v1058, 70
      %v1079 = vpop.permute.xlu0 %1078
      %vm1080 = vcmask 572416
      %v1081 = vsel %vm1080, %v1067, %v1069
      %v1082 = vsel %vm1080, %v1069, %v1071
      %v1083 = vsel %vm1080, %v1071, %v1073
      %v1084 = vsel %vm1080, %v1073, %v1075
      %v1085 = vsel %vm1080, %v1075, %v1077
      %v1086 = vsel %vm1080, %v1077, %v1079
      %v1093 = vadd.f32 %v1038, %v1081
      %v1094 = vadd.f32 %v1039, %v1082
      %v1095 = vadd.f32 %v1040, %v1083
      %v1096 = vadd.f32 %v1041, %v1084
      %v1097 = vadd.f32 %v1042, %v1085
      %v1098 = vadd.f32 %v1043, %v1086
      %v1099 = vmax.f32 %v1093, 0.0
      %v1100 = vmax.f32 %v1094, 0.0
      %v1101 = vmax.f32 %v1095, 0.0
      %v1102 = vmax.f32 %v1096, 0.0
      %v1103 = vmax.f32 %v1097, 0.0
      %v1104 = vmax.f32 %v1098, 0.0
      %v1105 = vld [vmem:[%s2] sm:$0xff]
      %1107 = vset.pattern.permute.xlu0 0
      %1108 = vperm.xlu0 %1107, %v1105
      %v1109 = vpop.permute.xlu0 %1108
      %v1111 = vmul.f32 %v1099, %v1109
      %v1112 = vmul.f32 %v1100, %v1109
      %v1113 = vmul.f32 %v1101, %v1109
      %v1114 = vmul.f32 %v1102, %v1109
      %v1115 = vmul.f32 %v1103, %v1109
      %v1116 = vmul.f32 %v1104, %v1109
      %v1117 = vld [vmem:[%s3] sm:$0xff]
      %1119 = vset.pattern.permute.xlu0 0
      %1120 = vperm.xlu0 %1119, %v1117
      %v1121 = vpop.permute.xlu0 %1120
      %v1123 = vadd.f32 %v1111, %v1121
      %v1124 = vadd.f32 %v1112, %v1121
      %v1125 = vadd.f32 %v1113, %v1121
      %v1126 = vadd.f32 %v1114, %v1121
      %v1127 = vadd.f32 %v1115, %v1121
      %v1128 = vadd.f32 %v1116, %v1121
      %v1129 = vld [vmem:[%s4] sm:$0xf]
      %v1130 = vld [vmem:[%s4 + $0x4] sm:$0x7]
      %v1131 = vpack.c.bf16 %v1123, %v1123
      %v1132 = vpack.c.bf16 %v1124, %v1124
      %v1133 = vpack.c.bf16 %v1125, %v1125
      %v1134 = vpack.c.bf16 %v1126, %v1126
      %v1135 = vpack.c.bf16 %v1127, %v1127
      %v1136 = vpack.c.bf16 %v1128, %v1128
      %s1137 = scalar_lea.vmem %s4, 8
      %v1138 = vld [vmem:[%s1137] sm:$0xf]
      %v1139 = vld [vmem:[%s1137 + $0x4] sm:$0x7]
      %v1142 = vunpack.c.l.b16 %v1138
      %v1143 = vunpack.c.l.b16 %v1139
      %v1144 = vpack.c.b16 %v1143, %v1142
      %1151 = vrot.lane.b32.xlu0 %v1131, 127
      %v1152 = vpop.permute.xlu0 %1151
      %1153 = vrot.lane.b32.xlu0 %v1132, 127
      %v1154 = vpop.permute.xlu0 %1153
      %1155 = vrot.lane.b32.xlu0 %v1133, 127
      %v1156 = vpop.permute.xlu0 %1155
      %1157 = vrot.lane.b32.xlu0 %v1134, 127
      %v1158 = vpop.permute.xlu0 %1157
      %1159 = vrot.lane.b32.xlu0 %v1135, 127
      %v1160 = vpop.permute.xlu0 %1159
      %1161 = vrot.lane.b32.xlu0 %v1136, 127
      %v1162 = vpop.permute.xlu0 %1161
      %vm1163 = vcmask 1039360
      %v1164 = vsel %vm1163, %v1152, %v1154
      %v1165 = vsel %vm1163, %v1154, %v1156
      %v1166 = vsel %vm1163, %v1156, %v1158
      %v1167 = vsel %vm1163, %v1158, %v1160
      %v1168 = vsel %vm1163, %v1160, %v1162
      %vm1169 = vcmask 64512
      %v1171 = vsel %vm1169, %v1144, 0
      %vm1173 = vcmask 1043456
      %v1175 = vsel %vm1173, %v1164, 0
      %v1178 = vsel %vm1173, %v1165, 0
      %v1181 = vsel %vm1173, %v1166, 0
      %v1184 = vsel %vm1173, %v1167, 0
      %v1187 = vsel %vm1173, %v1168, 0
      %v1190 = vsel %vm1173, %v1162, 0
      %1192 = vmatpush.bf16.msra.mxu0 0
      %1193 = vmatpush.bf16.msra.mxu0 0
      %1194 = vmatpush.bf16.msra.mxu0 0
      %1195 = vmatpush.bf16.msra.mxu0 0
      %1196 = vmatpush.bf16.msra.mxu0 0
      %1197 = vmatpush.bf16.msra.mxu0 0
      %1198 = vmatpush.bf16.msra.mxu0 0
      %1199 = vmatpush.bf16.msra.mxu0 %v1175
      %1200 = vmatmul.bf16.gmra.mxu0 %v1171
      %v1201 = vpop.f32.mrf.mxu0
      %v1202 = vadd.f32 0.0, %v1201
      %v1203 = vpop.f32.mrf.mxu0
      %v1204 = vadd.f32 0.0, %v1203
      %1205 = vdwg.mxu0
      %1206 = vmatpush.bf16.msra.mxu0 0
      %1207 = vmatpush.bf16.msra.mxu0 0
      %1208 = vmatpush.bf16.msra.mxu0 0
      %1209 = vmatpush.bf16.msra.mxu0 0
      %1210 = vmatpush.bf16.msra.mxu0 0
      %1211 = vmatpush.bf16.msra.mxu0 0
      %1212 = vmatpush.bf16.msra.mxu0 0
      %1213 = vmatpush.bf16.msra.mxu0 %v1178
      %1214 = vmatmul.bf16.gmra.mxu0 %v1171
      %v1215 = vpop.f32.mrf.mxu0
      %v1216 = vadd.f32 0.0, %v1215
      %v1217 = vpop.f32.mrf.mxu0
      %v1218 = vadd.f32 0.0, %v1217
      %1219 = vdwg.mxu0
      %1220 = vmatpush.bf16.msra.mxu0 0
      %1221 = vmatpush.bf16.msra.mxu0 0
      %1222 = vmatpush.bf16.msra.mxu0 0
      %1223 = vmatpush.bf16.msra.mxu0 0
      %1224 = vmatpush.bf16.msra.mxu0 0
      %1225 = vmatpush.bf16.msra.mxu0 0
      %1226 = vmatpush.bf16.msra.mxu0 0
      %1227 = vmatpush.bf16.msra.mxu0 %v1181
      %1228 = vmatmul.bf16.gmra.mxu0 %v1171
      %v1229 = vpop.f32.mrf.mxu0
      %v1230 = vadd.f32 0.0, %v1229
      %v1231 = vpop.f32.mrf.mxu0
      %v1232 = vadd.f32 0.0, %v1231
      %1233 = vdwg.mxu0
      %1234 = vmatpush.bf16.msra.mxu0 0
      %1235 = vmatpush.bf16.msra.mxu0 0
      %1236 = vmatpush.bf16.msra.mxu0 0
      %1237 = vmatpush.bf16.msra.mxu0 0
      %1238 = vmatpush.bf16.msra.mxu0 0
      %1239 = vmatpush.bf16.msra.mxu0 0
      %1240 = vmatpush.bf16.msra.mxu0 0
      %1241 = vmatpush.bf16.msra.mxu0 %v1184
      %1242 = vmatmul.bf16.gmra.mxu0 %v1171
      %v1243 = vpop.f32.mrf.mxu0
      %v1244 = vadd.f32 0.0, %v1243
      %v1245 = vpop.f32.mrf.mxu0
      %v1246 = vadd.f32 0.0, %v1245
      %1247 = vdwg.mxu0
      %1248 = vmatpush.bf16.msra.mxu0 0
      %1249 = vmatpush.bf16.msra.mxu0 0
      %1250 = vmatpush.bf16.msra.mxu0 0
      %1251 = vmatpush.bf16.msra.mxu0 0
      %1252 = vmatpush.bf16.msra.mxu0 0
      %1253 = vmatpush.bf16.msra.mxu0 0
      %1254 = vmatpush.bf16.msra.mxu0 0
      %1255 = vmatpush.bf16.msra.mxu0 %v1187
      %1256 = vmatmul.bf16.gmra.mxu0 %v1171
      %v1257 = vpop.f32.mrf.mxu0
      %v1258 = vadd.f32 0.0, %v1257
      %v1259 = vpop.f32.mrf.mxu0
      %v1260 = vadd.f32 0.0, %v1259
      %1261 = vdwg.mxu0
      %1262 = vmatpush.bf16.msra.mxu0 0
      %1263 = vmatpush.bf16.msra.mxu0 0
      %1264 = vmatpush.bf16.msra.mxu0 0
      %1265 = vmatpush.bf16.msra.mxu0 0
      %1266 = vmatpush.bf16.msra.mxu0 0
      %1267 = vmatpush.bf16.msra.mxu0 0
      %1268 = vmatpush.bf16.msra.mxu0 0
      %1269 = vmatpush.bf16.msra.mxu0 %v1190
      %1270 = vmatmul.bf16.gmra.mxu0 %v1171
      %v1271 = vpop.f32.mrf.mxu0
      %v1272 = vadd.f32 0.0, %v1271
      %v1273 = vpop.f32.mrf.mxu0
      %v1274 = vadd.f32 0.0, %v1273
      %1275 = vdwg.mxu0
      %v1278 = vunpack.c.l.b16 %v1129
      %v1279 = vunpack.c.l.b16 %v1130
      %v1280 = vpack.c.b16 %v1279, %v1278
      %v1282 = vsel %vm1169, %v1280, 0
      %v1285 = vsel %vm1173, %v1131, 0
      %v1288 = vsel %vm1173, %v1132, 0
      %v1291 = vsel %vm1173, %v1133, 0
      %v1294 = vsel %vm1173, %v1134, 0
      %v1297 = vsel %vm1173, %v1135, 0
      %v1300 = vsel %vm1173, %v1136, 0
      %1302 = vmatpush.bf16.msra.mxu0 0
      %1303 = vmatpush.bf16.msra.mxu0 0
      %1304 = vmatpush.bf16.msra.mxu0 0
      %1305 = vmatpush.bf16.msra.mxu0 0
      %1306 = vmatpush.bf16.msra.mxu0 0
      %1307 = vmatpush.bf16.msra.mxu0 0
      %1308 = vmatpush.bf16.msra.mxu0 0
      %1309 = vmatpush.bf16.msra.mxu0 %v1285
      %1310 = vmatmul.bf16.gmra.mxu0 %v1282
      %v1311 = vpop.f32.mrf.mxu0
      %v1312 = vadd.f32 %v1202, %v1311
      %v1313 = vpop.f32.mrf.mxu0
      %v1314 = vadd.f32 %v1204, %v1313
      %1315 = vdwg.mxu0
      %1316 = vmatpush.bf16.msra.mxu0 0
      %1317 = vmatpush.bf16.msra.mxu0 0
      %1318 = vmatpush.bf16.msra.mxu0 0
      %1319 = vmatpush.bf16.msra.mxu0 0
      %1320 = vmatpush.bf16.msra.mxu0 0
      %1321 = vmatpush.bf16.msra.mxu0 0
      %1322 = vmatpush.bf16.msra.mxu0 0
      %1323 = vmatpush.bf16.msra.mxu0 %v1288
      %1324 = vmatmul.bf16.gmra.mxu0 %v1282
      %v1325 = vpop.f32.mrf.mxu0
      %v1326 = vadd.f32 %v1216, %v1325
      %v1327 = vpop.f32.mrf.mxu0
      %v1328 = vadd.f32 %v1218, %v1327
      %1329 = vdwg.mxu0
      %1330 = vmatpush.bf16.msra.mxu0 0
      %1331 = vmatpush.bf16.msra.mxu0 0
      %1332 = vmatpush.bf16.msra.mxu0 0
      %1333 = vmatpush.bf16.msra.mxu0 0
      %1334 = vmatpush.bf16.msra.mxu0 0
      %1335 = vmatpush.bf16.msra.mxu0 0
      %1336 = vmatpush.bf16.msra.mxu0 0
      %1337 = vmatpush.bf16.msra.mxu0 %v1291
      %1338 = vmatmul.bf16.gmra.mxu0 %v1282
      %v1339 = vpop.f32.mrf.mxu0
      %v1340 = vadd.f32 %v1230, %v1339
      %v1341 = vpop.f32.mrf.mxu0
      %v1342 = vadd.f32 %v1232, %v1341
      %1343 = vdwg.mxu0
      %1344 = vmatpush.bf16.msra.mxu0 0
      %1345 = vmatpush.bf16.msra.mxu0 0
      %1346 = vmatpush.bf16.msra.mxu0 0
      %1347 = vmatpush.bf16.msra.mxu0 0
      %1348 = vmatpush.bf16.msra.mxu0 0
      %1349 = vmatpush.bf16.msra.mxu0 0
      %1350 = vmatpush.bf16.msra.mxu0 0
      %1351 = vmatpush.bf16.msra.mxu0 %v1294
      %1352 = vmatmul.bf16.gmra.mxu0 %v1282
      %v1353 = vpop.f32.mrf.mxu0
      %v1354 = vadd.f32 %v1244, %v1353
      %v1355 = vpop.f32.mrf.mxu0
      %v1356 = vadd.f32 %v1246, %v1355
      %1357 = vdwg.mxu0
      %1358 = vmatpush.bf16.msra.mxu0 0
      %1359 = vmatpush.bf16.msra.mxu0 0
      %1360 = vmatpush.bf16.msra.mxu0 0
      %1361 = vmatpush.bf16.msra.mxu0 0
      %1362 = vmatpush.bf16.msra.mxu0 0
      %1363 = vmatpush.bf16.msra.mxu0 0
      %1364 = vmatpush.bf16.msra.mxu0 0
      %1365 = vmatpush.bf16.msra.mxu0 %v1297
      %1366 = vmatmul.bf16.gmra.mxu0 %v1282
      %v1367 = vpop.f32.mrf.mxu0
      %v1368 = vadd.f32 %v1258, %v1367
      %v1369 = vpop.f32.mrf.mxu0
      %v1370 = vadd.f32 %v1260, %v1369
      %1371 = vdwg.mxu0
      %1372 = vmatpush.bf16.msra.mxu0 0
      %1373 = vmatpush.bf16.msra.mxu0 0
      %1374 = vmatpush.bf16.msra.mxu0 0
      %1375 = vmatpush.bf16.msra.mxu0 0
      %1376 = vmatpush.bf16.msra.mxu0 0
      %1377 = vmatpush.bf16.msra.mxu0 0
      %1378 = vmatpush.bf16.msra.mxu0 0
      %1379 = vmatpush.bf16.msra.mxu0 %v1300
      %1380 = vmatmul.bf16.gmra.mxu0 %v1282
      %v1381 = vpop.f32.mrf.mxu0
      %v1382 = vadd.f32 %v1272, %v1381
      %v1383 = vpop.f32.mrf.mxu0
      %v1384 = vadd.f32 %v1274, %v1383
      %1385 = vdwg.mxu0
      %s1386 = scalar_lea.vmem %s4, 16
      %v1387 = vld [vmem:[%s1386] sm:$0xf]
      %v1388 = vld [vmem:[%s1386 + $0x4] sm:$0x7]
      %v1391 = vunpack.c.l.b16 %v1387
      %v1392 = vunpack.c.l.b16 %v1388
      %v1393 = vpack.c.b16 %v1392, %v1391
      %1394 = vrot.lane.b32.xlu0 %v1131, 126
      %v1395 = vpop.permute.xlu0 %1394
      %1396 = vrot.lane.b32.xlu0 %v1132, 126
      %v1397 = vpop.permute.xlu0 %1396
      %1398 = vrot.lane.b32.xlu0 %v1133, 126
      %v1399 = vpop.permute.xlu0 %1398
      %1400 = vrot.lane.b32.xlu0 %v1134, 126
      %v1401 = vpop.permute.xlu0 %1400
      %1402 = vrot.lane.b32.xlu0 %v1135, 126
      %v1403 = vpop.permute.xlu0 %1402
      %1404 = vrot.lane.b32.xlu0 %v1136, 126
      %v1405 = vpop.permute.xlu0 %1404
      %vm1406 = vcmask 1031168
      %v1407 = vsel %vm1406, %v1395, %v1397
      %v1408 = vsel %vm1406, %v1397, %v1399
      %v1409 = vsel %vm1406, %v1399, %v1401
      %v1410 = vsel %vm1406, %v1401, %v1403
      %v1411 = vsel %vm1406, %v1403, %v1405
      %v1413 = vsel %vm1169, %v1393, 0
      %v1416 = vsel %vm1173, %v1407, 0
      %v1419 = vsel %vm1173, %v1408, 0
      %v1422 = vsel %vm1173, %v1409, 0
      %v1425 = vsel %vm1173, %v1410, 0
      %v1428 = vsel %vm1173, %v1411, 0
      %v1431 = vsel %vm1173, %v1405, 0
      %1433 = vmatpush.bf16.msra.mxu0 0
      %1434 = vmatpush.bf16.msra.mxu0 0
      %1435 = vmatpush.bf16.msra.mxu0 0
      %1436 = vmatpush.bf16.msra.mxu0 0
      %1437 = vmatpush.bf16.msra.mxu0 0
      %1438 = vmatpush.bf16.msra.mxu0 0
      %1439 = vmatpush.bf16.msra.mxu0 0
      %1440 = vmatpush.bf16.msra.mxu0 %v1416
      %1441 = vmatmul.bf16.gmra.mxu0 %v1413
      %v1442 = vpop.f32.mrf.mxu0
      %v1443 = vadd.f32 0.0, %v1442
      %v1444 = vpop.f32.mrf.mxu0
      %v1445 = vadd.f32 0.0, %v1444
      %1446 = vdwg.mxu0
      %1447 = vmatpush.bf16.msra.mxu0 0
      %1448 = vmatpush.bf16.msra.mxu0 0
      %1449 = vmatpush.bf16.msra.mxu0 0
      %1450 = vmatpush.bf16.msra.mxu0 0
      %1451 = vmatpush.bf16.msra.mxu0 0
      %1452 = vmatpush.bf16.msra.mxu0 0
      %1453 = vmatpush.bf16.msra.mxu0 0
      %1454 = vmatpush.bf16.msra.mxu0 %v1419
      %1455 = vmatmul.bf16.gmra.mxu0 %v1413
      %v1456 = vpop.f32.mrf.mxu0
      %v1457 = vadd.f32 0.0, %v1456
      %v1458 = vpop.f32.mrf.mxu0
      %v1459 = vadd.f32 0.0, %v1458
      %1460 = vdwg.mxu0
      %1461 = vmatpush.bf16.msra.mxu0 0
      %1462 = vmatpush.bf16.msra.mxu0 0
      %1463 = vmatpush.bf16.msra.mxu0 0
      %1464 = vmatpush.bf16.msra.mxu0 0
      %1465 = vmatpush.bf16.msra.mxu0 0
      %1466 = vmatpush.bf16.msra.mxu0 0
      %1467 = vmatpush.bf16.msra.mxu0 0
      %1468 = vmatpush.bf16.msra.mxu0 %v1422
      %1469 = vmatmul.bf16.gmra.mxu0 %v1413
      %v1470 = vpop.f32.mrf.mxu0
      %v1471 = vadd.f32 0.0, %v1470
      %v1472 = vpop.f32.mrf.mxu0
      %v1473 = vadd.f32 0.0, %v1472
      %1474 = vdwg.mxu0
      %1475 = vmatpush.bf16.msra.mxu0 0
      %1476 = vmatpush.bf16.msra.mxu0 0
      %1477 = vmatpush.bf16.msra.mxu0 0
      %1478 = vmatpush.bf16.msra.mxu0 0
      %1479 = vmatpush.bf16.msra.mxu0 0
      %1480 = vmatpush.bf16.msra.mxu0 0
      %1481 = vmatpush.bf16.msra.mxu0 0
      %1482 = vmatpush.bf16.msra.mxu0 %v1425
      %1483 = vmatmul.bf16.gmra.mxu0 %v1413
      %v1484 = vpop.f32.mrf.mxu0
      %v1485 = vadd.f32 0.0, %v1484
      %v1486 = vpop.f32.mrf.mxu0
      %v1487 = vadd.f32 0.0, %v1486
      %1488 = vdwg.mxu0
      %1489 = vmatpush.bf16.msra.mxu0 0
      %1490 = vmatpush.bf16.msra.mxu0 0
      %1491 = vmatpush.bf16.msra.mxu0 0
      %1492 = vmatpush.bf16.msra.mxu0 0
      %1493 = vmatpush.bf16.msra.mxu0 0
      %1494 = vmatpush.bf16.msra.mxu0 0
      %1495 = vmatpush.bf16.msra.mxu0 0
      %1496 = vmatpush.bf16.msra.mxu0 %v1428
      %1497 = vmatmul.bf16.gmra.mxu0 %v1413
      %v1498 = vpop.f32.mrf.mxu0
      %v1499 = vadd.f32 0.0, %v1498
      %v1500 = vpop.f32.mrf.mxu0
      %v1501 = vadd.f32 0.0, %v1500
      %1502 = vdwg.mxu0
      %1503 = vmatpush.bf16.msra.mxu0 0
      %1504 = vmatpush.bf16.msra.mxu0 0
      %1505 = vmatpush.bf16.msra.mxu0 0
      %1506 = vmatpush.bf16.msra.mxu0 0
      %1507 = vmatpush.bf16.msra.mxu0 0
      %1508 = vmatpush.bf16.msra.mxu0 0
      %1509 = vmatpush.bf16.msra.mxu0 0
      %1510 = vmatpush.bf16.msra.mxu0 %v1431
      %1511 = vmatmul.bf16.gmra.mxu0 %v1413
      %v1512 = vpop.f32.mrf.mxu0
      %v1513 = vadd.f32 0.0, %v1512
      %v1514 = vpop.f32.mrf.mxu0
      %v1515 = vadd.f32 0.0, %v1514
      %1516 = vdwg.mxu0
      %v1517 = vadd.f32 %v1312, %v1443
      %v1518 = vadd.f32 %v1326, %v1457
      %v1519 = vadd.f32 %v1340, %v1471
      %v1520 = vadd.f32 %v1354, %v1485
      %v1521 = vadd.f32 %v1368, %v1499
      %v1522 = vadd.f32 %v1382, %v1513
      %v1523 = vadd.f32 %v1314, %v1445
      %v1524 = vadd.f32 %v1328, %v1459
      %v1525 = vadd.f32 %v1342, %v1473
      %v1526 = vadd.f32 %v1356, %v1487
      %v1527 = vadd.f32 %v1370, %v1501
      %v1528 = vadd.f32 %v1384, %v1515
      %s1529 = scalar_lea.vmem %s4, 24
      %v1530 = vld [vmem:[%s1529] sm:$0xf]
      %v1531 = vld [vmem:[%s1529 + $0x4] sm:$0x7]
      %v1534 = vunpack.c.l.b16 %v1530
      %v1535 = vunpack.c.l.b16 %v1531
      %v1536 = vpack.c.b16 %v1535, %v1534
      %1537 = vrot.lane.b32.xlu0 %v1131, 100
      %v1538 = vpop.permute.xlu0 %1537
      %1539 = vrot.lane.b32.xlu0 %v1132, 100
      %v1540 = vpop.permute.xlu0 %1539
      %1541 = vrot.lane.b32.xlu0 %v1133, 100
      %v1542 = vpop.permute.xlu0 %1541
      %1543 = vrot.lane.b32.xlu0 %v1134, 100
      %v1544 = vpop.permute.xlu0 %1543
      %1545 = vrot.lane.b32.xlu0 %v1135, 100
      %v1546 = vpop.permute.xlu0 %1545
      %1547 = vrot.lane.b32.xlu0 %v1136, 100
      %v1548 = vpop.permute.xlu0 %1547
      %vm1549 = vcmask 818176
      %v1550 = vsel %vm1549, %v1538, %v1540
      %v1551 = vsel %vm1549, %v1540, %v1542
      %v1552 = vsel %vm1549, %v1542, %v1544
      %v1553 = vsel %vm1549, %v1544, %v1546
      %v1554 = vsel %vm1549, %v1546, %v1548
      %v1556 = vsel %vm1169, %v1536, 0
      %v1559 = vsel %vm1173, %v1550, 0
      %v1562 = vsel %vm1173, %v1551, 0
      %v1565 = vsel %vm1173, %v1552, 0
      %v1568 = vsel %vm1173, %v1553, 0
      %v1571 = vsel %vm1173, %v1554, 0
      %v1574 = vsel %vm1173, %v1548, 0
      %1576 = vmatpush.bf16.msra.mxu0 0
      %1577 = vmatpush.bf16.msra.mxu0 0
      %1578 = vmatpush.bf16.msra.mxu0 0
      %1579 = vmatpush.bf16.msra.mxu0 0
      %1580 = vmatpush.bf16.msra.mxu0 0
      %1581 = vmatpush.bf16.msra.mxu0 0
      %1582 = vmatpush.bf16.msra.mxu0 0
      %1583 = vmatpush.bf16.msra.mxu0 %v1559
      %1584 = vmatmul.bf16.gmra.mxu0 %v1556
      %v1585 = vpop.f32.mrf.mxu0
      %v1586 = vadd.f32 0.0, %v1585
      %v1587 = vpop.f32.mrf.mxu0
      %v1588 = vadd.f32 0.0, %v1587
      %1589 = vdwg.mxu0
      %1590 = vmatpush.bf16.msra.mxu0 0
      %1591 = vmatpush.bf16.msra.mxu0 0
      %1592 = vmatpush.bf16.msra.mxu0 0
      %1593 = vmatpush.bf16.msra.mxu0 0
      %1594 = vmatpush.bf16.msra.mxu0 0
      %1595 = vmatpush.bf16.msra.mxu0 0
      %1596 = vmatpush.bf16.msra.mxu0 0
      %1597 = vmatpush.bf16.msra.mxu0 %v1562
      %1598 = vmatmul.bf16.gmra.mxu0 %v1556
      %v1599 = vpop.f32.mrf.mxu0
      %v1600 = vadd.f32 0.0, %v1599
      %v1601 = vpop.f32.mrf.mxu0
      %v1602 = vadd.f32 0.0, %v1601
      %1603 = vdwg.mxu0
      %1604 = vmatpush.bf16.msra.mxu0 0
      %1605 = vmatpush.bf16.msra.mxu0 0
      %1606 = vmatpush.bf16.msra.mxu0 0
      %1607 = vmatpush.bf16.msra.mxu0 0
      %1608 = vmatpush.bf16.msra.mxu0 0
      %1609 = vmatpush.bf16.msra.mxu0 0
      %1610 = vmatpush.bf16.msra.mxu0 0
      %1611 = vmatpush.bf16.msra.mxu0 %v1565
      %1612 = vmatmul.bf16.gmra.mxu0 %v1556
      %v1613 = vpop.f32.mrf.mxu0
      %v1614 = vadd.f32 0.0, %v1613
      %v1615 = vpop.f32.mrf.mxu0
      %v1616 = vadd.f32 0.0, %v1615
      %1617 = vdwg.mxu0
      %1618 = vmatpush.bf16.msra.mxu0 0
      %1619 = vmatpush.bf16.msra.mxu0 0
      %1620 = vmatpush.bf16.msra.mxu0 0
      %1621 = vmatpush.bf16.msra.mxu0 0
      %1622 = vmatpush.bf16.msra.mxu0 0
      %1623 = vmatpush.bf16.msra.mxu0 0
      %1624 = vmatpush.bf16.msra.mxu0 0
      %1625 = vmatpush.bf16.msra.mxu0 %v1568
      %1626 = vmatmul.bf16.gmra.mxu0 %v1556
      %v1627 = vpop.f32.mrf.mxu0
      %v1628 = vadd.f32 0.0, %v1627
      %v1629 = vpop.f32.mrf.mxu0
      %v1630 = vadd.f32 0.0, %v1629
      %1631 = vdwg.mxu0
      %1632 = vmatpush.bf16.msra.mxu0 0
      %1633 = vmatpush.bf16.msra.mxu0 0
      %1634 = vmatpush.bf16.msra.mxu0 0
      %1635 = vmatpush.bf16.msra.mxu0 0
      %1636 = vmatpush.bf16.msra.mxu0 0
      %1637 = vmatpush.bf16.msra.mxu0 0
      %1638 = vmatpush.bf16.msra.mxu0 0
      %1639 = vmatpush.bf16.msra.mxu0 %v1571
      %1640 = vmatmul.bf16.gmra.mxu0 %v1556
      %v1641 = vpop.f32.mrf.mxu0
      %v1642 = vadd.f32 0.0, %v1641
      %v1643 = vpop.f32.mrf.mxu0
      %v1644 = vadd.f32 0.0, %v1643
      %1645 = vdwg.mxu0
      %1646 = vmatpush.bf16.msra.mxu0 0
      %1647 = vmatpush.bf16.msra.mxu0 0
      %1648 = vmatpush.bf16.msra.mxu0 0
      %1649 = vmatpush.bf16.msra.mxu0 0
      %1650 = vmatpush.bf16.msra.mxu0 0
      %1651 = vmatpush.bf16.msra.mxu0 0
      %1652 = vmatpush.bf16.msra.mxu0 0
      %1653 = vmatpush.bf16.msra.mxu0 %v1574
      %1654 = vmatmul.bf16.gmra.mxu0 %v1556
      %v1655 = vpop.f32.mrf.mxu0
      %v1656 = vadd.f32 0.0, %v1655
      %v1657 = vpop.f32.mrf.mxu0
      %v1658 = vadd.f32 0.0, %v1657
      %1659 = vdwg.mxu0
      %v1660 = vadd.f32 %v1517, %v1586
      %v1661 = vadd.f32 %v1518, %v1600
      %v1662 = vadd.f32 %v1519, %v1614
      %v1663 = vadd.f32 %v1520, %v1628
      %v1664 = vadd.f32 %v1521, %v1642
      %v1665 = vadd.f32 %v1522, %v1656
      %v1666 = vadd.f32 %v1523, %v1588
      %v1667 = vadd.f32 %v1524, %v1602
      %v1668 = vadd.f32 %v1525, %v1616
      %v1669 = vadd.f32 %v1526, %v1630
      %v1670 = vadd.f32 %v1527, %v1644
      %v1671 = vadd.f32 %v1528, %v1658
      %s1672 = scalar_lea.vmem %s4, 32
      %v1673 = vld [vmem:[%s1672] sm:$0xf]
      %v1674 = vld [vmem:[%s1672 + $0x4] sm:$0x7]
      %v1677 = vunpack.c.l.b16 %v1673
      %v1678 = vunpack.c.l.b16 %v1674
      %v1679 = vpack.c.b16 %v1678, %v1677
      %1680 = vrot.lane.b32.xlu0 %v1131, 99
      %v1681 = vpop.permute.xlu0 %1680
      %1682 = vrot.lane.b32.xlu0 %v1132, 99
      %v1683 = vpop.permute.xlu0 %1682
      %1684 = vrot.lane.b32.xlu0 %v1133, 99
      %v1685 = vpop.permute.xlu0 %1684
      %1686 = vrot.lane.b32.xlu0 %v1134, 99
      %v1687 = vpop.permute.xlu0 %1686
      %1688 = vrot.lane.b32.xlu0 %v1135, 99
      %v1689 = vpop.permute.xlu0 %1688
      %1690 = vrot.lane.b32.xlu0 %v1136, 99
      %v1691 = vpop.permute.xlu0 %1690
      %vm1692 = vcmask 809984
      %v1693 = vsel %vm1692, %v1681, %v1683
      %v1694 = vsel %vm1692, %v1683, %v1685
      %v1695 = vsel %vm1692, %v1685, %v1687
      %v1696 = vsel %vm1692, %v1687, %v1689
      %v1697 = vsel %vm1692, %v1689, %v1691
      %v1699 = vsel %vm1169, %v1679, 0
      %v1702 = vsel %vm1173, %v1693, 0
      %v1705 = vsel %vm1173, %v1694, 0
      %v1708 = vsel %vm1173, %v1695, 0
      %v1711 = vsel %vm1173, %v1696, 0
      %v1714 = vsel %vm1173, %v1697, 0
      %v1717 = vsel %vm1173, %v1691, 0
      %1719 = vmatpush.bf16.msra.mxu0 0
      %1720 = vmatpush.bf16.msra.mxu0 0
      %1721 = vmatpush.bf16.msra.mxu0 0
      %1722 = vmatpush.bf16.msra.mxu0 0
      %1723 = vmatpush.bf16.msra.mxu0 0
      %1724 = vmatpush.bf16.msra.mxu0 0
      %1725 = vmatpush.bf16.msra.mxu0 0
      %1726 = vmatpush.bf16.msra.mxu0 %v1702
      %1727 = vmatmul.bf16.gmra.mxu0 %v1699
      %v1728 = vpop.f32.mrf.mxu0
      %v1729 = vadd.f32 0.0, %v1728
      %v1730 = vpop.f32.mrf.mxu0
      %v1731 = vadd.f32 0.0, %v1730
      %1732 = vdwg.mxu0
      %1733 = vmatpush.bf16.msra.mxu0 0
      %1734 = vmatpush.bf16.msra.mxu0 0
      %1735 = vmatpush.bf16.msra.mxu0 0
      %1736 = vmatpush.bf16.msra.mxu0 0
      %1737 = vmatpush.bf16.msra.mxu0 0
      %1738 = vmatpush.bf16.msra.mxu0 0
      %1739 = vmatpush.bf16.msra.mxu0 0
      %1740 = vmatpush.bf16.msra.mxu0 %v1705
      %1741 = vmatmul.bf16.gmra.mxu0 %v1699
      %v1742 = vpop.f32.mrf.mxu0
      %v1743 = vadd.f32 0.0, %v1742
      %v1744 = vpop.f32.mrf.mxu0
      %v1745 = vadd.f32 0.0, %v1744
      %1746 = vdwg.mxu0
      %1747 = vmatpush.bf16.msra.mxu0 0
      %1748 = vmatpush.bf16.msra.mxu0 0
      %1749 = vmatpush.bf16.msra.mxu0 0
      %1750 = vmatpush.bf16.msra.mxu0 0
      %1751 = vmatpush.bf16.msra.mxu0 0
      %1752 = vmatpush.bf16.msra.mxu0 0
      %1753 = vmatpush.bf16.msra.mxu0 0
      %1754 = vmatpush.bf16.msra.mxu0 %v1708
      %1755 = vmatmul.bf16.gmra.mxu0 %v1699
      %v1756 = vpop.f32.mrf.mxu0
      %v1757 = vadd.f32 0.0, %v1756
      %v1758 = vpop.f32.mrf.mxu0
      %v1759 = vadd.f32 0.0, %v1758
      %1760 = vdwg.mxu0
      %1761 = vmatpush.bf16.msra.mxu0 0
      %1762 = vmatpush.bf16.msra.mxu0 0
      %1763 = vmatpush.bf16.msra.mxu0 0
      %1764 = vmatpush.bf16.msra.mxu0 0
      %1765 = vmatpush.bf16.msra.mxu0 0
      %1766 = vmatpush.bf16.msra.mxu0 0
      %1767 = vmatpush.bf16.msra.mxu0 0
      %1768 = vmatpush.bf16.msra.mxu0 %v1711
      %1769 = vmatmul.bf16.gmra.mxu0 %v1699
      %v1770 = vpop.f32.mrf.mxu0
      %v1771 = vadd.f32 0.0, %v1770
      %v1772 = vpop.f32.mrf.mxu0
      %v1773 = vadd.f32 0.0, %v1772
      %1774 = vdwg.mxu0
      %1775 = vmatpush.bf16.msra.mxu0 0
      %1776 = vmatpush.bf16.msra.mxu0 0
      %1777 = vmatpush.bf16.msra.mxu0 0
      %1778 = vmatpush.bf16.msra.mxu0 0
      %1779 = vmatpush.bf16.msra.mxu0 0
      %1780 = vmatpush.bf16.msra.mxu0 0
      %1781 = vmatpush.bf16.msra.mxu0 0
      %1782 = vmatpush.bf16.msra.mxu0 %v1714
      %1783 = vmatmul.bf16.gmra.mxu0 %v1699
      %v1784 = vpop.f32.mrf.mxu0
      %v1785 = vadd.f32 0.0, %v1784
      %v1786 = vpop.f32.mrf.mxu0
      %v1787 = vadd.f32 0.0, %v1786
      %1788 = vdwg.mxu0
      %1789 = vmatpush.bf16.msra.mxu0 0
      %1790 = vmatpush.bf16.msra.mxu0 0
      %1791 = vmatpush.bf16.msra.mxu0 0
      %1792 = vmatpush.bf16.msra.mxu0 0
      %1793 = vmatpush.bf16.msra.mxu0 0
      %1794 = vmatpush.bf16.msra.mxu0 0
      %1795 = vmatpush.bf16.msra.mxu0 0
      %1796 = vmatpush.bf16.msra.mxu0 %v1717
      %1797 = vmatmul.bf16.gmra.mxu0 %v1699
      %v1798 = vpop.f32.mrf.mxu0
      %v1799 = vadd.f32 0.0, %v1798
      %v1800 = vpop.f32.mrf.mxu0
      %v1801 = vadd.f32 0.0, %v1800
      %1802 = vdwg.mxu0
      %v1803 = vadd.f32 %v1660, %v1729
      %v1804 = vadd.f32 %v1661, %v1743
      %v1805 = vadd.f32 %v1662, %v1757
      %v1806 = vadd.f32 %v1663, %v1771
      %v1807 = vadd.f32 %v1664, %v1785
      %v1808 = vadd.f32 %v1665, %v1799
      %v1809 = vadd.f32 %v1666, %v1731
      %v1810 = vadd.f32 %v1667, %v1745
      %v1811 = vadd.f32 %v1668, %v1759
      %v1812 = vadd.f32 %v1669, %v1773
      %v1813 = vadd.f32 %v1670, %v1787
      %v1814 = vadd.f32 %v1671, %v1801
      %s1815 = scalar_lea.vmem %s4, 40
      %v1816 = vld [vmem:[%s1815] sm:$0xf]
      %v1817 = vld [vmem:[%s1815 + $0x4] sm:$0x7]
      %v1820 = vunpack.c.l.b16 %v1816
      %v1821 = vunpack.c.l.b16 %v1817
      %v1822 = vpack.c.b16 %v1821, %v1820
      %1823 = vrot.lane.b32.xlu0 %v1131, 98
      %v1824 = vpop.permute.xlu0 %1823
      %1825 = vrot.lane.b32.xlu0 %v1132, 98
      %v1826 = vpop.permute.xlu0 %1825
      %1827 = vrot.lane.b32.xlu0 %v1133, 98
      %v1828 = vpop.permute.xlu0 %1827
      %1829 = vrot.lane.b32.xlu0 %v1134, 98
      %v1830 = vpop.permute.xlu0 %1829
      %1831 = vrot.lane.b32.xlu0 %v1135, 98
      %v1832 = vpop.permute.xlu0 %1831
      %1833 = vrot.lane.b32.xlu0 %v1136, 98
      %v1834 = vpop.permute.xlu0 %1833
      %vm1835 = vcmask 801792
      %v1836 = vsel %vm1835, %v1824, %v1826
      %v1837 = vsel %vm1835, %v1826, %v1828
      %v1838 = vsel %vm1835, %v1828, %v1830
      %v1839 = vsel %vm1835, %v1830, %v1832
      %v1840 = vsel %vm1835, %v1832, %v1834
      %v1842 = vsel %vm1169, %v1822, 0
      %v1845 = vsel %vm1173, %v1836, 0
      %v1848 = vsel %vm1173, %v1837, 0
      %v1851 = vsel %vm1173, %v1838, 0
      %v1854 = vsel %vm1173, %v1839, 0
      %v1857 = vsel %vm1173, %v1840, 0
      %v1860 = vsel %vm1173, %v1834, 0
      %1862 = vmatpush.bf16.msra.mxu0 0
      %1863 = vmatpush.bf16.msra.mxu0 0
      %1864 = vmatpush.bf16.msra.mxu0 0
      %1865 = vmatpush.bf16.msra.mxu0 0
      %1866 = vmatpush.bf16.msra.mxu0 0
      %1867 = vmatpush.bf16.msra.mxu0 0
      %1868 = vmatpush.bf16.msra.mxu0 0
      %1869 = vmatpush.bf16.msra.mxu0 %v1845
      %1870 = vmatmul.bf16.gmra.mxu0 %v1842
      %v1871 = vpop.f32.mrf.mxu0
      %v1872 = vadd.f32 0.0, %v1871
      %v1873 = vpop.f32.mrf.mxu0
      %v1874 = vadd.f32 0.0, %v1873
      %1875 = vdwg.mxu0
      %1876 = vmatpush.bf16.msra.mxu0 0
      %1877 = vmatpush.bf16.msra.mxu0 0
      %1878 = vmatpush.bf16.msra.mxu0 0
      %1879 = vmatpush.bf16.msra.mxu0 0
      %1880 = vmatpush.bf16.msra.mxu0 0
      %1881 = vmatpush.bf16.msra.mxu0 0
      %1882 = vmatpush.bf16.msra.mxu0 0
      %1883 = vmatpush.bf16.msra.mxu0 %v1848
      %1884 = vmatmul.bf16.gmra.mxu0 %v1842
      %v1885 = vpop.f32.mrf.mxu0
      %v1886 = vadd.f32 0.0, %v1885
      %v1887 = vpop.f32.mrf.mxu0
      %v1888 = vadd.f32 0.0, %v1887
      %1889 = vdwg.mxu0
      %1890 = vmatpush.bf16.msra.mxu0 0
      %1891 = vmatpush.bf16.msra.mxu0 0
      %1892 = vmatpush.bf16.msra.mxu0 0
      %1893 = vmatpush.bf16.msra.mxu0 0
      %1894 = vmatpush.bf16.msra.mxu0 0
      %1895 = vmatpush.bf16.msra.mxu0 0
      %1896 = vmatpush.bf16.msra.mxu0 0
      %1897 = vmatpush.bf16.msra.mxu0 %v1851
      %1898 = vmatmul.bf16.gmra.mxu0 %v1842
      %v1899 = vpop.f32.mrf.mxu0
      %v1900 = vadd.f32 0.0, %v1899
      %v1901 = vpop.f32.mrf.mxu0
      %v1902 = vadd.f32 0.0, %v1901
      %1903 = vdwg.mxu0
      %1904 = vmatpush.bf16.msra.mxu0 0
      %1905 = vmatpush.bf16.msra.mxu0 0
      %1906 = vmatpush.bf16.msra.mxu0 0
      %1907 = vmatpush.bf16.msra.mxu0 0
      %1908 = vmatpush.bf16.msra.mxu0 0
      %1909 = vmatpush.bf16.msra.mxu0 0
      %1910 = vmatpush.bf16.msra.mxu0 0
      %1911 = vmatpush.bf16.msra.mxu0 %v1854
      %1912 = vmatmul.bf16.gmra.mxu0 %v1842
      %v1913 = vpop.f32.mrf.mxu0
      %v1914 = vadd.f32 0.0, %v1913
      %v1915 = vpop.f32.mrf.mxu0
      %v1916 = vadd.f32 0.0, %v1915
      %1917 = vdwg.mxu0
      %1918 = vmatpush.bf16.msra.mxu0 0
      %1919 = vmatpush.bf16.msra.mxu0 0
      %1920 = vmatpush.bf16.msra.mxu0 0
      %1921 = vmatpush.bf16.msra.mxu0 0
      %1922 = vmatpush.bf16.msra.mxu0 0
      %1923 = vmatpush.bf16.msra.mxu0 0
      %1924 = vmatpush.bf16.msra.mxu0 0
      %1925 = vmatpush.bf16.msra.mxu0 %v1857
      %1926 = vmatmul.bf16.gmra.mxu0 %v1842
      %v1927 = vpop.f32.mrf.mxu0
      %v1928 = vadd.f32 0.0, %v1927
      %v1929 = vpop.f32.mrf.mxu0
      %v1930 = vadd.f32 0.0, %v1929
      %1931 = vdwg.mxu0
      %1932 = vmatpush.bf16.msra.mxu0 0
      %1933 = vmatpush.bf16.msra.mxu0 0
      %1934 = vmatpush.bf16.msra.mxu0 0
      %1935 = vmatpush.bf16.msra.mxu0 0
      %1936 = vmatpush.bf16.msra.mxu0 0
      %1937 = vmatpush.bf16.msra.mxu0 0
      %1938 = vmatpush.bf16.msra.mxu0 0
      %1939 = vmatpush.bf16.msra.mxu0 %v1860
      %1940 = vmatmul.bf16.gmra.mxu0 %v1842
      %v1941 = vpop.f32.mrf.mxu0
      %v1942 = vadd.f32 0.0, %v1941
      %v1943 = vpop.f32.mrf.mxu0
      %v1944 = vadd.f32 0.0, %v1943
      %1945 = vdwg.mxu0
      %v1946 = vadd.f32 %v1803, %v1872
      %v1947 = vadd.f32 %v1804, %v1886
      %v1948 = vadd.f32 %v1805, %v1900
      %v1949 = vadd.f32 %v1806, %v1914
      %v1950 = vadd.f32 %v1807, %v1928
      %v1951 = vadd.f32 %v1808, %v1942
      %v1952 = vadd.f32 %v1809, %v1874
      %v1953 = vadd.f32 %v1810, %v1888
      %v1954 = vadd.f32 %v1811, %v1902
      %v1955 = vadd.f32 %v1812, %v1916
      %v1956 = vadd.f32 %v1813, %v1930
      %v1957 = vadd.f32 %v1814, %v1944
      %s1958 = scalar_lea.vmem %s4, 48
      %v1959 = vld [vmem:[%s1958] sm:$0xf]
      %v1960 = vld [vmem:[%s1958 + $0x4] sm:$0x7]
      %v1963 = vunpack.c.l.b16 %v1959
      %v1964 = vunpack.c.l.b16 %v1960
      %v1965 = vpack.c.b16 %v1964, %v1963
      %1966 = vrot.lane.b32.xlu0 %v1131, 72
      %v1967 = vpop.permute.xlu0 %1966
      %1968 = vrot.lane.b32.xlu0 %v1132, 72
      %v1969 = vpop.permute.xlu0 %1968
      %1970 = vrot.lane.b32.xlu0 %v1133, 72
      %v1971 = vpop.permute.xlu0 %1970
      %1972 = vrot.lane.b32.xlu0 %v1134, 72
      %v1973 = vpop.permute.xlu0 %1972
      %1974 = vrot.lane.b32.xlu0 %v1135, 72
      %v1975 = vpop.permute.xlu0 %1974
      %1976 = vrot.lane.b32.xlu0 %v1136, 72
      %v1977 = vpop.permute.xlu0 %1976
      %vm1978 = vcmask 588800
      %v1979 = vsel %vm1978, %v1967, %v1969
      %v1980 = vsel %vm1978, %v1969, %v1971
      %v1981 = vsel %vm1978, %v1971, %v1973
      %v1982 = vsel %vm1978, %v1973, %v1975
      %v1983 = vsel %vm1978, %v1975, %v1977
      %v1985 = vsel %vm1169, %v1965, 0
      %v1988 = vsel %vm1173, %v1979, 0
      %v1991 = vsel %vm1173, %v1980, 0
      %v1994 = vsel %vm1173, %v1981, 0
      %v1997 = vsel %vm1173, %v1982, 0
      %v2000 = vsel %vm1173, %v1983, 0
      %v2003 = vsel %vm1173, %v1977, 0
      %2005 = vmatpush.bf16.msra.mxu0 0
      %2006 = vmatpush.bf16.msra.mxu0 0
      %2007 = vmatpush.bf16.msra.mxu0 0
      %2008 = vmatpush.bf16.msra.mxu0 0
      %2009 = vmatpush.bf16.msra.mxu0 0
      %2010 = vmatpush.bf16.msra.mxu0 0
      %2011 = vmatpush.bf16.msra.mxu0 0
      %2012 = vmatpush.bf16.msra.mxu0 %v1988
      %2013 = vmatmul.bf16.gmra.mxu0 %v1985
      %v2014 = vpop.f32.mrf.mxu0
      %v2015 = vadd.f32 0.0, %v2014
      %v2016 = vpop.f32.mrf.mxu0
      %v2017 = vadd.f32 0.0, %v2016
      %2018 = vdwg.mxu0
      %2019 = vmatpush.bf16.msra.mxu0 0
      %2020 = vmatpush.bf16.msra.mxu0 0
      %2021 = vmatpush.bf16.msra.mxu0 0
      %2022 = vmatpush.bf16.msra.mxu0 0
      %2023 = vmatpush.bf16.msra.mxu0 0
      %2024 = vmatpush.bf16.msra.mxu0 0
      %2025 = vmatpush.bf16.msra.mxu0 0
      %2026 = vmatpush.bf16.msra.mxu0 %v1991
      %2027 = vmatmul.bf16.gmra.mxu0 %v1985
      %v2028 = vpop.f32.mrf.mxu0
      %v2029 = vadd.f32 0.0, %v2028
      %v2030 = vpop.f32.mrf.mxu0
      %v2031 = vadd.f32 0.0, %v2030
      %2032 = vdwg.mxu0
      %2033 = vmatpush.bf16.msra.mxu0 0
      %2034 = vmatpush.bf16.msra.mxu0 0
      %2035 = vmatpush.bf16.msra.mxu0 0
      %2036 = vmatpush.bf16.msra.mxu0 0
      %2037 = vmatpush.bf16.msra.mxu0 0
      %2038 = vmatpush.bf16.msra.mxu0 0
      %2039 = vmatpush.bf16.msra.mxu0 0
      %2040 = vmatpush.bf16.msra.mxu0 %v1994
      %2041 = vmatmul.bf16.gmra.mxu0 %v1985
      %v2042 = vpop.f32.mrf.mxu0
      %v2043 = vadd.f32 0.0, %v2042
      %v2044 = vpop.f32.mrf.mxu0
      %v2045 = vadd.f32 0.0, %v2044
      %2046 = vdwg.mxu0
      %2047 = vmatpush.bf16.msra.mxu0 0
      %2048 = vmatpush.bf16.msra.mxu0 0
      %2049 = vmatpush.bf16.msra.mxu0 0
      %2050 = vmatpush.bf16.msra.mxu0 0
      %2051 = vmatpush.bf16.msra.mxu0 0
      %2052 = vmatpush.bf16.msra.mxu0 0
      %2053 = vmatpush.bf16.msra.mxu0 0
      %2054 = vmatpush.bf16.msra.mxu0 %v1997
      %2055 = vmatmul.bf16.gmra.mxu0 %v1985
      %v2056 = vpop.f32.mrf.mxu0
      %v2057 = vadd.f32 0.0, %v2056
      %v2058 = vpop.f32.mrf.mxu0
      %v2059 = vadd.f32 0.0, %v2058
      %2060 = vdwg.mxu0
      %2061 = vmatpush.bf16.msra.mxu0 0
      %2062 = vmatpush.bf16.msra.mxu0 0
      %2063 = vmatpush.bf16.msra.mxu0 0
      %2064 = vmatpush.bf16.msra.mxu0 0
      %2065 = vmatpush.bf16.msra.mxu0 0
      %2066 = vmatpush.bf16.msra.mxu0 0
      %2067 = vmatpush.bf16.msra.mxu0 0
      %2068 = vmatpush.bf16.msra.mxu0 %v2000
      %2069 = vmatmul.bf16.gmra.mxu0 %v1985
      %v2070 = vpop.f32.mrf.mxu0
      %v2071 = vadd.f32 0.0, %v2070
      %v2072 = vpop.f32.mrf.mxu0
      %v2073 = vadd.f32 0.0, %v2072
      %2074 = vdwg.mxu0
      %2075 = vmatpush.bf16.msra.mxu0 0
      %2076 = vmatpush.bf16.msra.mxu0 0
      %2077 = vmatpush.bf16.msra.mxu0 0
      %2078 = vmatpush.bf16.msra.mxu0 0
      %2079 = vmatpush.bf16.msra.mxu0 0
      %2080 = vmatpush.bf16.msra.mxu0 0
      %2081 = vmatpush.bf16.msra.mxu0 0
      %2082 = vmatpush.bf16.msra.mxu0 %v2003
      %2083 = vmatmul.bf16.gmra.mxu0 %v1985
      %v2084 = vpop.f32.mrf.mxu0
      %v2085 = vadd.f32 0.0, %v2084
      %v2086 = vpop.f32.mrf.mxu0
      %v2087 = vadd.f32 0.0, %v2086
      %2088 = vdwg.mxu0
      %v2089 = vadd.f32 %v1946, %v2015
      %v2090 = vadd.f32 %v1947, %v2029
      %v2091 = vadd.f32 %v1948, %v2043
      %v2092 = vadd.f32 %v1949, %v2057
      %v2093 = vadd.f32 %v1950, %v2071
      %v2094 = vadd.f32 %v1951, %v2085
      %v2095 = vadd.f32 %v1952, %v2017
      %v2096 = vadd.f32 %v1953, %v2031
      %v2097 = vadd.f32 %v1954, %v2045
      %v2098 = vadd.f32 %v1955, %v2059
      %v2099 = vadd.f32 %v1956, %v2073
      %v2100 = vadd.f32 %v1957, %v2087
      %s2101 = scalar_lea.vmem %s4, 56
      %v2102 = vld [vmem:[%s2101] sm:$0xf]
      %v2103 = vld [vmem:[%s2101 + $0x4] sm:$0x7]
      %v2106 = vunpack.c.l.b16 %v2102
      %v2107 = vunpack.c.l.b16 %v2103
      %v2108 = vpack.c.b16 %v2107, %v2106
      %2109 = vrot.lane.b32.xlu0 %v1131, 71
      %v2110 = vpop.permute.xlu0 %2109
      %2111 = vrot.lane.b32.xlu0 %v1132, 71
      %v2112 = vpop.permute.xlu0 %2111
      %2113 = vrot.lane.b32.xlu0 %v1133, 71
      %v2114 = vpop.permute.xlu0 %2113
      %2115 = vrot.lane.b32.xlu0 %v1134, 71
      %v2116 = vpop.permute.xlu0 %2115
      %2117 = vrot.lane.b32.xlu0 %v1135, 71
      %v2118 = vpop.permute.xlu0 %2117
      %2119 = vrot.lane.b32.xlu0 %v1136, 71
      %v2120 = vpop.permute.xlu0 %2119
      %vm2121 = vcmask 580608
      %v2122 = vsel %vm2121, %v2110, %v2112
      %v2123 = vsel %vm2121, %v2112, %v2114
      %v2124 = vsel %vm2121, %v2114, %v2116
      %v2125 = vsel %vm2121, %v2116, %v2118
      %v2126 = vsel %vm2121, %v2118, %v2120
      %v2128 = vsel %vm1169, %v2108, 0
      %v2131 = vsel %vm1173, %v2122, 0
      %v2134 = vsel %vm1173, %v2123, 0
      %v2137 = vsel %vm1173, %v2124, 0
      %v2140 = vsel %vm1173, %v2125, 0
      %v2143 = vsel %vm1173, %v2126, 0
      %v2146 = vsel %vm1173, %v2120, 0
      %2148 = vmatpush.bf16.msra.mxu0 0
      %2149 = vmatpush.bf16.msra.mxu0 0
      %2150 = vmatpush.bf16.msra.mxu0 0
      %2151 = vmatpush.bf16.msra.mxu0 0
      %2152 = vmatpush.bf16.msra.mxu0 0
      %2153 = vmatpush.bf16.msra.mxu0 0
      %2154 = vmatpush.bf16.msra.mxu0 0
      %2155 = vmatpush.bf16.msra.mxu0 %v2131
      %2156 = vmatmul.bf16.gmra.mxu0 %v2128
      %v2157 = vpop.f32.mrf.mxu0
      %v2158 = vadd.f32 0.0, %v2157
      %v2159 = vpop.f32.mrf.mxu0
      %v2160 = vadd.f32 0.0, %v2159
      %2161 = vdwg.mxu0
      %2162 = vmatpush.bf16.msra.mxu0 0
      %2163 = vmatpush.bf16.msra.mxu0 0
      %2164 = vmatpush.bf16.msra.mxu0 0
      %2165 = vmatpush.bf16.msra.mxu0 0
      %2166 = vmatpush.bf16.msra.mxu0 0
      %2167 = vmatpush.bf16.msra.mxu0 0
      %2168 = vmatpush.bf16.msra.mxu0 0
      %2169 = vmatpush.bf16.msra.mxu0 %v2134
      %2170 = vmatmul.bf16.gmra.mxu0 %v2128
      %v2171 = vpop.f32.mrf.mxu0
      %v2172 = vadd.f32 0.0, %v2171
      %v2173 = vpop.f32.mrf.mxu0
      %v2174 = vadd.f32 0.0, %v2173
      %2175 = vdwg.mxu0
      %2176 = vmatpush.bf16.msra.mxu0 0
      %2177 = vmatpush.bf16.msra.mxu0 0
      %2178 = vmatpush.bf16.msra.mxu0 0
      %2179 = vmatpush.bf16.msra.mxu0 0
      %2180 = vmatpush.bf16.msra.mxu0 0
      %2181 = vmatpush.bf16.msra.mxu0 0
      %2182 = vmatpush.bf16.msra.mxu0 0
      %2183 = vmatpush.bf16.msra.mxu0 %v2137
      %2184 = vmatmul.bf16.gmra.mxu0 %v2128
      %v2185 = vpop.f32.mrf.mxu0
      %v2186 = vadd.f32 0.0, %v2185
      %v2187 = vpop.f32.mrf.mxu0
      %v2188 = vadd.f32 0.0, %v2187
      %2189 = vdwg.mxu0
      %2190 = vmatpush.bf16.msra.mxu0 0
      %2191 = vmatpush.bf16.msra.mxu0 0
      %2192 = vmatpush.bf16.msra.mxu0 0
      %2193 = vmatpush.bf16.msra.mxu0 0
      %2194 = vmatpush.bf16.msra.mxu0 0
      %2195 = vmatpush.bf16.msra.mxu0 0
      %2196 = vmatpush.bf16.msra.mxu0 0
      %2197 = vmatpush.bf16.msra.mxu0 %v2140
      %2198 = vmatmul.bf16.gmra.mxu0 %v2128
      %v2199 = vpop.f32.mrf.mxu0
      %v2200 = vadd.f32 0.0, %v2199
      %v2201 = vpop.f32.mrf.mxu0
      %v2202 = vadd.f32 0.0, %v2201
      %2203 = vdwg.mxu0
      %2204 = vmatpush.bf16.msra.mxu0 0
      %2205 = vmatpush.bf16.msra.mxu0 0
      %2206 = vmatpush.bf16.msra.mxu0 0
      %2207 = vmatpush.bf16.msra.mxu0 0
      %2208 = vmatpush.bf16.msra.mxu0 0
      %2209 = vmatpush.bf16.msra.mxu0 0
      %2210 = vmatpush.bf16.msra.mxu0 0
      %2211 = vmatpush.bf16.msra.mxu0 %v2143
      %2212 = vmatmul.bf16.gmra.mxu0 %v2128
      %v2213 = vpop.f32.mrf.mxu0
      %v2214 = vadd.f32 0.0, %v2213
      %v2215 = vpop.f32.mrf.mxu0
      %v2216 = vadd.f32 0.0, %v2215
      %2217 = vdwg.mxu0
      %2218 = vmatpush.bf16.msra.mxu0 0
      %2219 = vmatpush.bf16.msra.mxu0 0
      %2220 = vmatpush.bf16.msra.mxu0 0
      %2221 = vmatpush.bf16.msra.mxu0 0
      %2222 = vmatpush.bf16.msra.mxu0 0
      %2223 = vmatpush.bf16.msra.mxu0 0
      %2224 = vmatpush.bf16.msra.mxu0 0
      %2225 = vmatpush.bf16.msra.mxu0 %v2146
      %2226 = vmatmul.bf16.gmra.mxu0 %v2128
      %v2227 = vpop.f32.mrf.mxu0
      %v2228 = vadd.f32 0.0, %v2227
      %v2229 = vpop.f32.mrf.mxu0
      %v2230 = vadd.f32 0.0, %v2229
      %2231 = vdwg.mxu0
      %v2232 = vadd.f32 %v2089, %v2158
      %v2233 = vadd.f32 %v2090, %v2172
      %v2234 = vadd.f32 %v2091, %v2186
      %v2235 = vadd.f32 %v2092, %v2200
      %v2236 = vadd.f32 %v2093, %v2214
      %v2237 = vadd.f32 %v2094, %v2228
      %v2238 = vadd.f32 %v2095, %v2160
      %v2239 = vadd.f32 %v2096, %v2174
      %v2240 = vadd.f32 %v2097, %v2188
      %v2241 = vadd.f32 %v2098, %v2202
      %v2242 = vadd.f32 %v2099, %v2216
      %v2243 = vadd.f32 %v2100, %v2230
      %s2244 = scalar_lea.vmem %s4, 64
      %v2245 = vld [vmem:[%s2244] sm:$0xf]
      %v2246 = vld [vmem:[%s2244 + $0x4] sm:$0x7]
      %v2249 = vunpack.c.l.b16 %v2245
      %v2250 = vunpack.c.l.b16 %v2246
      %v2251 = vpack.c.b16 %v2250, %v2249
      %2252 = vrot.lane.b32.xlu0 %v1131, 70
      %v2253 = vpop.permute.xlu0 %2252
      %2254 = vrot.lane.b32.xlu0 %v1132, 70
      %v2255 = vpop.permute.xlu0 %2254
      %2256 = vrot.lane.b32.xlu0 %v1133, 70
      %v2257 = vpop.permute.xlu0 %2256
      %2258 = vrot.lane.b32.xlu0 %v1134, 70
      %v2259 = vpop.permute.xlu0 %2258
      %2260 = vrot.lane.b32.xlu0 %v1135, 70
      %v2261 = vpop.permute.xlu0 %2260
      %2262 = vrot.lane.b32.xlu0 %v1136, 70
      %v2263 = vpop.permute.xlu0 %2262
      %vm2264 = vcmask 572416
      %v2265 = vsel %vm2264, %v2253, %v2255
      %v2266 = vsel %vm2264, %v2255, %v2257
      %v2267 = vsel %vm2264, %v2257, %v2259
      %v2268 = vsel %vm2264, %v2259, %v2261
      %v2269 = vsel %vm2264, %v2261, %v2263
      %v2271 = vsel %vm1169, %v2251, 0
      %v2274 = vsel %vm1173, %v2265, 0
      %v2277 = vsel %vm1173, %v2266, 0
      %v2280 = vsel %vm1173, %v2267, 0
      %v2283 = vsel %vm1173, %v2268, 0
      %v2286 = vsel %vm1173, %v2269, 0
      %v2289 = vsel %vm1173, %v2263, 0
      %2291 = vmatpush.bf16.msra.mxu0 0
      %2292 = vmatpush.bf16.msra.mxu0 0
      %2293 = vmatpush.bf16.msra.mxu0 0
      %2294 = vmatpush.bf16.msra.mxu0 0
      %2295 = vmatpush.bf16.msra.mxu0 0
      %2296 = vmatpush.bf16.msra.mxu0 0
      %2297 = vmatpush.bf16.msra.mxu0 0
      %2298 = vmatpush.bf16.msra.mxu0 %v2274
      %2299 = vmatmul.bf16.gmra.mxu0 %v2271
      %v2300 = vpop.f32.mrf.mxu0
      %v2301 = vadd.f32 0.0, %v2300
      %v2302 = vpop.f32.mrf.mxu0
      %v2303 = vadd.f32 0.0, %v2302
      %2304 = vdwg.mxu0
      %2305 = vmatpush.bf16.msra.mxu0 0
      %2306 = vmatpush.bf16.msra.mxu0 0
      %2307 = vmatpush.bf16.msra.mxu0 0
      %2308 = vmatpush.bf16.msra.mxu0 0
      %2309 = vmatpush.bf16.msra.mxu0 0
      %2310 = vmatpush.bf16.msra.mxu0 0
      %2311 = vmatpush.bf16.msra.mxu0 0
      %2312 = vmatpush.bf16.msra.mxu0 %v2277
      %2313 = vmatmul.bf16.gmra.mxu0 %v2271
      %v2314 = vpop.f32.mrf.mxu0
      %v2315 = vadd.f32 0.0, %v2314
      %v2316 = vpop.f32.mrf.mxu0
      %v2317 = vadd.f32 0.0, %v2316
      %2318 = vdwg.mxu0
      %2319 = vmatpush.bf16.msra.mxu0 0
      %2320 = vmatpush.bf16.msra.mxu0 0
      %2321 = vmatpush.bf16.msra.mxu0 0
      %2322 = vmatpush.bf16.msra.mxu0 0
      %2323 = vmatpush.bf16.msra.mxu0 0
      %2324 = vmatpush.bf16.msra.mxu0 0
      %2325 = vmatpush.bf16.msra.mxu0 0
      %2326 = vmatpush.bf16.msra.mxu0 %v2280
      %2327 = vmatmul.bf16.gmra.mxu0 %v2271
      %v2328 = vpop.f32.mrf.mxu0
      %v2329 = vadd.f32 0.0, %v2328
      %v2330 = vpop.f32.mrf.mxu0
      %v2331 = vadd.f32 0.0, %v2330
      %2332 = vdwg.mxu0
      %2333 = vmatpush.bf16.msra.mxu0 0
      %2334 = vmatpush.bf16.msra.mxu0 0
      %2335 = vmatpush.bf16.msra.mxu0 0
      %2336 = vmatpush.bf16.msra.mxu0 0
      %2337 = vmatpush.bf16.msra.mxu0 0
      %2338 = vmatpush.bf16.msra.mxu0 0
      %2339 = vmatpush.bf16.msra.mxu0 0
      %2340 = vmatpush.bf16.msra.mxu0 %v2283
      %2341 = vmatmul.bf16.gmra.mxu0 %v2271
      %v2342 = vpop.f32.mrf.mxu0
      %v2343 = vadd.f32 0.0, %v2342
      %v2344 = vpop.f32.mrf.mxu0
      %v2345 = vadd.f32 0.0, %v2344
      %2346 = vdwg.mxu0
      %2347 = vmatpush.bf16.msra.mxu0 0
      %2348 = vmatpush.bf16.msra.mxu0 0
      %2349 = vmatpush.bf16.msra.mxu0 0
      %2350 = vmatpush.bf16.msra.mxu0 0
      %2351 = vmatpush.bf16.msra.mxu0 0
      %2352 = vmatpush.bf16.msra.mxu0 0
      %2353 = vmatpush.bf16.msra.mxu0 0
      %2354 = vmatpush.bf16.msra.mxu0 %v2286
      %2355 = vmatmul.bf16.gmra.mxu0 %v2271
      %v2356 = vpop.f32.mrf.mxu0
      %v2357 = vadd.f32 0.0, %v2356
      %v2358 = vpop.f32.mrf.mxu0
      %v2359 = vadd.f32 0.0, %v2358
      %2360 = vdwg.mxu0
      %2361 = vmatpush.bf16.msra.mxu0 0
      %2362 = vmatpush.bf16.msra.mxu0 0
      %2363 = vmatpush.bf16.msra.mxu0 0
      %2364 = vmatpush.bf16.msra.mxu0 0
      %2365 = vmatpush.bf16.msra.mxu0 0
      %2366 = vmatpush.bf16.msra.mxu0 0
      %2367 = vmatpush.bf16.msra.mxu0 0
      %2368 = vmatpush.bf16.msra.mxu0 %v2289
      %2369 = vmatmul.bf16.gmra.mxu0 %v2271
      %v2370 = vpop.f32.mrf.mxu0
      %v2371 = vadd.f32 0.0, %v2370
      %v2372 = vpop.f32.mrf.mxu0
      %v2373 = vadd.f32 0.0, %v2372
      %2374 = vdwg.mxu0
      %v2375 = vadd.f32 %v2232, %v2301
      %v2376 = vadd.f32 %v2233, %v2315
      %v2377 = vadd.f32 %v2234, %v2329
      %v2378 = vadd.f32 %v2235, %v2343
      %v2379 = vadd.f32 %v2236, %v2357
      %v2380 = vadd.f32 %v2237, %v2371
      %v2381 = vadd.f32 %v2238, %v2303
      %v2382 = vadd.f32 %v2239, %v2317
      %v2383 = vadd.f32 %v2240, %v2331
      %v2384 = vadd.f32 %v2241, %v2345
      %v2385 = vadd.f32 %v2242, %v2359
      %v2386 = vadd.f32 %v2243, %v2373
      %v2387 = vmax.f32 %v2375, 0.0
      %v2388 = vmax.f32 %v2376, 0.0
      %v2389 = vmax.f32 %v2377, 0.0
      %v2390 = vmax.f32 %v2378, 0.0
      %v2391 = vmax.f32 %v2379, 0.0
      %v2392 = vmax.f32 %v2380, 0.0
      %v2393 = vmax.f32 %v2381, 0.0
      %v2394 = vmax.f32 %v2382, 0.0
      %v2395 = vmax.f32 %v2383, 0.0
      %v2396 = vmax.f32 %v2384, 0.0
      %v2397 = vmax.f32 %v2385, 0.0
      %v2398 = vmax.f32 %v2386, 0.0
      %v2399 = vld [vmem:[%s5] sm:$0xff]
      %v2400 = vld [vmem:[%s5 + $0x8] sm:$0x3f]
      %2402 = vset.pattern.permute.xlu0 0
      %2403 = vperm.xlu0 %2402, %v2399
      %v2404 = vpop.permute.xlu0 %2403
      %2407 = vset.pattern.permute.xlu0 0
      %2408 = vperm.xlu0 %2407, %v2400
      %v2409 = vpop.permute.xlu0 %2408
      %v2411 = vmul.f32 %v2387, %v2404
      %v2412 = vmul.f32 %v2388, %v2404
      %v2413 = vmul.f32 %v2389, %v2404
      %v2414 = vmul.f32 %v2390, %v2404
      %v2415 = vmul.f32 %v2391, %v2404
      %v2416 = vmul.f32 %v2392, %v2404
      %v2417 = vmul.f32 %v2393, %v2409
      %v2418 = vmul.f32 %v2394, %v2409
      %v2419 = vmul.f32 %v2395, %v2409
      %v2420 = vmul.f32 %v2396, %v2409
      %v2421 = vmul.f32 %v2397, %v2409
      %v2422 = vmul.f32 %v2398, %v2409
      %v2423 = vld [vmem:[%s6] sm:$0xff]
      %v2424 = vld [vmem:[%s6 + $0x8] sm:$0x3f]
      %2426 = vset.pattern.permute.xlu0 0
      %2427 = vperm.xlu0 %2426, %v2423
      %v2428 = vpop.permute.xlu0 %2427
      %2431 = vset.pattern.permute.xlu0 0
      %2432 = vperm.xlu0 %2431, %v2424
      %v2433 = vpop.permute.xlu0 %2432
      %v2435 = vadd.f32 %v2411, %v2428
      %v2436 = vadd.f32 %v2412, %v2428
      %v2437 = vadd.f32 %v2413, %v2428
      %v2438 = vadd.f32 %v2414, %v2428
      %v2439 = vadd.f32 %v2415, %v2428
      %v2440 = vadd.f32 %v2416, %v2428
      %v2441 = vadd.f32 %v2417, %v2433
      %v2442 = vadd.f32 %v2418, %v2433
      %v2443 = vadd.f32 %v2419, %v2433
      %v2444 = vadd.f32 %v2420, %v2433
      %v2445 = vadd.f32 %v2421, %v2433
      %v2446 = vadd.f32 %v2422, %v2433
      %v2447 = vld [vmem:[%s7] sm:$0xf]
      %v2448 = vld [vmem:[%s7 + $0x4] sm:$0x1]
      %v2449 = vpack.c.bf16 %v2441, %v2435
      %v2450 = vpack.c.bf16 %v2442, %v2436
      %v2451 = vpack.c.bf16 %v2443, %v2437
      %v2452 = vpack.c.bf16 %v2444, %v2438
      %v2453 = vpack.c.bf16 %v2445, %v2439
      %v2454 = vpack.c.bf16 %v2446, %v2440
      %v2457 = vunpack.c.l.b16 %v2447
      %v2458 = vunpack.c.l.b16 %v2448
      %v2459 = vpack.c.b16 %v2458, %v2457
      %vm2460 = vcmask 113664
      %v2462 = vsel %vm2460, %v2459, 0
      %vm2464 = vcmask 1046528
      %v2466 = vsel %vm2464, %v2449, 0
      %v2469 = vsel %vm2464, %v2450, 0
      %v2472 = vsel %vm2464, %v2451, 0
      %v2475 = vsel %vm2464, %v2452, 0
      %v2478 = vsel %vm2464, %v2453, 0
      %v2481 = vsel %vm2464, %v2454, 0
      %2483 = vmatpush.bf16.msra.mxu0 0
      %2484 = vmatpush.bf16.msra.mxu0 0
      %2485 = vmatpush.bf16.msra.mxu0 0
      %2486 = vmatpush.bf16.msra.mxu0 0
      %2487 = vmatpush.bf16.msra.mxu0 0
      %2488 = vmatpush.bf16.msra.mxu0 0
      %2489 = vmatpush.bf16.msra.mxu0 0
      %2490 = vmatpush.bf16.msra.mxu0 %v2466
      %2491 = vmatmul.bf16.gmra.mxu0 %v2462
      %v2492 = vpop.f32.mrf.mxu0
      %v2493 = vadd.f32 0.0, %v2492
      %v2494 = vpop.f32.mrf.mxu0
      %v2495 = vadd.f32 0.0, %v2494
      %2496 = vdwg.mxu0
      %2497 = vmatpush.bf16.msra.mxu0 0
      %2498 = vmatpush.bf16.msra.mxu0 0
      %2499 = vmatpush.bf16.msra.mxu0 0
      %2500 = vmatpush.bf16.msra.mxu0 0
      %2501 = vmatpush.bf16.msra.mxu0 0
      %2502 = vmatpush.bf16.msra.mxu0 0
      %2503 = vmatpush.bf16.msra.mxu0 0
      %2504 = vmatpush.bf16.msra.mxu0 %v2469
      %2505 = vmatmul.bf16.gmra.mxu0 %v2462
      %v2506 = vpop.f32.mrf.mxu0
      %v2507 = vadd.f32 0.0, %v2506
      %v2508 = vpop.f32.mrf.mxu0
      %v2509 = vadd.f32 0.0, %v2508
      %2510 = vdwg.mxu0
      %2511 = vmatpush.bf16.msra.mxu0 0
      %2512 = vmatpush.bf16.msra.mxu0 0
      %2513 = vmatpush.bf16.msra.mxu0 0
      %2514 = vmatpush.bf16.msra.mxu0 0
      %2515 = vmatpush.bf16.msra.mxu0 0
      %2516 = vmatpush.bf16.msra.mxu0 0
      %2517 = vmatpush.bf16.msra.mxu0 0
      %2518 = vmatpush.bf16.msra.mxu0 %v2472
      %2519 = vmatmul.bf16.gmra.mxu0 %v2462
      %v2520 = vpop.f32.mrf.mxu0
      %v2521 = vadd.f32 0.0, %v2520
      %v2522 = vpop.f32.mrf.mxu0
      %v2523 = vadd.f32 0.0, %v2522
      %2524 = vdwg.mxu0
      %2525 = vmatpush.bf16.msra.mxu0 0
      %2526 = vmatpush.bf16.msra.mxu0 0
      %2527 = vmatpush.bf16.msra.mxu0 0
      %2528 = vmatpush.bf16.msra.mxu0 0
      %2529 = vmatpush.bf16.msra.mxu0 0
      %2530 = vmatpush.bf16.msra.mxu0 0
      %2531 = vmatpush.bf16.msra.mxu0 0
      %2532 = vmatpush.bf16.msra.mxu0 %v2475
      %2533 = vmatmul.bf16.gmra.mxu0 %v2462
      %v2534 = vpop.f32.mrf.mxu0
      %v2535 = vadd.f32 0.0, %v2534
      %v2536 = vpop.f32.mrf.mxu0
      %v2537 = vadd.f32 0.0, %v2536
      %2538 = vdwg.mxu0
      %2539 = vmatpush.bf16.msra.mxu0 0
      %2540 = vmatpush.bf16.msra.mxu0 0
      %2541 = vmatpush.bf16.msra.mxu0 0
      %2542 = vmatpush.bf16.msra.mxu0 0
      %2543 = vmatpush.bf16.msra.mxu0 0
      %2544 = vmatpush.bf16.msra.mxu0 0
      %2545 = vmatpush.bf16.msra.mxu0 0
      %2546 = vmatpush.bf16.msra.mxu0 %v2478
      %2547 = vmatmul.bf16.gmra.mxu0 %v2462
      %v2548 = vpop.f32.mrf.mxu0
      %v2549 = vadd.f32 0.0, %v2548
      %v2550 = vpop.f32.mrf.mxu0
      %v2551 = vadd.f32 0.0, %v2550
      %2552 = vdwg.mxu0
      %2553 = vmatpush.bf16.msra.mxu0 0
      %2554 = vmatpush.bf16.msra.mxu0 0
      %2555 = vmatpush.bf16.msra.mxu0 0
      %2556 = vmatpush.bf16.msra.mxu0 0
      %2557 = vmatpush.bf16.msra.mxu0 0
      %2558 = vmatpush.bf16.msra.mxu0 0
      %2559 = vmatpush.bf16.msra.mxu0 0
      %2560 = vmatpush.bf16.msra.mxu0 %v2481
      %2561 = vmatmul.bf16.gmra.mxu0 %v2462
      %v2562 = vpop.f32.mrf.mxu0
      %v2563 = vadd.f32 0.0, %v2562
      %v2564 = vpop.f32.mrf.mxu0
      %v2565 = vadd.f32 0.0, %v2564
      %2566 = vdwg.mxu0
      %2579 = vrot.lane.b32.xlu0 %v2493, 100
      %v2580 = vpop.permute.xlu0 %2579
      %2581 = vrot.lane.b32.xlu0 %v2507, 100
      %v2582 = vpop.permute.xlu0 %2581
      %2583 = vrot.lane.b32.xlu0 %v2521, 100
      %v2584 = vpop.permute.xlu0 %2583
      %2585 = vrot.lane.b32.xlu0 %v2535, 100
      %v2586 = vpop.permute.xlu0 %2585
      %2587 = vrot.lane.b32.xlu0 %v2549, 100
      %v2588 = vpop.permute.xlu0 %2587
      %2589 = vrot.lane.b32.xlu0 %v2563, 100
      %v2590 = vpop.permute.xlu0 %2589
      %2591 = vrot.lane.b32.xlu0 %v2495, 100
      %v2592 = vpop.permute.xlu0 %2591
      %2593 = vrot.lane.b32.xlu0 %v2509, 100
      %v2594 = vpop.permute.xlu0 %2593
      %2595 = vrot.lane.b32.xlu0 %v2523, 100
      %v2596 = vpop.permute.xlu0 %2595
      %2597 = vrot.lane.b32.xlu0 %v2537, 100
      %v2598 = vpop.permute.xlu0 %2597
      %2599 = vrot.lane.b32.xlu0 %v2551, 100
      %v2600 = vpop.permute.xlu0 %2599
      %2601 = vrot.lane.b32.xlu0 %v2565, 100
      %v2602 = vpop.permute.xlu0 %2601
      %v2603 = vsel %vm814, %v2580, %v2582
      %v2604 = vsel %vm814, %v2582, %v2584
      %v2605 = vsel %vm814, %v2584, %v2586
      %v2606 = vsel %vm814, %v2586, %v2588
      %v2607 = vsel %vm814, %v2588, %v2590
      %v2608 = vsel %vm814, %v2592, %v2594
      %v2609 = vsel %vm814, %v2594, %v2596
      %v2610 = vsel %vm814, %v2596, %v2598
      %v2611 = vsel %vm814, %v2598, %v2600
      %v2612 = vsel %vm814, %v2600, %v2602
      %v2625 = vmax.f32 %v2493, %v2603
      %v2626 = vmax.f32 %v2507, %v2604
      %v2627 = vmax.f32 %v2521, %v2605
      %v2628 = vmax.f32 %v2535, %v2606
      %v2629 = vmax.f32 %v2549, %v2607
      %v2630 = vmax.f32 %v2563, %v2590
      %v2631 = vmax.f32 %v2495, %v2608
      %v2632 = vmax.f32 %v2509, %v2609
      %v2633 = vmax.f32 %v2523, %v2610
      %v2634 = vmax.f32 %v2537, %v2611
      %v2635 = vmax.f32 %v2551, %v2612
      %v2636 = vmax.f32 %v2565, %v2602
      %2649 = vrot.lane.b32.xlu0 %v2625, 127
      %v2650 = vpop.permute.xlu0 %2649
      %2651 = vrot.lane.b32.xlu0 %v2626, 127
      %v2652 = vpop.permute.xlu0 %2651
      %2653 = vrot.lane.b32.xlu0 %v2627, 127
      %v2654 = vpop.permute.xlu0 %2653
      %2655 = vrot.lane.b32.xlu0 %v2628, 127
      %v2656 = vpop.permute.xlu0 %2655
      %2657 = vrot.lane.b32.xlu0 %v2629, 127
      %v2658 = vpop.permute.xlu0 %2657
      %2659 = vrot.lane.b32.xlu0 %v2630, 127
      %v2660 = vpop.permute.xlu0 %2659
      %2661 = vrot.lane.b32.xlu0 %v2631, 127
      %v2662 = vpop.permute.xlu0 %2661
      %2663 = vrot.lane.b32.xlu0 %v2632, 127
      %v2664 = vpop.permute.xlu0 %2663
      %2665 = vrot.lane.b32.xlu0 %v2633, 127
      %v2666 = vpop.permute.xlu0 %2665
      %2667 = vrot.lane.b32.xlu0 %v2634, 127
      %v2668 = vpop.permute.xlu0 %2667
      %2669 = vrot.lane.b32.xlu0 %v2635, 127
      %v2670 = vpop.permute.xlu0 %2669
      %2671 = vrot.lane.b32.xlu0 %v2636, 127
      %v2672 = vpop.permute.xlu0 %2671
      %v2673 = vsel %vm714, %v2650, %v2652
      %v2674 = vsel %vm714, %v2652, %v2654
      %v2675 = vsel %vm714, %v2654, %v2656
      %v2676 = vsel %vm714, %v2656, %v2658
      %v2677 = vsel %vm714, %v2658, %v2660
      %v2678 = vsel %vm714, %v2662, %v2664
      %v2679 = vsel %vm714, %v2664, %v2666
      %v2680 = vsel %vm714, %v2666, %v2668
      %v2681 = vsel %vm714, %v2668, %v2670
      %v2682 = vsel %vm714, %v2670, %v2672
      %v2695 = vmax.f32 %v2625, %v2673
      %v2696 = vmax.f32 %v2626, %v2674
      %v2697 = vmax.f32 %v2627, %v2675
      %v2698 = vmax.f32 %v2628, %v2676
      %v2699 = vmax.f32 %v2629, %v2677
      %v2700 = vmax.f32 %v2630, %v2660
      %v2701 = vmax.f32 %v2631, %v2678
      %v2702 = vmax.f32 %v2632, %v2679
      %v2703 = vmax.f32 %v2633, %v2680
      %v2704 = vmax.f32 %v2634, %v2681
      %v2705 = vmax.f32 %v2635, %v2682
      %v2706 = vmax.f32 %v2636, %v2672
      %v2707 = vld [vmem:[%s17] sm:$0xff]
      %v2708 = vld [vmem:[%s17 + $0x8] sm:$0xff]
      %v2709 = vld [vmem:[%s17 + $0x10] sm:$0xff]
      %v2710 = vld [vmem:[%s17 + $0x18] sm:$0xff]
      %v2711 = vld [vmem:[%s17 + $0x20] sm:$0xff]
      %v2712 = vld [vmem:[%s17 + $0x28] sm:$0xff]
      %v2713 = vld [vmem:[%s17 + $0x30] sm:$0xff]
      %v2714 = vld [vmem:[%s17 + $0x38] sm:$0xff]
      %v2715 = vld [vmem:[%s17 + $0x40] sm:$0xff]
      %v2716 = vld [vmem:[%s17 + $0x48] sm:$0xff]
      %v2717 = vld [vmem:[%s17 + $0x50] sm:$0xff]
      %v2718 = vld [vmem:[%s17 + $0x58] sm:$0xff]
      %v2719 = vld [vmem:[%s17 + $0x60] sm:$0xff]
      %v2720 = vld [vmem:[%s17 + $0x68] sm:$0xff]
      %v2721 = vld [vmem:[%s17 + $0x70] sm:$0xff]
      %v2722 = vld [vmem:[%s17 + $0x78] sm:$0xff]
      %v2723 = vld [vmem:[%s17 + $0x80] sm:$0xff]
      %v2724 = vld [vmem:[%s17 + $0x88] sm:$0xff]
      %v2725 = vld [vmem:[%s17 + $0x90] sm:$0xff]
      %v2726 = vld [vmem:[%s17 + $0x98] sm:$0xff]
      %v2727 = vld [vmem:[%s17 + $0xa0] sm:$0xff]
      %v2728 = vld [vmem:[%s17 + $0xa8] sm:$0xff]
      %v2729 = vld [vmem:[%s17 + $0xb0] sm:$0xff]
      %v2730 = vld [vmem:[%s17 + $0xb8] sm:$0xff]
      %v2731 = vld [vmem:[%s17 + $0xc0] sm:$0xff]
      %v2732 = vld [vmem:[%s17 + $0xc8] sm:$0xff]
      %v2733 = vld [vmem:[%s17 + $0xd0] sm:$0xff]
      %v2734 = vld [vmem:[%s17 + $0xd8] sm:$0xff]
      %v2735 = vld [vmem:[%s17 + $0xe0] sm:$0xff]
      %v2736 = vld [vmem:[%s17 + $0xe8] sm:$0xff]
      %v2737 = vld [vmem:[%s17 + $0xf0] sm:$0xff]
      %v2738 = vld [vmem:[%s17 + $0xf8] sm:$0xff]
      %v2739 = vld [vmem:[%s17 + $0x100] sm:$0xff]
      %v2740 = vld [vmem:[%s17 + $0x108] sm:$0xff]
      %v2741 = vld [vmem:[%s17 + $0x110] sm:$0xff]
      %v2742 = vld [vmem:[%s17 + $0x118] sm:$0xff]
      %v2743 = vld [vmem:[%s17 + $0x120] sm:$0xff]
      %v2744 = vld [vmem:[%s17 + $0x128] sm:$0xff]
      %v2745 = vld [vmem:[%s17 + $0x130] sm:$0xff]
      %v2746 = vld [vmem:[%s17 + $0x138] sm:$0xff]
      %v2747 = vld [vmem:[%s17 + $0x140] sm:$0xff]
      %v2748 = vld [vmem:[%s17 + $0x148] sm:$0xff]
      %v2749 = vld [vmem:[%s17 + $0x150] sm:$0xff]
      %v2750 = vld [vmem:[%s17 + $0x158] sm:$0xff]
      %v2751 = vld [vmem:[%s17 + $0x160] sm:$0xff]
      %v2752 = vld [vmem:[%s17 + $0x168] sm:$0xff]
      %v2753 = vld [vmem:[%s17 + $0x170] sm:$0xff]
      %v2754 = vld [vmem:[%s17 + $0x178] sm:$0xff]
      %v2755 = vld [vmem:[%s17 + $0x180] sm:$0xff]
      %v2756 = vld [vmem:[%s17 + $0x188] sm:$0xff]
      %v2757 = vld [vmem:[%s17 + $0x190] sm:$0xff]
      %v2758 = vld [vmem:[%s17 + $0x198] sm:$0xff]
      %v2759 = vld [vmem:[%s17 + $0x1a0] sm:$0xff]
      %v2760 = vld [vmem:[%s17 + $0x1a8] sm:$0xff]
      %v2761 = vld [vmem:[%s17 + $0x1b0] sm:$0xff]
      %v2762 = vld [vmem:[%s17 + $0x1b8] sm:$0xff]
      %v2763 = vld [vmem:[%s17 + $0x1c0] sm:$0xff]
      %v2764 = vld [vmem:[%s17 + $0x1c8] sm:$0xff]
      %v2765 = vld [vmem:[%s17 + $0x1d0] sm:$0xff]
      %v2766 = vld [vmem:[%s17 + $0x1d8] sm:$0xff]
      %v2767 = vld [vmem:[%s17 + $0x1e0] sm:$0xff]
      %v2768 = vld [vmem:[%s17 + $0x1e8] sm:$0xff]
      %v2769 = vld [vmem:[%s17 + $0x1f0] sm:$0xff]
      %v2770 = vld [vmem:[%s17 + $0x1f8] sm:$0xff]
      %v2771 = vld [vmem:[%s17 + $0x200] sm:$0xff]
      %v2772 = vld [vmem:[%s17 + $0x208] sm:$0xff]
      %v2773 = vld [vmem:[%s17 + $0x210] sm:$0xff]
      %v2774 = vld [vmem:[%s17 + $0x218] sm:$0xff]
      %v2775 = vld [vmem:[%s17 + $0x220] sm:$0xff]
      %v2776 = vld [vmem:[%s17 + $0x228] sm:$0xff]
      %v2777 = vld [vmem:[%s17 + $0x230] sm:$0xff]
      %v2778 = vld [vmem:[%s17 + $0x238] sm:$0xff]
      %v2779 = vld [vmem:[%s17 + $0x240] sm:$0xff]
      %v2780 = vld [vmem:[%s17 + $0x248] sm:$0xff]
      %v2781 = vld [vmem:[%s17 + $0x250] sm:$0xff]
      %v2782 = vld [vmem:[%s17 + $0x258] sm:$0xff]
      %v2783 = vld [vmem:[%s17 + $0x260] sm:$0xff]
      %v2784 = vld [vmem:[%s17 + $0x268] sm:$0xff]
      %v2785 = vld [vmem:[%s17 + $0x270] sm:$0xff]
      %v2786 = vld [vmem:[%s17 + $0x278] sm:$0xff]
      %v2787 = vld [vmem:[%s17 + $0x280] sm:$0xff]
      %v2788 = vld [vmem:[%s17 + $0x288] sm:$0xff]
      %v2789 = vld [vmem:[%s17 + $0x290] sm:$0xff]
      %v2790 = vld [vmem:[%s17 + $0x298] sm:$0xff]
      %v2791 = vld [vmem:[%s17 + $0x2a0] sm:$0xff]
      %v2792 = vld [vmem:[%s17 + $0x2a8] sm:$0xff]
      %v2793 = vld [vmem:[%s17 + $0x2b0] sm:$0xff]
      %v2794 = vld [vmem:[%s17 + $0x2b8] sm:$0xff]
      %v2795 = vld [vmem:[%s17 + $0x2c0] sm:$0xff]
      %v2796 = vld [vmem:[%s17 + $0x2c8] sm:$0xff]
      %v2797 = vld [vmem:[%s17 + $0x2d0] sm:$0xff]
      %v2798 = vld [vmem:[%s17 + $0x2d8] sm:$0xff]
      %v2799 = vld [vmem:[%s17 + $0x2e0] sm:$0xff]
      %v2800 = vld [vmem:[%s17 + $0x2e8] sm:$0xff]
      %v2801 = vld [vmem:[%s17 + $0x2f0] sm:$0xff]
      %v2802 = vld [vmem:[%s17 + $0x2f8] sm:$0xff]
      %v2803 = vld [vmem:[%s17 + $0x300] sm:$0xff]
      %v2804 = vld [vmem:[%s17 + $0x308] sm:$0xff]
      %v2805 = vld [vmem:[%s17 + $0x310] sm:$0xff]
      %v2806 = vld [vmem:[%s17 + $0x318] sm:$0xff]
      %v2807 = vld [vmem:[%s17 + $0x320] sm:$0xff]
      %v2808 = vld [vmem:[%s17 + $0x328] sm:$0xff]
      %v2809 = vld [vmem:[%s17 + $0x330] sm:$0xff]
      %v2810 = vld [vmem:[%s17 + $0x338] sm:$0xff]
      %v2811 = vld [vmem:[%s17 + $0x340] sm:$0xff]
      %v2812 = vld [vmem:[%s17 + $0x348] sm:$0xff]
      %v2813 = vld [vmem:[%s17 + $0x350] sm:$0xff]
      %v2814 = vld [vmem:[%s17 + $0x358] sm:$0xff]
      %v2815 = vld [vmem:[%s17 + $0x360] sm:$0xff]
      %v2816 = vld [vmem:[%s17 + $0x368] sm:$0xff]
      %v2817 = vld [vmem:[%s17 + $0x370] sm:$0xff]
      %v2818 = vld [vmem:[%s17 + $0x378] sm:$0xff]
      %v2819 = vld [vmem:[%s17 + $0x380] sm:$0xff]
      %v2820 = vld [vmem:[%s17 + $0x388] sm:$0xff]
      %v2821 = vld [vmem:[%s17 + $0x390] sm:$0xff]
      %v2822 = vld [vmem:[%s17 + $0x398] sm:$0xff]
      %v2823 = vld [vmem:[%s17 + $0x3a0] sm:$0xff]
      %v2824 = vld [vmem:[%s17 + $0x3a8] sm:$0xff]
      %v2825 = vld [vmem:[%s17 + $0x3b0] sm:$0xff]
      %v2826 = vld [vmem:[%s17 + $0x3b8] sm:$0xff]
      %v2827 = vld [vmem:[%s17 + $0x3c0] sm:$0xff]
      %v2828 = vld [vmem:[%s17 + $0x3c8] sm:$0xff]
      %v2829 = vld [vmem:[%s17 + $0x3d0] sm:$0xff]
      %v2830 = vld [vmem:[%s17 + $0x3d8] sm:$0xff]
      %v2831 = vld [vmem:[%s17 + $0x3e0] sm:$0xff]
      %v2832 = vld [vmem:[%s17 + $0x3e8] sm:$0xff]
      %v2833 = vld [vmem:[%s17 + $0x3f0] sm:$0xff]
      %v2834 = vld [vmem:[%s17 + $0x3f8] sm:$0xff]
      %v2835 = vld [vmem:[%s17 + $0x400] sm:$0xff]
      %v2836 = vld [vmem:[%s17 + $0x408] sm:$0xff]
      %v2837 = vld [vmem:[%s17 + $0x410] sm:$0xff]
      %v2838 = vld [vmem:[%s17 + $0x418] sm:$0xff]
      %v2839 = vld [vmem:[%s17 + $0x420] sm:$0xff]
      %v2840 = vld [vmem:[%s17 + $0x428] sm:$0xff]
      %v2841 = vld [vmem:[%s17 + $0x430] sm:$0xff]
      %v2842 = vld [vmem:[%s17 + $0x438] sm:$0xff]
      %v2843 = vld [vmem:[%s17 + $0x440] sm:$0xff]
      %v2844 = vld [vmem:[%s17 + $0x448] sm:$0xff]
      %v2845 = vld [vmem:[%s17 + $0x450] sm:$0xff]
      %v2846 = vld [vmem:[%s17 + $0x458] sm:$0xff]
      %v2847 = vld [vmem:[%s17 + $0x460] sm:$0xff]
      %v2848 = vld [vmem:[%s17 + $0x468] sm:$0xff]
      %v2849 = vld [vmem:[%s17 + $0x470] sm:$0xff]
      %v2850 = vld [vmem:[%s17 + $0x478] sm:$0xff]
      %v2851 = vld [vmem:[%s17 + $0x480] sm:$0xff]
      %v2852 = vld [vmem:[%s17 + $0x488] sm:$0xff]
      %v2853 = vld [vmem:[%s17 + $0x490] sm:$0xff]
      %v2854 = vld [vmem:[%s17 + $0x498] sm:$0xff]
      %v2855 = vld [vmem:[%s17 + $0x4a0] sm:$0xff]
      %v2856 = vld [vmem:[%s17 + $0x4a8] sm:$0xff]
      %v2857 = vld [vmem:[%s17 + $0x4b0] sm:$0xff]
      %v2858 = vld [vmem:[%s17 + $0x4b8] sm:$0xff]
      %v2859 = vld [vmem:[%s17 + $0x4c0] sm:$0xff]
      %v2860 = vld [vmem:[%s17 + $0x4c8] sm:$0xff]
      %v2861 = vld [vmem:[%s17 + $0x4d0] sm:$0xff]
      %v2862 = vld [vmem:[%s17 + $0x4d8] sm:$0xff]
      %v2863 = vld [vmem:[%s17 + $0x4e0] sm:$0xff]
      %v2864 = vld [vmem:[%s17 + $0x4e8] sm:$0xff]
      %v2865 = vld [vmem:[%s17 + $0x4f0] sm:$0xff]
      %v2866 = vld [vmem:[%s17 + $0x4f8] sm:$0xff]
      %v2867 = vld [vmem:[%s17 + $0x500] sm:$0x7]
      %v2868 = vld [vmem:[%s17 + $0x508] sm:$0x7]
      %vm2869 = vcmask 23552
      %v2871 = vsel %vm2869, %v2700, 0
      %v2874 = vsel %vm2869, %v2706, 0
      %vm2876 = vcmask 1042432
      %v2878 = vsel %vm2876, %v2867, 0
      %v2881 = vsel %vm2876, %v2868, 0
      %2883 = vmatpush.msra.mxu0 %v2737
      %2884 = vmatpush.msra.mxu0 %v2735
      %2885 = vmatpush.msra.mxu0 %v2733
      %2886 = vmatpush.msra.mxu0 %v2731
      %2887 = vmatpush.msra.mxu0 %v2729
      %2888 = vmatpush.msra.mxu0 %v2727
      %2889 = vmatpush.msra.mxu0 %v2725
      %2890 = vmatpush.msra.mxu0 %v2723
      %2891 = vmatpush.msra.mxu0 %v2721
      %2892 = vmatpush.msra.mxu0 %v2719
      %2893 = vmatpush.msra.mxu0 %v2717
      %2894 = vmatpush.msra.mxu0 %v2715
      %2895 = vmatpush.msra.mxu0 %v2713
      %2896 = vmatpush.msra.mxu0 %v2711
      %2897 = vmatpush.msra.mxu0 %v2709
      %2898 = vmatpush.msra.mxu0 %v2707
      %2899 = vmatmul.f32.gmra.mxu0 %v2695
      %v2900 = vpop.f32.mrf.mxu0
      %v2901 = vadd.f32 0.0, %v2900
      %2902 = vmatmul.f32.gmra.mxu0 %v2701
      %v2903 = vpop.f32.mrf.mxu0
      %v2904 = vadd.f32 0.0, %v2903
      %2905 = vdwg.mxu0
      %2906 = vmatpush.msra.mxu0 %v2769
      %2907 = vmatpush.msra.mxu0 %v2767
      %2908 = vmatpush.msra.mxu0 %v2765
      %2909 = vmatpush.msra.mxu0 %v2763
      %2910 = vmatpush.msra.mxu0 %v2761
      %2911 = vmatpush.msra.mxu0 %v2759
      %2912 = vmatpush.msra.mxu0 %v2757
      %2913 = vmatpush.msra.mxu0 %v2755
      %2914 = vmatpush.msra.mxu0 %v2753
      %2915 = vmatpush.msra.mxu0 %v2751
      %2916 = vmatpush.msra.mxu0 %v2749
      %2917 = vmatpush.msra.mxu0 %v2747
      %2918 = vmatpush.msra.mxu0 %v2745
      %2919 = vmatpush.msra.mxu0 %v2743
      %2920 = vmatpush.msra.mxu0 %v2741
      %2921 = vmatpush.msra.mxu0 %v2739
      %2922 = vmatmul.f32.gmra.mxu0 %v2696
      %v2923 = vpop.f32.mrf.mxu0
      %v2924 = vadd.f32 %v2901, %v2923
      %2925 = vmatmul.f32.gmra.mxu0 %v2702
      %v2926 = vpop.f32.mrf.mxu0
      %v2927 = vadd.f32 %v2904, %v2926
      %2928 = vdwg.mxu0
      %2929 = vmatpush.msra.mxu0 %v2801
      %2930 = vmatpush.msra.mxu0 %v2799
      %2931 = vmatpush.msra.mxu0 %v2797
      %2932 = vmatpush.msra.mxu0 %v2795
      %2933 = vmatpush.msra.mxu0 %v2793
      %2934 = vmatpush.msra.mxu0 %v2791
      %2935 = vmatpush.msra.mxu0 %v2789
      %2936 = vmatpush.msra.mxu0 %v2787
      %2937 = vmatpush.msra.mxu0 %v2785
      %2938 = vmatpush.msra.mxu0 %v2783
      %2939 = vmatpush.msra.mxu0 %v2781
      %2940 = vmatpush.msra.mxu0 %v2779
      %2941 = vmatpush.msra.mxu0 %v2777
      %2942 = vmatpush.msra.mxu0 %v2775
      %2943 = vmatpush.msra.mxu0 %v2773
      %2944 = vmatpush.msra.mxu0 %v2771
      %2945 = vmatmul.f32.gmra.mxu0 %v2697
      %v2946 = vpop.f32.mrf.mxu0
      %v2947 = vadd.f32 %v2924, %v2946
      %2948 = vmatmul.f32.gmra.mxu0 %v2703
      %v2949 = vpop.f32.mrf.mxu0
      %v2950 = vadd.f32 %v2927, %v2949
      %2951 = vdwg.mxu0
      %2952 = vmatpush.msra.mxu0 %v2833
      %2953 = vmatpush.msra.mxu0 %v2831
      %2954 = vmatpush.msra.mxu0 %v2829
      %2955 = vmatpush.msra.mxu0 %v2827
      %2956 = vmatpush.msra.mxu0 %v2825
      %2957 = vmatpush.msra.mxu0 %v2823
      %2958 = vmatpush.msra.mxu0 %v2821
      %2959 = vmatpush.msra.mxu0 %v2819
      %2960 = vmatpush.msra.mxu0 %v2817
      %2961 = vmatpush.msra.mxu0 %v2815
      %2962 = vmatpush.msra.mxu0 %v2813
      %2963 = vmatpush.msra.mxu0 %v2811
      %2964 = vmatpush.msra.mxu0 %v2809
      %2965 = vmatpush.msra.mxu0 %v2807
      %2966 = vmatpush.msra.mxu0 %v2805
      %2967 = vmatpush.msra.mxu0 %v2803
      %2968 = vmatmul.f32.gmra.mxu0 %v2698
      %v2969 = vpop.f32.mrf.mxu0
      %v2970 = vadd.f32 %v2947, %v2969
      %2971 = vmatmul.f32.gmra.mxu0 %v2704
      %v2972 = vpop.f32.mrf.mxu0
      %v2973 = vadd.f32 %v2950, %v2972
      %2974 = vdwg.mxu0
      %2975 = vmatpush.msra.mxu0 %v2865
      %2976 = vmatpush.msra.mxu0 %v2863
      %2977 = vmatpush.msra.mxu0 %v2861
      %2978 = vmatpush.msra.mxu0 %v2859
      %2979 = vmatpush.msra.mxu0 %v2857
      %2980 = vmatpush.msra.mxu0 %v2855
      %2981 = vmatpush.msra.mxu0 %v2853
      %2982 = vmatpush.msra.mxu0 %v2851
      %2983 = vmatpush.msra.mxu0 %v2849
      %2984 = vmatpush.msra.mxu0 %v2847
      %2985 = vmatpush.msra.mxu0 %v2845
      %2986 = vmatpush.msra.mxu0 %v2843
      %2987 = vmatpush.msra.mxu0 %v2841
      %2988 = vmatpush.msra.mxu0 %v2839
      %2989 = vmatpush.msra.mxu0 %v2837
      %2990 = vmatpush.msra.mxu0 %v2835
      %2991 = vmatmul.f32.gmra.mxu0 %v2699
      %v2992 = vpop.f32.mrf.mxu0
      %v2993 = vadd.f32 %v2970, %v2992
      %2994 = vmatmul.f32.gmra.mxu0 %v2705
      %v2995 = vpop.f32.mrf.mxu0
      %v2996 = vadd.f32 %v2973, %v2995
      %2997 = vdwg.mxu0
      %2998 = vmatpush.msra.mxu0 0.0
      %2999 = vmatpush.msra.mxu0 0.0
      %3000 = vmatpush.msra.mxu0 0.0
      %3001 = vmatpush.msra.mxu0 0.0
      %3002 = vmatpush.msra.mxu0 0.0
      %3003 = vmatpush.msra.mxu0 0.0
      %3004 = vmatpush.msra.mxu0 0.0
      %3005 = vmatpush.msra.mxu0 0.0
      %3006 = vmatpush.msra.mxu0 0.0
      %3007 = vmatpush.msra.mxu0 0.0
      %3008 = vmatpush.msra.mxu0 0.0
      %3009 = vmatpush.msra.mxu0 0.0
      %3010 = vmatpush.msra.mxu0 0.0
      %3011 = vmatpush.msra.mxu0 0.0
      %3012 = vmatpush.msra.mxu0 0.0
      %3013 = vmatpush.msra.mxu0 %v2878
      %3014 = vmatmul.f32.gmra.mxu0 %v2871
      %v3015 = vpop.f32.mrf.mxu0
      %v3016 = vadd.f32 %v2993, %v3015
      %3017 = vmatmul.f32.gmra.mxu0 %v2874
      %v3018 = vpop.f32.mrf.mxu0
      %v3019 = vadd.f32 %v2996, %v3018
      %3020 = vdwg.mxu0
      %3021 = vmatpush.msra.mxu0 %v2738
      %3022 = vmatpush.msra.mxu0 %v2736
      %3023 = vmatpush.msra.mxu0 %v2734
      %3024 = vmatpush.msra.mxu0 %v2732
      %3025 = vmatpush.msra.mxu0 %v2730
      %3026 = vmatpush.msra.mxu0 %v2728
      %3027 = vmatpush.msra.mxu0 %v2726
      %3028 = vmatpush.msra.mxu0 %v2724
      %3029 = vmatpush.msra.mxu0 %v2722
      %3030 = vmatpush.msra.mxu0 %v2720
      %3031 = vmatpush.msra.mxu0 %v2718
      %3032 = vmatpush.msra.mxu0 %v2716
      %3033 = vmatpush.msra.mxu0 %v2714
      %3034 = vmatpush.msra.mxu0 %v2712
      %3035 = vmatpush.msra.mxu0 %v2710
      %3036 = vmatpush.msra.mxu0 %v2708
      %3037 = vmatmul.f32.gmra.mxu0 %v2695
      %v3038 = vpop.f32.mrf.mxu0
      %v3039 = vadd.f32 0.0, %v3038
      %3040 = vmatmul.f32.gmra.mxu0 %v2701
      %v3041 = vpop.f32.mrf.mxu0
      %v3042 = vadd.f32 0.0, %v3041
      %3043 = vdwg.mxu0
      %3044 = vmatpush.msra.mxu0 %v2770
      %3045 = vmatpush.msra.mxu0 %v2768
      %3046 = vmatpush.msra.mxu0 %v2766
      %3047 = vmatpush.msra.mxu0 %v2764
      %3048 = vmatpush.msra.mxu0 %v2762
      %3049 = vmatpush.msra.mxu0 %v2760
      %3050 = vmatpush.msra.mxu0 %v2758
      %3051 = vmatpush.msra.mxu0 %v2756
      %3052 = vmatpush.msra.mxu0 %v2754
      %3053 = vmatpush.msra.mxu0 %v2752
      %3054 = vmatpush.msra.mxu0 %v2750
      %3055 = vmatpush.msra.mxu0 %v2748
      %3056 = vmatpush.msra.mxu0 %v2746
      %3057 = vmatpush.msra.mxu0 %v2744
      %3058 = vmatpush.msra.mxu0 %v2742
      %3059 = vmatpush.msra.mxu0 %v2740
      %3060 = vmatmul.f32.gmra.mxu0 %v2696
      %v3061 = vpop.f32.mrf.mxu0
      %v3062 = vadd.f32 %v3039, %v3061
      %3063 = vmatmul.f32.gmra.mxu0 %v2702
      %v3064 = vpop.f32.mrf.mxu0
      %v3065 = vadd.f32 %v3042, %v3064
      %3066 = vdwg.mxu0
      %3067 = vmatpush.msra.mxu0 %v2802
      %3068 = vmatpush.msra.mxu0 %v2800
      %3069 = vmatpush.msra.mxu0 %v2798
      %3070 = vmatpush.msra.mxu0 %v2796
      %3071 = vmatpush.msra.mxu0 %v2794
      %3072 = vmatpush.msra.mxu0 %v2792
      %3073 = vmatpush.msra.mxu0 %v2790
      %3074 = vmatpush.msra.mxu0 %v2788
      %3075 = vmatpush.msra.mxu0 %v2786
      %3076 = vmatpush.msra.mxu0 %v2784
      %3077 = vmatpush.msra.mxu0 %v2782
      %3078 = vmatpush.msra.mxu0 %v2780
      %3079 = vmatpush.msra.mxu0 %v2778
      %3080 = vmatpush.msra.mxu0 %v2776
      %3081 = vmatpush.msra.mxu0 %v2774
      %3082 = vmatpush.msra.mxu0 %v2772
      %3083 = vmatmul.f32.gmra.mxu0 %v2697
      %v3084 = vpop.f32.mrf.mxu0
      %v3085 = vadd.f32 %v3062, %v3084
      %3086 = vmatmul.f32.gmra.mxu0 %v2703
      %v3087 = vpop.f32.mrf.mxu0
      %v3088 = vadd.f32 %v3065, %v3087
      %3089 = vdwg.mxu0
      %3090 = vmatpush.msra.mxu0 %v2834
      %3091 = vmatpush.msra.mxu0 %v2832
      %3092 = vmatpush.msra.mxu0 %v2830
      %3093 = vmatpush.msra.mxu0 %v2828
      %3094 = vmatpush.msra.mxu0 %v2826
      %3095 = vmatpush.msra.mxu0 %v2824
      %3096 = vmatpush.msra.mxu0 %v2822
      %3097 = vmatpush.msra.mxu0 %v2820
      %3098 = vmatpush.msra.mxu0 %v2818
      %3099 = vmatpush.msra.mxu0 %v2816
      %3100 = vmatpush.msra.mxu0 %v2814
      %3101 = vmatpush.msra.mxu0 %v2812
      %3102 = vmatpush.msra.mxu0 %v2810
      %3103 = vmatpush.msra.mxu0 %v2808
      %3104 = vmatpush.msra.mxu0 %v2806
      %3105 = vmatpush.msra.mxu0 %v2804
      %3106 = vmatmul.f32.gmra.mxu0 %v2698
      %v3107 = vpop.f32.mrf.mxu0
      %v3108 = vadd.f32 %v3085, %v3107
      %3109 = vmatmul.f32.gmra.mxu0 %v2704
      %v3110 = vpop.f32.mrf.mxu0
      %v3111 = vadd.f32 %v3088, %v3110
      %3112 = vdwg.mxu0
      %3113 = vmatpush.msra.mxu0 %v2866
      %3114 = vmatpush.msra.mxu0 %v2864
      %3115 = vmatpush.msra.mxu0 %v2862
      %3116 = vmatpush.msra.mxu0 %v2860
      %3117 = vmatpush.msra.mxu0 %v2858
      %3118 = vmatpush.msra.mxu0 %v2856
      %3119 = vmatpush.msra.mxu0 %v2854
      %3120 = vmatpush.msra.mxu0 %v2852
      %3121 = vmatpush.msra.mxu0 %v2850
      %3122 = vmatpush.msra.mxu0 %v2848
      %3123 = vmatpush.msra.mxu0 %v2846
      %3124 = vmatpush.msra.mxu0 %v2844
      %3125 = vmatpush.msra.mxu0 %v2842
      %3126 = vmatpush.msra.mxu0 %v2840
      %3127 = vmatpush.msra.mxu0 %v2838
      %3128 = vmatpush.msra.mxu0 %v2836
      %3129 = vmatmul.f32.gmra.mxu0 %v2699
      %v3130 = vpop.f32.mrf.mxu0
      %v3131 = vadd.f32 %v3108, %v3130
      %3132 = vmatmul.f32.gmra.mxu0 %v2705
      %v3133 = vpop.f32.mrf.mxu0
      %v3134 = vadd.f32 %v3111, %v3133
      %3135 = vdwg.mxu0
      %3136 = vmatpush.msra.mxu0 0.0
      %3137 = vmatpush.msra.mxu0 0.0
      %3138 = vmatpush.msra.mxu0 0.0
      %3139 = vmatpush.msra.mxu0 0.0
      %3140 = vmatpush.msra.mxu0 0.0
      %3141 = vmatpush.msra.mxu0 0.0
      %3142 = vmatpush.msra.mxu0 0.0
      %3143 = vmatpush.msra.mxu0 0.0
      %3144 = vmatpush.msra.mxu0 0.0
      %3145 = vmatpush.msra.mxu0 0.0
      %3146 = vmatpush.msra.mxu0 0.0
      %3147 = vmatpush.msra.mxu0 0.0
      %3148 = vmatpush.msra.mxu0 0.0
      %3149 = vmatpush.msra.mxu0 0.0
      %3150 = vmatpush.msra.mxu0 0.0
      %3151 = vmatpush.msra.mxu0 %v2881
      %3152 = vmatmul.f32.gmra.mxu0 %v2871
      %v3153 = vpop.f32.mrf.mxu0
      %v3154 = vadd.f32 %v3131, %v3153
      %3155 = vmatmul.f32.gmra.mxu0 %v2874
      %v3156 = vpop.f32.mrf.mxu0
      %v3157 = vadd.f32 %v3134, %v3156
      %3158 = vdwg.mxu0
      %v3159 = vld [vmem:[%s8] sm:$0xf]
      %v3160 = vld [vmem:[%s8 + $0x4] sm:$0x7]
      %v3161 = vpack.c.bf16 %v3019, %v3016
      %s3162 = scalar_lea.vmem %s8, 8
      %v3163 = vld [vmem:[%s3162] sm:$0xf]
      %v3164 = vld [vmem:[%s3162 + $0x4] sm:$0x7]
      %v3167 = vunpack.c.l.b16 %v3163
      %v3168 = vunpack.c.l.b16 %v3164
      %v3169 = vpack.c.b16 %v3168, %v3167
      %3171 = vrot.lane.b32.xlu0 %v3161, 127
      %v3172 = vpop.permute.xlu0 %3171
      %vm3173 = vcmask 80896
      %v3175 = vsel %vm3173, %v3169, 0
      %vm3177 = vcmask 1044480
      %v3179 = vsel %vm3177, %v3172, 0
      %3181 = vmatpush.bf16.msra.mxu0 0
      %3182 = vmatpush.bf16.msra.mxu0 0
      %3183 = vmatpush.bf16.msra.mxu0 0
      %3184 = vmatpush.bf16.msra.mxu0 0
      %3185 = vmatpush.bf16.msra.mxu0 0
      %3186 = vmatpush.bf16.msra.mxu0 0
      %3187 = vmatpush.bf16.msra.mxu0 0
      %3188 = vmatpush.bf16.msra.mxu0 %v3179
      %3189 = vmatmul.bf16.gmra.mxu0 %v3175
      %v3190 = vpop.f32.mrf.mxu0
      %v3191 = vadd.f32 0.0, %v3190
      %v3192 = vpop.f32.mrf.mxu0
      %v3193 = vadd.f32 0.0, %v3192
      %3194 = vdwg.mxu0
      %v3197 = vunpack.c.l.b16 %v3159
      %v3198 = vunpack.c.l.b16 %v3160
      %v3199 = vpack.c.b16 %v3198, %v3197
      %v3201 = vsel %vm3173, %v3199, 0
      %v3204 = vsel %vm3177, %v3161, 0
      %3206 = vmatpush.bf16.msra.mxu0 0
      %3207 = vmatpush.bf16.msra.mxu0 0
      %3208 = vmatpush.bf16.msra.mxu0 0
      %3209 = vmatpush.bf16.msra.mxu0 0
      %3210 = vmatpush.bf16.msra.mxu0 0
      %3211 = vmatpush.bf16.msra.mxu0 0
      %3212 = vmatpush.bf16.msra.mxu0 0
      %3213 = vmatpush.bf16.msra.mxu0 %v3204
      %3214 = vmatmul.bf16.gmra.mxu0 %v3201
      %v3215 = vpop.f32.mrf.mxu0
      %v3216 = vadd.f32 %v3191, %v3215
      %v3217 = vpop.f32.mrf.mxu0
      %v3218 = vadd.f32 %v3193, %v3217
      %3219 = vdwg.mxu0
      %s3220 = scalar_lea.vmem %s8, 16
      %v3221 = vld [vmem:[%s3220] sm:$0xf]
      %v3222 = vld [vmem:[%s3220 + $0x4] sm:$0x7]
      %v3225 = vunpack.c.l.b16 %v3221
      %v3226 = vunpack.c.l.b16 %v3222
      %v3227 = vpack.c.b16 %v3226, %v3225
      %3228 = vrot.lane.b32.xlu0 %v3161, 126
      %v3229 = vpop.permute.xlu0 %3228
      %v3231 = vsel %vm3173, %v3227, 0
      %v3234 = vsel %vm3177, %v3229, 0
      %3236 = vmatpush.bf16.msra.mxu0 0
      %3237 = vmatpush.bf16.msra.mxu0 0
      %3238 = vmatpush.bf16.msra.mxu0 0
      %3239 = vmatpush.bf16.msra.mxu0 0
      %3240 = vmatpush.bf16.msra.mxu0 0
      %3241 = vmatpush.bf16.msra.mxu0 0
      %3242 = vmatpush.bf16.msra.mxu0 0
      %3243 = vmatpush.bf16.msra.mxu0 %v3234
      %3244 = vmatmul.bf16.gmra.mxu0 %v3231
      %v3245 = vpop.f32.mrf.mxu0
      %v3246 = vadd.f32 0.0, %v3245
      %v3247 = vpop.f32.mrf.mxu0
      %v3248 = vadd.f32 0.0, %v3247
      %3249 = vdwg.mxu0
      %v3250 = vadd.f32 %v3216, %v3246
      %v3251 = vadd.f32 %v3218, %v3248
      %s3252 = scalar_lea.vmem %s8, 24
      %v3253 = vld [vmem:[%s3252] sm:$0xf]
      %v3254 = vld [vmem:[%s3252 + $0x4] sm:$0x7]
      %v3255 = vpack.c.bf16 %v3157, %v3154
      %v3258 = vunpack.c.l.b16 %v3253
      %v3259 = vunpack.c.l.b16 %v3254
      %v3260 = vpack.c.b16 %v3259, %v3258
      %3262 = vrot.lane.b32.xlu0 %v3161, 116
      %v3263 = vpop.permute.xlu0 %3262
      %3264 = vrot.lane.b32.xlu0 %v3255, 116
      %v3265 = vpop.permute.xlu0 %3264
      %vm3266 = vcmask 949248
      %v3267 = vsel %vm3266, %v3263, %v3265
      %v3269 = vsel %vm3173, %v3260, 0
      %v3272 = vsel %vm3177, %v3267, 0
      %3274 = vmatpush.bf16.msra.mxu0 0
      %3275 = vmatpush.bf16.msra.mxu0 0
      %3276 = vmatpush.bf16.msra.mxu0 0
      %3277 = vmatpush.bf16.msra.mxu0 0
      %3278 = vmatpush.bf16.msra.mxu0 0
      %3279 = vmatpush.bf16.msra.mxu0 0
      %3280 = vmatpush.bf16.msra.mxu0 0
      %3281 = vmatpush.bf16.msra.mxu0 %v3272
      %3282 = vmatmul.bf16.gmra.mxu0 %v3269
      %v3283 = vpop.f32.mrf.mxu0
      %v3284 = vadd.f32 0.0, %v3283
      %v3285 = vpop.f32.mrf.mxu0
      %v3286 = vadd.f32 0.0, %v3285
      %3287 = vdwg.mxu0
      %v3288 = vadd.f32 %v3250, %v3284
      %v3289 = vadd.f32 %v3251, %v3286
      %s3290 = scalar_lea.vmem %s8, 32
      %v3291 = vld [vmem:[%s3290] sm:$0xf]
      %v3292 = vld [vmem:[%s3290 + $0x4] sm:$0x7]
      %v3295 = vunpack.c.l.b16 %v3291
      %v3296 = vunpack.c.l.b16 %v3292
      %v3297 = vpack.c.b16 %v3296, %v3295
      %3298 = vrot.lane.b32.xlu0 %v3161, 115
      %v3299 = vpop.permute.xlu0 %3298
      %3300 = vrot.lane.b32.xlu0 %v3255, 115
      %v3301 = vpop.permute.xlu0 %3300
      %vm3302 = vcmask 941056
      %v3303 = vsel %vm3302, %v3299, %v3301
      %v3305 = vsel %vm3173, %v3297, 0
      %v3308 = vsel %vm3177, %v3303, 0
      %3310 = vmatpush.bf16.msra.mxu0 0
      %3311 = vmatpush.bf16.msra.mxu0 0
      %3312 = vmatpush.bf16.msra.mxu0 0
      %3313 = vmatpush.bf16.msra.mxu0 0
      %3314 = vmatpush.bf16.msra.mxu0 0
      %3315 = vmatpush.bf16.msra.mxu0 0
      %3316 = vmatpush.bf16.msra.mxu0 0
      %3317 = vmatpush.bf16.msra.mxu0 %v3308
      %3318 = vmatmul.bf16.gmra.mxu0 %v3305
      %v3319 = vpop.f32.mrf.mxu0
      %v3320 = vadd.f32 0.0, %v3319
      %v3321 = vpop.f32.mrf.mxu0
      %v3322 = vadd.f32 0.0, %v3321
      %3323 = vdwg.mxu0
      %v3324 = vadd.f32 %v3288, %v3320
      %v3325 = vadd.f32 %v3289, %v3322
      %s3326 = scalar_lea.vmem %s8, 40
      %v3327 = vld [vmem:[%s3326] sm:$0xf]
      %v3328 = vld [vmem:[%s3326 + $0x4] sm:$0x7]
      %v3331 = vunpack.c.l.b16 %v3327
      %v3332 = vunpack.c.l.b16 %v3328
      %v3333 = vpack.c.b16 %v3332, %v3331
      %3334 = vrot.lane.b32.xlu0 %v3161, 114
      %v3335 = vpop.permute.xlu0 %3334
      %3336 = vrot.lane.b32.xlu0 %v3255, 114
      %v3337 = vpop.permute.xlu0 %3336
      %vm3338 = vcmask 932864
      %v3339 = vsel %vm3338, %v3335, %v3337
      %v3341 = vsel %vm3173, %v3333, 0
      %v3344 = vsel %vm3177, %v3339, 0
      %3346 = vmatpush.bf16.msra.mxu0 0
      %3347 = vmatpush.bf16.msra.mxu0 0
      %3348 = vmatpush.bf16.msra.mxu0 0
      %3349 = vmatpush.bf16.msra.mxu0 0
      %3350 = vmatpush.bf16.msra.mxu0 0
      %3351 = vmatpush.bf16.msra.mxu0 0
      %3352 = vmatpush.bf16.msra.mxu0 0
      %3353 = vmatpush.bf16.msra.mxu0 %v3344
      %3354 = vmatmul.bf16.gmra.mxu0 %v3341
      %v3355 = vpop.f32.mrf.mxu0
      %v3356 = vadd.f32 0.0, %v3355
      %v3357 = vpop.f32.mrf.mxu0
      %v3358 = vadd.f32 0.0, %v3357
      %3359 = vdwg.mxu0
      %v3360 = vadd.f32 %v3324, %v3356
      %v3361 = vadd.f32 %v3325, %v3358
      %s3362 = scalar_lea.vmem %s8, 48
      %v3363 = vld [vmem:[%s3362] sm:$0xf]
      %v3364 = vld [vmem:[%s3362 + $0x4] sm:$0x7]
      %v3367 = vunpack.c.l.b16 %v3363
      %v3368 = vunpack.c.l.b16 %v3364
      %v3369 = vpack.c.b16 %v3368, %v3367
      %3370 = vrot.lane.b32.xlu0 %v3161, 104
      %v3371 = vpop.permute.xlu0 %3370
      %3372 = vrot.lane.b32.xlu0 %v3255, 104
      %v3373 = vpop.permute.xlu0 %3372
      %vm3374 = vcmask 850944
      %v3375 = vsel %vm3374, %v3371, %v3373
      %v3377 = vsel %vm3173, %v3369, 0
      %v3380 = vsel %vm3177, %v3375, 0
      %3382 = vmatpush.bf16.msra.mxu0 0
      %3383 = vmatpush.bf16.msra.mxu0 0
      %3384 = vmatpush.bf16.msra.mxu0 0
      %3385 = vmatpush.bf16.msra.mxu0 0
      %3386 = vmatpush.bf16.msra.mxu0 0
      %3387 = vmatpush.bf16.msra.mxu0 0
      %3388 = vmatpush.bf16.msra.mxu0 0
      %3389 = vmatpush.bf16.msra.mxu0 %v3380
      %3390 = vmatmul.bf16.gmra.mxu0 %v3377
      %v3391 = vpop.f32.mrf.mxu0
      %v3392 = vadd.f32 0.0, %v3391
      %v3393 = vpop.f32.mrf.mxu0
      %v3394 = vadd.f32 0.0, %v3393
      %3395 = vdwg.mxu0
      %v3396 = vadd.f32 %v3360, %v3392
      %v3397 = vadd.f32 %v3361, %v3394
      %s3398 = scalar_lea.vmem %s8, 56
      %v3399 = vld [vmem:[%s3398] sm:$0xf]
      %v3400 = vld [vmem:[%s3398 + $0x4] sm:$0x7]
      %v3403 = vunpack.c.l.b16 %v3399
      %v3404 = vunpack.c.l.b16 %v3400
      %v3405 = vpack.c.b16 %v3404, %v3403
      %3406 = vrot.lane.b32.xlu0 %v3161, 103
      %v3407 = vpop.permute.xlu0 %3406
      %3408 = vrot.lane.b32.xlu0 %v3255, 103
      %v3409 = vpop.permute.xlu0 %3408
      %vm3410 = vcmask 842752
      %v3411 = vsel %vm3410, %v3407, %v3409
      %v3413 = vsel %vm3173, %v3405, 0
      %v3416 = vsel %vm3177, %v3411, 0
      %3418 = vmatpush.bf16.msra.mxu0 0
      %3419 = vmatpush.bf16.msra.mxu0 0
      %3420 = vmatpush.bf16.msra.mxu0 0
      %3421 = vmatpush.bf16.msra.mxu0 0
      %3422 = vmatpush.bf16.msra.mxu0 0
      %3423 = vmatpush.bf16.msra.mxu0 0
      %3424 = vmatpush.bf16.msra.mxu0 0
      %3425 = vmatpush.bf16.msra.mxu0 %v3416
      %3426 = vmatmul.bf16.gmra.mxu0 %v3413
      %v3427 = vpop.f32.mrf.mxu0
      %v3428 = vadd.f32 0.0, %v3427
      %v3429 = vpop.f32.mrf.mxu0
      %v3430 = vadd.f32 0.0, %v3429
      %3431 = vdwg.mxu0
      %v3432 = vadd.f32 %v3396, %v3428
      %v3433 = vadd.f32 %v3397, %v3430
      %s3434 = scalar_lea.vmem %s8, 64
      %v3435 = vld [vmem:[%s3434] sm:$0xf]
      %v3436 = vld [vmem:[%s3434 + $0x4] sm:$0x7]
      %v3439 = vunpack.c.l.b16 %v3435
      %v3440 = vunpack.c.l.b16 %v3436
      %v3441 = vpack.c.b16 %v3440, %v3439
      %3442 = vrot.lane.b32.xlu0 %v3161, 102
      %v3443 = vpop.permute.xlu0 %3442
      %3444 = vrot.lane.b32.xlu0 %v3255, 102
      %v3445 = vpop.permute.xlu0 %3444
      %vm3446 = vcmask 834560
      %v3447 = vsel %vm3446, %v3443, %v3445
      %v3449 = vsel %vm3173, %v3441, 0
      %v3452 = vsel %vm3177, %v3447, 0
      %3454 = vmatpush.bf16.msra.mxu0 0
      %3455 = vmatpush.bf16.msra.mxu0 0
      %3456 = vmatpush.bf16.msra.mxu0 0
      %3457 = vmatpush.bf16.msra.mxu0 0
      %3458 = vmatpush.bf16.msra.mxu0 0
      %3459 = vmatpush.bf16.msra.mxu0 0
      %3460 = vmatpush.bf16.msra.mxu0 0
      %3461 = vmatpush.bf16.msra.mxu0 %v3452
      %3462 = vmatmul.bf16.gmra.mxu0 %v3449
      %v3463 = vpop.f32.mrf.mxu0
      %v3464 = vadd.f32 0.0, %v3463
      %v3465 = vpop.f32.mrf.mxu0
      %v3466 = vadd.f32 0.0, %v3465
      %3467 = vdwg.mxu0
      %v3468 = vadd.f32 %v3432, %v3464
      %v3469 = vadd.f32 %v3433, %v3466
      %v3470 = vmax.f32 %v3468, 0.0
      %v3471 = vmax.f32 %v3469, 0.0
      %v3472 = vld [vmem:[%s9] sm:$0xff]
      %v3473 = vld [vmem:[%s9 + $0x8] sm:$0x3f]
      %3475 = vset.pattern.permute.xlu0 0
      %3476 = vperm.xlu0 %3475, %v3472
      %v3477 = vpop.permute.xlu0 %3476
      %3480 = vset.pattern.permute.xlu0 0
      %3481 = vperm.xlu0 %3480, %v3473
      %v3482 = vpop.permute.xlu0 %3481
      %v3484 = vmul.f32 %v3470, %v3477
      %v3485 = vmul.f32 %v3471, %v3482
      %v3486 = vld [vmem:[%s10] sm:$0xff]
      %v3487 = vld [vmem:[%s10 + $0x8] sm:$0x3f]
      %3489 = vset.pattern.permute.xlu0 0
      %3490 = vperm.xlu0 %3489, %v3486
      %v3491 = vpop.permute.xlu0 %3490
      %3494 = vset.pattern.permute.xlu0 0
      %3495 = vperm.xlu0 %3494, %v3487
      %v3496 = vpop.permute.xlu0 %3495
      %v3498 = vadd.f32 %v3484, %v3491
      %v3499 = vadd.f32 %v3485, %v3496
      %v3500 = vld [vmem:[%s11] sm:$0xf]
      %v3501 = vld [vmem:[%s11 + $0x4] sm:$0xf]
      %v3502 = vpack.c.bf16 %v3499, %v3498
      %s3503 = scalar_lea.vmem %s11, 8
      %v3504 = vld [vmem:[%s3503] sm:$0xf]
      %v3505 = vld [vmem:[%s3503 + $0x4] sm:$0xf]
      %v3508 = vunpack.c.l.b16 %v3504
      %v3509 = vunpack.c.l.b16 %v3505
      %v3510 = vpack.c.b16 %v3509, %v3508
      %3512 = vrot.lane.b32.xlu0 %v3502, 127
      %v3513 = vpop.permute.xlu0 %3512
      %v3515 = vsel %vm2460, %v3510, 0
      %v3518 = vsel %vm2464, %v3513, 0
      %3520 = vmatpush.bf16.msra.mxu0 0
      %3521 = vmatpush.bf16.msra.mxu0 0
      %3522 = vmatpush.bf16.msra.mxu0 0
      %3523 = vmatpush.bf16.msra.mxu0 0
      %3524 = vmatpush.bf16.msra.mxu0 0
      %3525 = vmatpush.bf16.msra.mxu0 0
      %3526 = vmatpush.bf16.msra.mxu0 0
      %3527 = vmatpush.bf16.msra.mxu0 %v3518
      %3528 = vmatmul.bf16.gmra.mxu0 %v3515
      %v3529 = vpop.f32.mrf.mxu0
      %v3530 = vadd.f32 0.0, %v3529
      %v3531 = vpop.f32.mrf.mxu0
      %v3532 = vadd.f32 0.0, %v3531
      %3533 = vdwg.mxu0
      %v3536 = vunpack.c.l.b16 %v3500
      %v3537 = vunpack.c.l.b16 %v3501
      %v3538 = vpack.c.b16 %v3537, %v3536
      %v3540 = vsel %vm2460, %v3538, 0
      %v3543 = vsel %vm2464, %v3502, 0
      %3545 = vmatpush.bf16.msra.mxu0 0
      %3546 = vmatpush.bf16.msra.mxu0 0
      %3547 = vmatpush.bf16.msra.mxu0 0
      %3548 = vmatpush.bf16.msra.mxu0 0
      %3549 = vmatpush.bf16.msra.mxu0 0
      %3550 = vmatpush.bf16.msra.mxu0 0
      %3551 = vmatpush.bf16.msra.mxu0 0
      %3552 = vmatpush.bf16.msra.mxu0 %v3543
      %3553 = vmatmul.bf16.gmra.mxu0 %v3540
      %v3554 = vpop.f32.mrf.mxu0
      %v3555 = vadd.f32 %v3530, %v3554
      %v3556 = vpop.f32.mrf.mxu0
      %v3557 = vadd.f32 %v3532, %v3556
      %3558 = vdwg.mxu0
      %s3559 = scalar_lea.vmem %s11, 16
      %v3560 = vld [vmem:[%s3559] sm:$0xf]
      %v3561 = vld [vmem:[%s3559 + $0x4] sm:$0xf]
      %v3564 = vunpack.c.l.b16 %v3560
      %v3565 = vunpack.c.l.b16 %v3561
      %v3566 = vpack.c.b16 %v3565, %v3564
      %3567 = vrot.lane.b32.xlu0 %v3502, 126
      %v3568 = vpop.permute.xlu0 %3567
      %v3570 = vsel %vm2460, %v3566, 0
      %v3573 = vsel %vm2464, %v3568, 0
      %3575 = vmatpush.bf16.msra.mxu0 0
      %3576 = vmatpush.bf16.msra.mxu0 0
      %3577 = vmatpush.bf16.msra.mxu0 0
      %3578 = vmatpush.bf16.msra.mxu0 0
      %3579 = vmatpush.bf16.msra.mxu0 0
      %3580 = vmatpush.bf16.msra.mxu0 0
      %3581 = vmatpush.bf16.msra.mxu0 0
      %3582 = vmatpush.bf16.msra.mxu0 %v3573
      %3583 = vmatmul.bf16.gmra.mxu0 %v3570
      %v3584 = vpop.f32.mrf.mxu0
      %v3585 = vadd.f32 0.0, %v3584
      %v3586 = vpop.f32.mrf.mxu0
      %v3587 = vadd.f32 0.0, %v3586
      %3588 = vdwg.mxu0
      %v3589 = vadd.f32 %v3555, %v3585
      %v3590 = vadd.f32 %v3557, %v3587
      %s3591 = scalar_lea.vmem %s11, 24
      %v3592 = vld [vmem:[%s3591] sm:$0xf]
      %v3593 = vld [vmem:[%s3591 + $0x4] sm:$0xf]
      %v3596 = vunpack.c.l.b16 %v3592
      %v3597 = vunpack.c.l.b16 %v3593
      %v3598 = vpack.c.b16 %v3597, %v3596
      %3599 = vrot.lane.b32.xlu0 %v3502, 116
      %v3600 = vpop.permute.xlu0 %3599
      %v3602 = vsel %vm2460, %v3598, 0
      %v3605 = vsel %vm2464, %v3600, 0
      %3607 = vmatpush.bf16.msra.mxu0 0
      %3608 = vmatpush.bf16.msra.mxu0 0
      %3609 = vmatpush.bf16.msra.mxu0 0
      %3610 = vmatpush.bf16.msra.mxu0 0
      %3611 = vmatpush.bf16.msra.mxu0 0
      %3612 = vmatpush.bf16.msra.mxu0 0
      %3613 = vmatpush.bf16.msra.mxu0 0
      %3614 = vmatpush.bf16.msra.mxu0 %v3605
      %3615 = vmatmul.bf16.gmra.mxu0 %v3602
      %v3616 = vpop.f32.mrf.mxu0
      %v3617 = vadd.f32 0.0, %v3616
      %v3618 = vpop.f32.mrf.mxu0
      %v3619 = vadd.f32 0.0, %v3618
      %3620 = vdwg.mxu0
      %v3621 = vadd.f32 %v3589, %v3617
      %v3622 = vadd.f32 %v3590, %v3619
      %s3623 = scalar_lea.vmem %s11, 32
      %v3624 = vld [vmem:[%s3623] sm:$0xf]
      %v3625 = vld [vmem:[%s3623 + $0x4] sm:$0xf]
      %v3628 = vunpack.c.l.b16 %v3624
      %v3629 = vunpack.c.l.b16 %v3625
      %v3630 = vpack.c.b16 %v3629, %v3628
      %3631 = vrot.lane.b32.xlu0 %v3502, 115
      %v3632 = vpop.permute.xlu0 %3631
      %v3634 = vsel %vm2460, %v3630, 0
      %v3637 = vsel %vm2464, %v3632, 0
      %3639 = vmatpush.bf16.msra.mxu0 0
      %3640 = vmatpush.bf16.msra.mxu0 0
      %3641 = vmatpush.bf16.msra.mxu0 0
      %3642 = vmatpush.bf16.msra.mxu0 0
      %3643 = vmatpush.bf16.msra.mxu0 0
      %3644 = vmatpush.bf16.msra.mxu0 0
      %3645 = vmatpush.bf16.msra.mxu0 0
      %3646 = vmatpush.bf16.msra.mxu0 %v3637
      %3647 = vmatmul.bf16.gmra.mxu0 %v3634
      %v3648 = vpop.f32.mrf.mxu0
      %v3649 = vadd.f32 0.0, %v3648
      %v3650 = vpop.f32.mrf.mxu0
      %v3651 = vadd.f32 0.0, %v3650
      %3652 = vdwg.mxu0
      %v3653 = vadd.f32 %v3621, %v3649
      %v3654 = vadd.f32 %v3622, %v3651
      %s3655 = scalar_lea.vmem %s11, 40
      %v3656 = vld [vmem:[%s3655] sm:$0xf]
      %v3657 = vld [vmem:[%s3655 + $0x4] sm:$0xf]
      %v3660 = vunpack.c.l.b16 %v3656
      %v3661 = vunpack.c.l.b16 %v3657
      %v3662 = vpack.c.b16 %v3661, %v3660
      %3663 = vrot.lane.b32.xlu0 %v3502, 114
      %v3664 = vpop.permute.xlu0 %3663
      %v3666 = vsel %vm2460, %v3662, 0
      %v3669 = vsel %vm2464, %v3664, 0
      %3671 = vmatpush.bf16.msra.mxu0 0
      %3672 = vmatpush.bf16.msra.mxu0 0
      %3673 = vmatpush.bf16.msra.mxu0 0
      %3674 = vmatpush.bf16.msra.mxu0 0
      %3675 = vmatpush.bf16.msra.mxu0 0
      %3676 = vmatpush.bf16.msra.mxu0 0
      %3677 = vmatpush.bf16.msra.mxu0 0
      %3678 = vmatpush.bf16.msra.mxu0 %v3669
      %3679 = vmatmul.bf16.gmra.mxu0 %v3666
      %v3680 = vpop.f32.mrf.mxu0
      %v3681 = vadd.f32 0.0, %v3680
      %v3682 = vpop.f32.mrf.mxu0
      %v3683 = vadd.f32 0.0, %v3682
      %3684 = vdwg.mxu0
      %v3685 = vadd.f32 %v3653, %v3681
      %v3686 = vadd.f32 %v3654, %v3683
      %s3687 = scalar_lea.vmem %s11, 48
      %v3688 = vld [vmem:[%s3687] sm:$0xf]
      %v3689 = vld [vmem:[%s3687 + $0x4] sm:$0xf]
      %v3692 = vunpack.c.l.b16 %v3688
      %v3693 = vunpack.c.l.b16 %v3689
      %v3694 = vpack.c.b16 %v3693, %v3692
      %3695 = vrot.lane.b32.xlu0 %v3502, 104
      %v3696 = vpop.permute.xlu0 %3695
      %v3698 = vsel %vm2460, %v3694, 0
      %v3701 = vsel %vm2464, %v3696, 0
      %3703 = vmatpush.bf16.msra.mxu0 0
      %3704 = vmatpush.bf16.msra.mxu0 0
      %3705 = vmatpush.bf16.msra.mxu0 0
      %3706 = vmatpush.bf16.msra.mxu0 0
      %3707 = vmatpush.bf16.msra.mxu0 0
      %3708 = vmatpush.bf16.msra.mxu0 0
      %3709 = vmatpush.bf16.msra.mxu0 0
      %3710 = vmatpush.bf16.msra.mxu0 %v3701
      %3711 = vmatmul.bf16.gmra.mxu0 %v3698
      %v3712 = vpop.f32.mrf.mxu0
      %v3713 = vadd.f32 0.0, %v3712
      %v3714 = vpop.f32.mrf.mxu0
      %v3715 = vadd.f32 0.0, %v3714
      %3716 = vdwg.mxu0
      %v3717 = vadd.f32 %v3685, %v3713
      %v3718 = vadd.f32 %v3686, %v3715
      %s3719 = scalar_lea.vmem %s11, 56
      %v3720 = vld [vmem:[%s3719] sm:$0xf]
      %v3721 = vld [vmem:[%s3719 + $0x4] sm:$0xf]
      %v3724 = vunpack.c.l.b16 %v3720
      %v3725 = vunpack.c.l.b16 %v3721
      %v3726 = vpack.c.b16 %v3725, %v3724
      %3727 = vrot.lane.b32.xlu0 %v3502, 103
      %v3728 = vpop.permute.xlu0 %3727
      %v3730 = vsel %vm2460, %v3726, 0
      %v3733 = vsel %vm2464, %v3728, 0
      %3735 = vmatpush.bf16.msra.mxu0 0
      %3736 = vmatpush.bf16.msra.mxu0 0
      %3737 = vmatpush.bf16.msra.mxu0 0
      %3738 = vmatpush.bf16.msra.mxu0 0
      %3739 = vmatpush.bf16.msra.mxu0 0
      %3740 = vmatpush.bf16.msra.mxu0 0
      %3741 = vmatpush.bf16.msra.mxu0 0
      %3742 = vmatpush.bf16.msra.mxu0 %v3733
      %3743 = vmatmul.bf16.gmra.mxu0 %v3730
      %v3744 = vpop.f32.mrf.mxu0
      %v3745 = vadd.f32 0.0, %v3744
      %v3746 = vpop.f32.mrf.mxu0
      %v3747 = vadd.f32 0.0, %v3746
      %3748 = vdwg.mxu0
      %v3749 = vadd.f32 %v3717, %v3745
      %v3750 = vadd.f32 %v3718, %v3747
      %s3751 = scalar_lea.vmem %s11, 64
      %v3752 = vld [vmem:[%s3751] sm:$0xf]
      %v3753 = vld [vmem:[%s3751 + $0x4] sm:$0xf]
      %v3756 = vunpack.c.l.b16 %v3752
      %v3757 = vunpack.c.l.b16 %v3753
      %v3758 = vpack.c.b16 %v3757, %v3756
      %3759 = vrot.lane.b32.xlu0 %v3502, 102
      %v3760 = vpop.permute.xlu0 %3759
      %v3762 = vsel %vm2460, %v3758, 0
      %v3765 = vsel %vm2464, %v3760, 0
      %3767 = vmatpush.bf16.msra.mxu0 0
      %3768 = vmatpush.bf16.msra.mxu0 0
      %3769 = vmatpush.bf16.msra.mxu0 0
      %3770 = vmatpush.bf16.msra.mxu0 0
      %3771 = vmatpush.bf16.msra.mxu0 0
      %3772 = vmatpush.bf16.msra.mxu0 0
      %3773 = vmatpush.bf16.msra.mxu0 0
      %3774 = vmatpush.bf16.msra.mxu0 %v3765
      %3775 = vmatmul.bf16.gmra.mxu0 %v3762
      %v3776 = vpop.f32.mrf.mxu0
      %v3777 = vadd.f32 0.0, %v3776
      %v3778 = vpop.f32.mrf.mxu0
      %v3779 = vadd.f32 0.0, %v3778
      %3780 = vdwg.mxu0
      %v3781 = vadd.f32 %v3749, %v3777
      %v3782 = vadd.f32 %v3750, %v3779
      %v3783 = vmax.f32 %v3781, 0.0
      %v3784 = vmax.f32 %v3782, 0.0
      %v3785 = vld [vmem:[%s12] sm:$0xff]
      %v3786 = vld [vmem:[%s12 + $0x8] sm:$0xff]
      %3788 = vset.pattern.permute.xlu0 0
      %3789 = vperm.xlu0 %3788, %v3785
      %v3790 = vpop.permute.xlu0 %3789
      %3793 = vset.pattern.permute.xlu0 0
      %3794 = vperm.xlu0 %3793, %v3786
      %v3795 = vpop.permute.xlu0 %3794
      %v3797 = vmul.f32 %v3783, %v3790
      %v3798 = vmul.f32 %v3784, %v3795
      %v3799 = vld [vmem:[%s13] sm:$0xff]
      %v3800 = vld [vmem:[%s13 + $0x8] sm:$0xff]
      %3802 = vset.pattern.permute.xlu0 0
      %3803 = vperm.xlu0 %3802, %v3799
      %v3804 = vpop.permute.xlu0 %3803
      %3807 = vset.pattern.permute.xlu0 0
      %3808 = vperm.xlu0 %3807, %v3800
      %v3809 = vpop.permute.xlu0 %3808
      %v3811 = vadd.f32 %v3797, %v3804
      %v3812 = vadd.f32 %v3798, %v3809
      %v3813 = vld [vmem:[%s14] sm:$0xf]
      %v3814 = vld [vmem:[%s14 + $0x4] sm:$0xf]
      %v3815 = vld [vmem:[%s14 + $0x8] sm:$0x3]
      %v3816 = vpack.c.bf16 %v3812, %v3811
      %s3817 = scalar_lea.vmem %s14, 12
      %v3818 = vld [vmem:[%s3817] sm:$0xf]
      %v3819 = vld [vmem:[%s3817 + $0x4] sm:$0xf]
      %v3820 = vld [vmem:[%s3817 + $0x8] sm:$0x3]
      %v3824 = vunpack.c.l.b16 %v3818
      %v3825 = vunpack.c.l.b16 %v3819
      %v3826 = vunpack.c.l.b16 %v3820
      %v3827 = vpack.c.b16 %v3825, %v3824
      %v3828 = vpack.c.b16 %v3826, %v3826
      %3830 = vrot.lane.b32.xlu0 %v3816, 127
      %v3831 = vpop.permute.xlu0 %3830
      %vm3833 = vcmask 130048
      %v3835 = vsel %vm3833, %v3827, 0
      %v3838 = vsel %vm3833, %v3828, 0
      %3840 = vmatpush.bf16.msra.mxu0 0
      %3841 = vmatpush.bf16.msra.mxu0 0
      %3842 = vmatpush.bf16.msra.mxu0 0
      %3843 = vmatpush.bf16.msra.mxu0 0
      %3844 = vmatpush.bf16.msra.mxu0 0
      %3845 = vmatpush.bf16.msra.mxu0 0
      %3846 = vmatpush.bf16.msra.mxu0 0
      %3847 = vmatpush.bf16.msra.mxu0 %v3831
      %3848 = vmatmul.bf16.gmra.mxu0 %v3835
      %v3849 = vpop.f32.mrf.mxu0
      %v3850 = vadd.f32 0.0, %v3849
      %v3851 = vpop.f32.mrf.mxu0
      %v3852 = vadd.f32 0.0, %v3851
      %3853 = vmatmul.bf16.gmra.mxu0 %v3838
      %v3854 = vpop.f32.mrf.mxu0
      %v3855 = vadd.f32 0.0, %v3854
      %v3856 = vpop.f32.mrf.mxu0
      %3857 = vdwg.mxu0
      %v3861 = vunpack.c.l.b16 %v3813
      %v3862 = vunpack.c.l.b16 %v3814
      %v3863 = vunpack.c.l.b16 %v3815
      %v3864 = vpack.c.b16 %v3862, %v3861
      %v3865 = vpack.c.b16 %v3863, %v3863
      %v3867 = vsel %vm3833, %v3864, 0
      %v3870 = vsel %vm3833, %v3865, 0
      %3872 = vmatpush.bf16.msra.mxu0 0
      %3873 = vmatpush.bf16.msra.mxu0 0
      %3874 = vmatpush.bf16.msra.mxu0 0
      %3875 = vmatpush.bf16.msra.mxu0 0
      %3876 = vmatpush.bf16.msra.mxu0 0
      %3877 = vmatpush.bf16.msra.mxu0 0
      %3878 = vmatpush.bf16.msra.mxu0 0
      %3879 = vmatpush.bf16.msra.mxu0 %v3816
      %3880 = vmatmul.bf16.gmra.mxu0 %v3867
      %v3881 = vpop.f32.mrf.mxu0
      %v3882 = vadd.f32 %v3850, %v3881
      %v3883 = vpop.f32.mrf.mxu0
      %v3884 = vadd.f32 %v3852, %v3883
      %3885 = vmatmul.bf16.gmra.mxu0 %v3870
      %v3886 = vpop.f32.mrf.mxu0
      %v3887 = vadd.f32 %v3855, %v3886
      %v3888 = vpop.f32.mrf.mxu0
      %3889 = vdwg.mxu0
      %s3890 = scalar_lea.vmem %s14, 24
      %v3891 = vld [vmem:[%s3890] sm:$0xf]
      %v3892 = vld [vmem:[%s3890 + $0x4] sm:$0xf]
      %v3893 = vld [vmem:[%s3890 + $0x8] sm:$0x3]
      %v3897 = vunpack.c.l.b16 %v3891
      %v3898 = vunpack.c.l.b16 %v3892
      %v3899 = vunpack.c.l.b16 %v3893
      %v3900 = vpack.c.b16 %v3898, %v3897
      %v3901 = vpack.c.b16 %v3899, %v3899
      %3902 = vrot.lane.b32.xlu0 %v3816, 126
      %v3903 = vpop.permute.xlu0 %3902
      %v3906 = vsel %vm3833, %v3900, 0
      %v3909 = vsel %vm3833, %v3901, 0
      %3911 = vmatpush.bf16.msra.mxu0 0
      %3912 = vmatpush.bf16.msra.mxu0 0
      %3913 = vmatpush.bf16.msra.mxu0 0
      %3914 = vmatpush.bf16.msra.mxu0 0
      %3915 = vmatpush.bf16.msra.mxu0 0
      %3916 = vmatpush.bf16.msra.mxu0 0
      %3917 = vmatpush.bf16.msra.mxu0 0
      %3918 = vmatpush.bf16.msra.mxu0 %v3903
      %3919 = vmatmul.bf16.gmra.mxu0 %v3906
      %v3920 = vpop.f32.mrf.mxu0
      %v3921 = vadd.f32 0.0, %v3920
      %v3922 = vpop.f32.mrf.mxu0
      %v3923 = vadd.f32 0.0, %v3922
      %3924 = vmatmul.bf16.gmra.mxu0 %v3909
      %v3925 = vpop.f32.mrf.mxu0
      %v3926 = vadd.f32 0.0, %v3925
      %v3927 = vpop.f32.mrf.mxu0
      %3928 = vdwg.mxu0
      %v3929 = vadd.f32 %v3882, %v3921
      %v3930 = vadd.f32 %v3884, %v3923
      %v3931 = vadd.f32 %v3887, %v3926
      %s3932 = scalar_lea.vmem %s14, 36
      %v3933 = vld [vmem:[%s3932] sm:$0xf]
      %v3934 = vld [vmem:[%s3932 + $0x4] sm:$0xf]
      %v3935 = vld [vmem:[%s3932 + $0x8] sm:$0x3]
      %v3939 = vunpack.c.l.b16 %v3933
      %v3940 = vunpack.c.l.b16 %v3934
      %v3941 = vunpack.c.l.b16 %v3935
      %v3942 = vpack.c.b16 %v3940, %v3939
      %v3943 = vpack.c.b16 %v3941, %v3941
      %3944 = vrot.lane.b32.xlu0 %v3816, 116
      %v3945 = vpop.permute.xlu0 %3944
      %v3948 = vsel %vm3833, %v3942, 0
      %v3951 = vsel %vm3833, %v3943, 0
      %3953 = vmatpush.bf16.msra.mxu0 0
      %3954 = vmatpush.bf16.msra.mxu0 0
      %3955 = vmatpush.bf16.msra.mxu0 0
      %3956 = vmatpush.bf16.msra.mxu0 0
      %3957 = vmatpush.bf16.msra.mxu0 0
      %3958 = vmatpush.bf16.msra.mxu0 0
      %3959 = vmatpush.bf16.msra.mxu0 0
      %3960 = vmatpush.bf16.msra.mxu0 %v3945
      %3961 = vmatmul.bf16.gmra.mxu0 %v3948
      %v3962 = vpop.f32.mrf.mxu0
      %v3963 = vadd.f32 0.0, %v3962
      %v3964 = vpop.f32.mrf.mxu0
      %v3965 = vadd.f32 0.0, %v3964
      %3966 = vmatmul.bf16.gmra.mxu0 %v3951
      %v3967 = vpop.f32.mrf.mxu0
      %v3968 = vadd.f32 0.0, %v3967
      %v3969 = vpop.f32.mrf.mxu0
      %3970 = vdwg.mxu0
      %v3971 = vadd.f32 %v3929, %v3963
      %v3972 = vadd.f32 %v3930, %v3965
      %v3973 = vadd.f32 %v3931, %v3968
      %s3974 = scalar_lea.vmem %s14, 48
      %v3975 = vld [vmem:[%s3974] sm:$0xf]
      %v3976 = vld [vmem:[%s3974 + $0x4] sm:$0xf]
      %v3977 = vld [vmem:[%s3974 + $0x8] sm:$0x3]
      %v3981 = vunpack.c.l.b16 %v3975
      %v3982 = vunpack.c.l.b16 %v3976
      %v3983 = vunpack.c.l.b16 %v3977
      %v3984 = vpack.c.b16 %v3982, %v3981
      %v3985 = vpack.c.b16 %v3983, %v3983
      %3986 = vrot.lane.b32.xlu0 %v3816, 115
      %v3987 = vpop.permute.xlu0 %3986
      %v3990 = vsel %vm3833, %v3984, 0
      %v3993 = vsel %vm3833, %v3985, 0
      %3995 = vmatpush.bf16.msra.mxu0 0
      %3996 = vmatpush.bf16.msra.mxu0 0
      %3997 = vmatpush.bf16.msra.mxu0 0
      %3998 = vmatpush.bf16.msra.mxu0 0
      %3999 = vmatpush.bf16.msra.mxu0 0
      %4000 = vmatpush.bf16.msra.mxu0 0
      %4001 = vmatpush.bf16.msra.mxu0 0
      %4002 = vmatpush.bf16.msra.mxu0 %v3987
      %4003 = vmatmul.bf16.gmra.mxu0 %v3990
      %v4004 = vpop.f32.mrf.mxu0
      %v4005 = vadd.f32 0.0, %v4004
      %v4006 = vpop.f32.mrf.mxu0
      %v4007 = vadd.f32 0.0, %v4006
      %4008 = vmatmul.bf16.gmra.mxu0 %v3993
      %v4009 = vpop.f32.mrf.mxu0
      %v4010 = vadd.f32 0.0, %v4009
      %v4011 = vpop.f32.mrf.mxu0
      %4012 = vdwg.mxu0
      %v4013 = vadd.f32 %v3971, %v4005
      %v4014 = vadd.f32 %v3972, %v4007
      %v4015 = vadd.f32 %v3973, %v4010
      %s4016 = scalar_lea.vmem %s14, 60
      %v4017 = vld [vmem:[%s4016] sm:$0xf]
      %v4018 = vld [vmem:[%s4016 + $0x4] sm:$0xf]
      %v4019 = vld [vmem:[%s4016 + $0x8] sm:$0x3]
      %v4023 = vunpack.c.l.b16 %v4017
      %v4024 = vunpack.c.l.b16 %v4018
      %v4025 = vunpack.c.l.b16 %v4019
      %v4026 = vpack.c.b16 %v4024, %v4023
      %v4027 = vpack.c.b16 %v4025, %v4025
      %4028 = vrot.lane.b32.xlu0 %v3816, 114
      %v4029 = vpop.permute.xlu0 %4028
      %v4032 = vsel %vm3833, %v4026, 0
      %v4035 = vsel %vm3833, %v4027, 0
      %4037 = vmatpush.bf16.msra.mxu0 0
      %4038 = vmatpush.bf16.msra.mxu0 0
      %4039 = vmatpush.bf16.msra.mxu0 0
      %4040 = vmatpush.bf16.msra.mxu0 0
      %4041 = vmatpush.bf16.msra.mxu0 0
      %4042 = vmatpush.bf16.msra.mxu0 0
      %4043 = vmatpush.bf16.msra.mxu0 0
      %4044 = vmatpush.bf16.msra.mxu0 %v4029
      %4045 = vmatmul.bf16.gmra.mxu0 %v4032
      %v4046 = vpop.f32.mrf.mxu0
      %v4047 = vadd.f32 0.0, %v4046
      %v4048 = vpop.f32.mrf.mxu0
      %v4049 = vadd.f32 0.0, %v4048
      %4050 = vmatmul.bf16.gmra.mxu0 %v4035
      %v4051 = vpop.f32.mrf.mxu0
      %v4052 = vadd.f32 0.0, %v4051
      %v4053 = vpop.f32.mrf.mxu0
      %4054 = vdwg.mxu0
      %v4055 = vadd.f32 %v4013, %v4047
      %v4056 = vadd.f32 %v4014, %v4049
      %v4057 = vadd.f32 %v4015, %v4052
      %s4058 = scalar_lea.vmem %s14, 72
      %v4059 = vld [vmem:[%s4058] sm:$0xf]
      %v4060 = vld [vmem:[%s4058 + $0x4] sm:$0xf]
      %v4061 = vld [vmem:[%s4058 + $0x8] sm:$0x3]
      %v4065 = vunpack.c.l.b16 %v4059
      %v4066 = vunpack.c.l.b16 %v4060
      %v4067 = vunpack.c.l.b16 %v4061
      %v4068 = vpack.c.b16 %v4066, %v4065
      %v4069 = vpack.c.b16 %v4067, %v4067
      %4070 = vrot.lane.b32.xlu0 %v3816, 104
      %v4071 = vpop.permute.xlu0 %4070
      %v4074 = vsel %vm3833, %v4068, 0
      %v4077 = vsel %vm3833, %v4069, 0
      %4079 = vmatpush.bf16.msra.mxu0 0
      %4080 = vmatpush.bf16.msra.mxu0 0
      %4081 = vmatpush.bf16.msra.mxu0 0
      %4082 = vmatpush.bf16.msra.mxu0 0
      %4083 = vmatpush.bf16.msra.mxu0 0
      %4084 = vmatpush.bf16.msra.mxu0 0
      %4085 = vmatpush.bf16.msra.mxu0 0
      %4086 = vmatpush.bf16.msra.mxu0 %v4071
      %4087 = vmatmul.bf16.gmra.mxu0 %v4074
      %v4088 = vpop.f32.mrf.mxu0
      %v4089 = vadd.f32 0.0, %v4088
      %v4090 = vpop.f32.mrf.mxu0
      %v4091 = vadd.f32 0.0, %v4090
      %4092 = vmatmul.bf16.gmra.mxu0 %v4077
      %v4093 = vpop.f32.mrf.mxu0
      %v4094 = vadd.f32 0.0, %v4093
      %v4095 = vpop.f32.mrf.mxu0
      %4096 = vdwg.mxu0
      %v4097 = vadd.f32 %v4055, %v4089
      %v4098 = vadd.f32 %v4056, %v4091
      %v4099 = vadd.f32 %v4057, %v4094
      %s4100 = scalar_lea.vmem %s14, 84
      %v4101 = vld [vmem:[%s4100] sm:$0xf]
      %v4102 = vld [vmem:[%s4100 + $0x4] sm:$0xf]
      %v4103 = vld [vmem:[%s4100 + $0x8] sm:$0x3]
      %v4107 = vunpack.c.l.b16 %v4101
      %v4108 = vunpack.c.l.b16 %v4102
      %v4109 = vunpack.c.l.b16 %v4103
      %v4110 = vpack.c.b16 %v4108, %v4107
      %v4111 = vpack.c.b16 %v4109, %v4109
      %4112 = vrot.lane.b32.xlu0 %v3816, 103
      %v4113 = vpop.permute.xlu0 %4112
      %v4116 = vsel %vm3833, %v4110, 0
      %v4119 = vsel %vm3833, %v4111, 0
      %4121 = vmatpush.bf16.msra.mxu0 0
      %4122 = vmatpush.bf16.msra.mxu0 0
      %4123 = vmatpush.bf16.msra.mxu0 0
      %4124 = vmatpush.bf16.msra.mxu0 0
      %4125 = vmatpush.bf16.msra.mxu0 0
      %4126 = vmatpush.bf16.msra.mxu0 0
      %4127 = vmatpush.bf16.msra.mxu0 0
      %4128 = vmatpush.bf16.msra.mxu0 %v4113
      %4129 = vmatmul.bf16.gmra.mxu0 %v4116
      %v4130 = vpop.f32.mrf.mxu0
      %v4131 = vadd.f32 0.0, %v4130
      %v4132 = vpop.f32.mrf.mxu0
      %v4133 = vadd.f32 0.0, %v4132
      %4134 = vmatmul.bf16.gmra.mxu0 %v4119
      %v4135 = vpop.f32.mrf.mxu0
      %v4136 = vadd.f32 0.0, %v4135
      %v4137 = vpop.f32.mrf.mxu0
      %4138 = vdwg.mxu0
      %v4139 = vadd.f32 %v4097, %v4131
      %v4140 = vadd.f32 %v4098, %v4133
      %v4141 = vadd.f32 %v4099, %v4136
      %s4142 = scalar_lea.vmem %s14, 96
      %v4143 = vld [vmem:[%s4142] sm:$0xf]
      %v4144 = vld [vmem:[%s4142 + $0x4] sm:$0xf]
      %v4145 = vld [vmem:[%s4142 + $0x8] sm:$0x3]
      %v4149 = vunpack.c.l.b16 %v4143
      %v4150 = vunpack.c.l.b16 %v4144
      %v4151 = vunpack.c.l.b16 %v4145
      %v4152 = vpack.c.b16 %v4150, %v4149
      %v4153 = vpack.c.b16 %v4151, %v4151
      %4154 = vrot.lane.b32.xlu0 %v3816, 102
      %v4155 = vpop.permute.xlu0 %4154
      %v4158 = vsel %vm3833, %v4152, 0
      %v4161 = vsel %vm3833, %v4153, 0
      %4163 = vmatpush.bf16.msra.mxu0 0
      %4164 = vmatpush.bf16.msra.mxu0 0
      %4165 = vmatpush.bf16.msra.mxu0 0
      %4166 = vmatpush.bf16.msra.mxu0 0
      %4167 = vmatpush.bf16.msra.mxu0 0
      %4168 = vmatpush.bf16.msra.mxu0 0
      %4169 = vmatpush.bf16.msra.mxu0 0
      %4170 = vmatpush.bf16.msra.mxu0 %v4155
      %4171 = vmatmul.bf16.gmra.mxu0 %v4158
      %v4172 = vpop.f32.mrf.mxu0
      %v4173 = vadd.f32 0.0, %v4172
      %v4174 = vpop.f32.mrf.mxu0
      %v4175 = vadd.f32 0.0, %v4174
      %4176 = vmatmul.bf16.gmra.mxu0 %v4161
      %v4177 = vpop.f32.mrf.mxu0
      %v4178 = vadd.f32 0.0, %v4177
      %v4179 = vpop.f32.mrf.mxu0
      %4180 = vdwg.mxu0
      %v4181 = vadd.f32 %v4139, %v4173
      %v4182 = vadd.f32 %v4140, %v4175
      %v4183 = vadd.f32 %v4141, %v4178
      %v4184 = vmax.f32 %v4181, 0.0
      %v4185 = vmax.f32 %v4182, 0.0
      %v4186 = vmax.f32 %v4183, 0.0
      %v4187 = vld [vmem:[%s15] sm:$0xff]
      %v4188 = vld [vmem:[%s15 + $0x8] sm:$0xff]
      %v4189 = vld [vmem:[%s15 + $0x10] sm:$0xf]
      %4191 = vset.pattern.permute.xlu0 0
      %4192 = vperm.xlu0 %4191, %v4187
      %v4193 = vpop.permute.xlu0 %4192
      %4196 = vset.pattern.permute.xlu0 0
      %4197 = vperm.xlu0 %4196, %v4188
      %v4198 = vpop.permute.xlu0 %4197
      %4201 = vset.pattern.permute.xlu0 0
      %4202 = vperm.xlu0 %4201, %v4189
      %v4203 = vpop.permute.xlu0 %4202
      %v4205 = vmul.f32 %v4184, %v4193
      %v4206 = vmul.f32 %v4185, %v4198
      %v4207 = vmul.f32 %v4186, %v4203
      %v4208 = vld [vmem:[%s16] sm:$0xff]
      %v4209 = vld [vmem:[%s16 + $0x8] sm:$0xff]
      %v4210 = vld [vmem:[%s16 + $0x10] sm:$0xf]
      %4212 = vset.pattern.permute.xlu0 0
      %4213 = vperm.xlu0 %4212, %v4208
      %v4214 = vpop.permute.xlu0 %4213
      %4217 = vset.pattern.permute.xlu0 0
      %4218 = vperm.xlu0 %4217, %v4209
      %v4219 = vpop.permute.xlu0 %4218
      %4222 = vset.pattern.permute.xlu0 0
      %4223 = vperm.xlu0 %4222, %v4210
      %v4224 = vpop.permute.xlu0 %4223
      %v4226 = vadd.f32 %v4205, %v4214
      %v4227 = vadd.f32 %v4206, %v4219
      %v4228 = vadd.f32 %v4207, %v4224
      %v4229 = vld [vmem:[%s18] sm:$0xff]
      %v4230 = vld [vmem:[%s18 + $0x8] sm:$0xff]
      %v4231 = vld [vmem:[%s18 + $0x10] sm:$0xff]
      %v4232 = vld [vmem:[%s18 + $0x18] sm:$0xff]
      %v4233 = vld [vmem:[%s18 + $0x20] sm:$0xff]
      %v4234 = vld [vmem:[%s18 + $0x28] sm:$0xff]
      %v4235 = vld [vmem:[%s18 + $0x30] sm:$0xff]
      %v4236 = vld [vmem:[%s18 + $0x38] sm:$0xff]
      %v4237 = vld [vmem:[%s18 + $0x40] sm:$0xff]
      %v4239 = vsel %vm970, %v4226, 0
      %v4242 = vsel %vm970, %v4227, 0
      %v4245 = vsel %vm970, %v4228, 0
      %4247 = vmatpush.msra.mxu0 0.0
      %4248 = vmatpush.msra.mxu0 0.0
      %4249 = vmatpush.msra.mxu0 0.0
      %4250 = vmatpush.msra.mxu0 0.0
      %4251 = vmatpush.msra.mxu0 0.0
      %4252 = vmatpush.msra.mxu0 0.0
      %4253 = vmatpush.msra.mxu0 0.0
      %4254 = vmatpush.msra.mxu0 %v4237
      %4255 = vmatpush.msra.mxu0 %v4236
      %4256 = vmatpush.msra.mxu0 %v4235
      %4257 = vmatpush.msra.mxu0 %v4234
      %4258 = vmatpush.msra.mxu0 %v4233
      %4259 = vmatpush.msra.mxu0 %v4232
      %4260 = vmatpush.msra.mxu0 %v4231
      %4261 = vmatpush.msra.mxu0 %v4230
      %4262 = vmatpush.msra.mxu0 %v4229
      %4263 = vmatmul.f32.gmra.mxu0 %v4239
      %v4264 = vpop.f32.mrf.mxu0
      %v4265 = vadd.f32 0.0, %v4264
      %4266 = vmatmul.f32.gmra.mxu0 %v4242
      %v4267 = vpop.f32.mrf.mxu0
      %v4268 = vadd.f32 0.0, %v4267
      %4269 = vmatmul.f32.gmra.mxu0 %v4245
      %v4270 = vpop.f32.mrf.mxu0
      %v4271 = vadd.f32 0.0, %v4270
      %4272 = vdwg.mxu0
      %v4273 = vld [vmem:[%s19] sm:$0xff]
      %v4274 = vld [vmem:[%s19 + $0x8] sm:$0xff]
      %vm4275 = vcmask 162816
      %v4277 = vsel %vm4275, %v4273, 0
      %v4280 = vsel %vm4275, %v4274, 0
      %v4283 = vsel %vm1173, %v4271, 0
      %4285 = vmatpush.msra.mxu0 0.0
      %4286 = vmatpush.msra.mxu0 0.0
      %4287 = vmatpush.msra.mxu0 0.0
      %4288 = vmatpush.msra.mxu0 0.0
      %4289 = vmatpush.msra.mxu0 0.0
      %4290 = vmatpush.msra.mxu0 0.0
      %4291 = vmatpush.msra.mxu0 0.0
      %4292 = vmatpush.msra.mxu0 0.0
      %4293 = vmatpush.msra.mxu0 0.0
      %4294 = vmatpush.msra.mxu0 0.0
      %4295 = vmatpush.msra.mxu0 0.0
      %4296 = vmatpush.msra.mxu0 0.0
      %4297 = vmatpush.msra.mxu0 0.0
      %4298 = vmatpush.msra.mxu0 %v4283
      %4299 = vmatpush.msra.mxu0 %v4268
      %4300 = vmatpush.msra.mxu0 %v4265
      %4301 = vmatmul.f32.gmra.mxu0 %v4277
      %v4302 = vpop.f32.mrf.mxu0
      %v4303 = vadd.f32 0.0, %v4302
      %4304 = vmatmul.f32.gmra.mxu0 %v4280
      %v4305 = vpop.f32.mrf.mxu0
      %v4306 = vadd.f32 0.0, %v4305
      %4307 = vdwg.mxu0
      %v4308 = vld [vmem:[%s20] sm:$0xff]
      %v4309 = vld [vmem:[%s20 + $0x8] sm:$0x3]
      %v4311 = vsel %vm3833, %v4308, 0
      %v4314 = vsel %vm3833, %v4309, 0
      %4316 = vmatpush.msra.mxu0 0.0
      %4317 = vmatpush.msra.mxu0 0.0
      %4318 = vmatpush.msra.mxu0 0.0
      %4319 = vmatpush.msra.mxu0 0.0
      %4320 = vmatpush.msra.mxu0 0.0
      %4321 = vmatpush.msra.mxu0 0.0
      %4322 = vmatpush.msra.mxu0 0.0
      %4323 = vmatpush.msra.mxu0 0.0
      %4324 = vmatpush.msra.mxu0 0.0
      %4325 = vmatpush.msra.mxu0 0.0
      %4326 = vmatpush.msra.mxu0 0.0
      %4327 = vmatpush.msra.mxu0 0.0
      %4328 = vmatpush.msra.mxu0 0.0
      %4329 = vmatpush.msra.mxu0 0.0
      %4330 = vmatpush.msra.mxu0 %v4306
      %4331 = vmatpush.msra.mxu0 %v4303
      %4332 = vmatmul.f32.gmra.mxu0 %v4311
      %v4333 = vpop.f32.mrf.mxu0
      %v4334 = vadd.f32 0.0, %v4333
      %4335 = vmatmul.f32.gmra.mxu0 %v4314
      %v4336 = vpop.f32.mrf.mxu0
      %v4337 = vadd.f32 0.0, %v4336
      %4338 = vdwg.mxu0
      %vm4339 = vcmask 7168
      %v4340 = vsel %vm4339, %v4334, -inf
      %vm4341 = vcmask 1024
      %v4342 = vsel %vm4341, %v4337, -inf
      %v4343 = vmax.f32 %v4340, %v4342
      %v4344 = vrot.slane %v4343, 4
      %v4345 = vmax.f32 %v4343, %v4344
      %v4346 = vrot.slane %v4345, 2
      %v4347 = vmax.f32 %v4345, %v4346
      %v4348 = vrot.slane %v4347, 1
      %v4349 = vmax.f32 %v4347, %v4348
      %v4350 = vsub.f32 %v4334, %v4349
      %v4351 = vsub.f32 %v4337, %v4349
      %v4352 = vmul.f32 %v4350, 1.442695
      %v4353 = vpow.pop %v4352
      %v4354 = vmul.f32 %v4351, 1.442695
      %v4355 = vpow.pop %v4354
      %v4356 = vsel %vm4339, %v4353, 0.0
      %v4357 = vsel %vm4341, %v4355, 0.0
      %v4358 = vadd.f32 %v4356, %v4357
      %v4359 = vrot.slane %v4358, 4
      %v4360 = vadd.f32 %v4358, %v4359
      %v4361 = vrot.slane %v4360, 2
      %v4362 = vadd.f32 %v4360, %v4361
      %v4363 = vrot.slane %v4362, 1
      %v4364 = vadd.f32 %v4362, %v4363
      %v4365 = vlog2.pop %v4364
      %v4366 = vmul.f32 %v4365, 0.6931472
      %v4367 = vadd.f32 %v4366, %v4349
      %v4368 = vsub.f32 %v4334, %v4367
      %v4369 = vsub.f32 %v4337, %v4367
      %4370 = vst.msk [vmem:[%s653] sm:$0xff] %vm4339, %v4368
      %4371 = vst.msk [vmem:[%s653 + $0x8] sm:$0x3] %vm4341, %v4369
      %p4372 = scmp.lt.s32.totalorder %s32, 1
      %s4373 = scalar_select %p4372, %s32, 1
      %s4374 = smul.addr %s4373, 2
      %s4375 = smul.addr %s4374, 8
      %s4376 = scalar_lea.vmem %s21, %s4375
      // Predicated region
      $region105: #{model7_forward.1} parent=103 // pred_check
        %p4377 = pneg %p496
      $region106: #{model7_forward.1} parent=103 // pred_check_branch
        %4379 = sbr.rel (%p4377) target = $region108
      $region107: #{model7_forward.1} parent=103 // pred_region
        _
      $region108: #{model7_forward.1} parent=103 // pred_fallthru
        _
    $region104: #{model7_forward.1} parent=5 // pred_fallthru
      _
    %p4380 = scmp.le.s32.totalorder 2, %s27
    // Predicated region
    $region109: #{model7_forward.1} parent=5 // pred_check
      %p4381 = pneg %p4380
    $region110: #{model7_forward.1} parent=5 // pred_check_branch
      %4383 = sbr.rel (%p4381) target = $region112
    $region111: #{model7_forward.1} parent=5 // pred_region
      %s4384 = ssub.s32 %s27, 2
      // Predicated region
      $region113: #{model7_forward.1} parent=111 // pred_check
        %p4385 = pneg %p502
      $region114: #{model7_forward.1} parent=111 // pred_check_branch
        %4387 = sbr.rel (%p4385) target = $region116
      $region115: #{model7_forward.1} parent=111 // pred_region
        %p4388 = scmp.lt.s32.totalorder %s33, 1
        %s4389 = scalar_select %p4388, %s33, 1
        %s4390 = smul.addr %s4389, 2
        %s4391 = smul.addr %s4390, 8
        %s4392 = scalar_lea.vmem %s21, %s4391
      $region116: #{model7_forward.1} parent=111 // pred_fallthru
        _
    $region112: #{model7_forward.1} parent=5 // pred_fallthru
      _
  $region6: #{model7_forward.1} parent=0 // loop_footer
    %s31 = sadd.s32 1, %s27
  $region7: #{model7_forward.1} parent=0 // loop_footer_branch
    %26 = sbr.rel target = $region3
  $region8: #{model7_forward.1} parent=0 // loop_exit
    _

</llo_original>
